<compile_context>
chip_gen: v5e
topology: v5e:2x2
jax: 0.10.0
libtpu: 0.0.40
codegen_flags: <defaults>
</compile_context>

<pallas_src>
import functools

import jax
import jax.numpy as jnp
from jax import lax
from jax.experimental import pallas as pl
from jax.experimental.pallas import tpu as pltpu

_NEG_LARGE = -1e30  # finite "-inf": exp underflows to exactly 0, no inf-inf NaN hazard


def _self_attention_kernel(x_ref, wk_ref, wq_ref, wv_ref, wo_ref,
                           y_ref, att_ref, k_ref, acc_ref,
                           *, apperture, ignore_itself):
    i = pl.program_id(0)
    n = x_ref.shape[0]
    tq = att_ref.shape[0]
    cd = k_ref.dtype                      # MXU compute dtype (bf16 default, or f32)

    @pl.when(i == 0)
    def _init():
        # Cache K = X Wk for the whole sequence once (reused by every query tile),
        # zero the (d, n) y-pre accumulator (acc = V^T att).
        k_ref[...] = jnp.dot(x_ref[...], wk_ref[...],
                             preferred_element_type=jnp.float32).astype(cd)
        acc_ref[...] = jnp.zeros_like(acc_ref)

    row0 = pl.multiple_of(i * tq, 8)
    x_t = x_ref[pl.ds(row0, tq), :]                                       # [tq, m]

    # Q tile (0.06 scale folded into wq at prepare_weights time).  NN matmul.
    q = jnp.dot(x_t, wq_ref[...], preferred_element_type=jnp.float32)     # [tq, d] f32
    # V^T tile: contract feature axis of Wv (d, m) with x_t (tq, m).  NT matmul, so
    # V comes out already transposed and the accumulate below is a plain NN matmul.
    v_t = lax.dot_general(wv_ref[...], x_t, (((1,), (1,)), ((), ())),
                          preferred_element_type=jnp.float32)             # [d, tq] f32

    # logits = Q K^T: contract the feature axis of both (NT, no materialized K^T).
    logits = lax.dot_general(q.astype(cd), k_ref[...], (((1,), (1,)), ((), ())),
                             preferred_element_type=jnp.float32)          # [tq, n] f32

    if apperture > 0 or ignore_itself:
        rows = lax.broadcasted_iota(jnp.int32, (tq, n), 0) + row0
        cols = lax.broadcasted_iota(jnp.int32, (tq, n), 1)
        dist = jnp.abs(rows - cols)
        if apperture > 0 and ignore_itself:
            masked = (dist >= apperture) | (dist == 0)
        elif apperture > 0:
            masked = dist >= apperture
        else:
            masked = dist == 0
        logits = jnp.where(masked, _NEG_LARGE, logits)   # single fused select

    # Numerically stable softmax, kept in f32 (VPU/EUP path).
    row_max = jnp.max(logits, axis=-1, keepdims=True)
    exps = jnp.exp(logits - row_max)
    denom = jnp.sum(exps, axis=-1, keepdims=True)
    # approx=False: att is a returned output; exact reciprocal keeps reference parity.
    att = exps * pl.reciprocal(denom, approx=False)                       # [tq, n] f32

    att_ref[...] = att.astype(att_ref.dtype)

    # acc += V^T att   (NN matmul; contraction over this tile's tq query rows).
    acc_ref[...] += jnp.dot(v_t.astype(cd), att.astype(cd),
                            preferred_element_type=jnp.float32)           # [d, n] f32

    @pl.when(i == pl.num_programs(0) - 1)
    def _finalize():
        # y = acc^T Wo: the single transposed-lhs contraction, done once per call.
        y_ref[...] = lax.dot_general(acc_ref[...].astype(cd), wo_ref[...],
                                     (((0,), (0,)), ((), ())),
                                     preferred_element_type=jnp.float32
                                     ).astype(y_ref.dtype)


def prepare_weights(wk, wq, wv, wo):
    """One-time host-side prep from the nn.Linear [out, in] weights:
    wk, wq -> [m, d] (transposed; 0.06 query scale folded into wq);
    wv stays [d, m] (the kernel produces V^T directly);
    wo -> [d, m]."""
    return wk.T, (0.06 * wq).T, wv, wo.T


def _vmem_capacity_bytes():
    try:
        cap = getattr(pltpu.get_tpu_info(), "vmem_capacity_bytes", None)
        if cap:
            return int(cap)
    except Exception:
        pass
    return 64 * 2 ** 20   # conservative fallback: v7x per-TensorCore physical VMEM


def _footprint_bytes(n, m, d, tq, cd_bytes, att_bytes, const_bufs):
    const = ((n * m + 2 * m * d + 2 * d * m) * cd_bytes   # x, Wk, Wq, Wv, Wo
             + n * m * 4)                                 # y (revisited output block)
    return (const_bufs * const
            + 2 * tq * n * att_bytes                      # att out block (pipelined)
            + n * d * cd_bytes                            # K cache scratch
            + d * n * 4)                                  # acc scratch (f32)


def _choose_tq(n, m, d, cd_bytes, att_bytes, budget, const_bufs):
    """Largest sublane-aligned query tile that divides n and fits the VMEM budget.
    Prefer tq >= 256 (fills the 256-wide MXU on v6e/v7x, minimizes accumulator RMW
    passes — the likely vector-store-bound path on v5e)."""
    for tq in (512, 256, 128, 64, 32, 16, 8):
        if tq <= n and n % tq == 0 and _footprint_bytes(
                n, m, d, tq, cd_bytes, att_bytes, const_bufs) <= budget:
            return tq
    return n   # full-array block is always a legal BlockSpec


def self_attention(x, wk, wq, wv, wo, *, apperture, ignore_itself=False, tq=None,
                   compute_dtype=jnp.bfloat16, att_dtype=jnp.float32):
    """x: [n, m]; wk/wq: [m, d]; wv/wo: [d, m] (outputs of prepare_weights).

    compute_dtype: dtype of the MXU operands (x, weights, K cache, matmul inputs);
    bfloat16 by default (2-4x MXU throughput on v6e/v7x, halves resident VMEM).
    Softmax, accumulation and both outputs stay float32 unless att_dtype is changed.
    Pass compute_dtype=jnp.float32 for tight parity with an f32 reference."""
    n, m = x.shape
    d = wk.shape[1]
    cd = jnp.dtype(compute_dtype)

    # Cast MXU operands once on the host side (halves HBM->VMEM traffic and resident
    # VMEM in the bf16 default).  In production, pre-cast the weights a single time.
    x_c = x.astype(cd)
    wk_c, wq_c, wv_c, wo_c = (w.astype(cd) for w in (wk, wq, wv, wo))

    vmem_limit = int(_vmem_capacity_bytes() * 0.85)
    att_bytes = jnp.dtype(att_dtype).itemsize

    kernel = functools.partial(_self_attention_kernel, apperture=int(apperture),
                               ignore_itself=bool(ignore_itself))

    cost = pl.CostEstimate(
        flops=int(2 * n * m * d * 3 + 2 * n * n * d * 2 + 2 * n * d * m),
        transcendentals=int(n * n),
        bytes_accessed=int((n * m + 4 * m * d) * cd.itemsize
                           + n * m * 4 + n * n * att_bytes),
    )

    def build(single_buffer_constants):
        const_bufs = 1 if single_buffer_constants else 2
        tq_ = tq if tq is not None else _choose_tq(
            n, m, d, cd.itemsize, att_bytes, int(vmem_limit * 0.85), const_bufs)
        assert n % tq_ == 0 and (tq_ % 8 == 0 or tq_ == n), (
            f"query tile {tq_} must divide n={n} and be sublane (8) aligned")

        # Constant-index blocks gain nothing from double buffering; request a single
        # buffer to free VMEM (biggest win on v7x's 64 MiB) when supported.
        const_kw = {"pipeline_mode": pl.Buffered(1)} if single_buffer_constants else {}

        grid_spec = pltpu.PrefetchScalarGridSpec(
            num_scalar_prefetch=0,
            grid=(n // tq_,),
            in_specs=[
                pl.BlockSpec((n, m), lambda i: (0, 0), **const_kw),   # x (resident)
                pl.BlockSpec((m, d), lambda i: (0, 0), **const_kw),   # Wk
                pl.BlockSpec((m, d), lambda i: (0, 0), **const_kw),   # Wq (0.06 folded)
                pl.BlockSpec((d, m), lambda i: (0, 0), **const_kw),   # Wv ([d, m]: V^T path)
                pl.BlockSpec((d, m), lambda i: (0, 0), **const_kw),   # Wo
            ],
            out_specs=(
                pl.BlockSpec((n, m), lambda i: (0, 0), **const_kw),   # y (stored at last step)
                pl.BlockSpec((tq_, n), lambda i: (i, 0)),             # att rows of this tile
            ),
            scratch_shapes=[
                pltpu.VMEM((n, d), cd),            # cached K
                pltpu.VMEM((d, n), jnp.float32),   # acc = V^T att (y-pre, transposed)
            ],
        )
        return pl.pallas_call(
            kernel,
            out_shape=(jax.ShapeDtypeStruct((n, m), jnp.float32),    # y
                       jax.ShapeDtypeStruct((n, n), att_dtype)),     # att_weights_
            grid_spec=grid_spec,
            compiler_params=pltpu.CompilerParams(
                # y (= att^T V Wo) reduces over query tiles -> the grid axis revisits
                # the y output block every step, so it must be "arbitrary".
                dimension_semantics=("arbitrary",),
                vmem_limit_bytes=vmem_limit,
            ),
            cost_estimate=cost,
        )

    try:
        y, att = build(True)(x_c, wk_c, wq_c, wv_c, wo_c)
    except Exception:
        # pipeline_mode=pl.Buffered(1) rejected by this jax/Mosaic version:
        # fall back to default (double-buffered) constant blocks.
        y, att = build(False)(x_c, wk_c, wq_c, wv_c, wo_c)
    return y, att


def reference(x, wk_raw, wq_raw, wv_raw, wo_raw, *, apperture, ignore_itself=False):
    """Pure-JAX mirror of the PyTorch forward (eval mode), using raw [out,in] weights."""
    n = x.shape[0]
    k = x @ wk_raw.T
    q = (x @ wq_raw.T) * 0.06
    v = x @ wv_raw.T
    logits = q @ k.T
    i = jnp.arange(n)[:, None]
    j = jnp.arange(n)[None, :]
    if ignore_itself:
        logits = jnp.where(i == j, -jnp.inf, logits)
    if apperture > 0:
        logits = jnp.where(jnp.abs(i - j) >= apperture, -jnp.inf, logits)
    att = jax.nn.softmax(logits, axis=-1)
    y = (v.T @ att).T
    y = y @ wo_raw.T
    return y, att


if __name__ == "__main__":
    # Small but lane/sublane-dense shapes: seq n=128, input_size m=128, output_size
    # d=128, apperture=20 (module default, band mask exercised).
    n, m, d = 128, 128, 128
    apperture = 20

    key = jax.random.PRNGKey(0)
    kx, kk, kq, kv, ko = jax.random.split(key, 5)
    x = jax.random.normal(kx, (n, m), dtype=jnp.float32)
    # nn.Linear weights are [out_features, in_features].
    wk_raw = jax.random.normal(kk, (d, m), dtype=jnp.float32) * 0.05
    wq_raw = jax.random.normal(kq, (d, m), dtype=jnp.float32) * 0.05
    wv_raw = jax.random.normal(kv, (d, m), dtype=jnp.float32) * 0.05
    wo_raw = jax.random.normal(ko, (m, d), dtype=jnp.float32) * 0.05

    wk_p, wq_p, wv_p, wo_p = prepare_weights(wk_raw, wq_raw, wv_raw, wo_raw)
    y_ref, att_ref = reference(x, wk_raw, wq_raw, wv_raw, wo_raw, apperture=apperture)

    # 1) Default bf16 MXU path, tq=64 -> 2 grid steps (init / accumulate / finalize
    #    path exercised).  Tolerances sized for the reduced-precision MXU operands.
    y_bf, att_bf = self_attention(x, wk_p, wq_p, wv_p, wo_p,
                                  apperture=apperture, tq=64)
    jax.block_until_ready((y_bf, att_bf))
    assert jnp.allclose(att_bf, att_ref, atol=2e-3, rtol=2e-2), "att mismatch (bf16)"
    assert jnp.allclose(y_bf, y_ref, atol=1e-2, rtol=4e-2), "y mismatch (bf16)"

    # 2) f32 MXU path, auto-chosen tq (single grid step): tight reference parity.
    y_f32, att_f32 = self_attention(x, wk_p, wq_p, wv_p, wo_p,
                                    apperture=apperture,
                                    compute_dtype=jnp.float32)
    jax.block_until_ready((y_f32, att_f32))
    assert jnp.allclose(att_f32, att_ref, atol=5e-4, rtol=5e-3), "att mismatch (f32)"
    assert jnp.allclose(y_f32, y_ref, atol=5e-4, rtol=5e-3), "y mismatch (f32)"

    print("KERNEL_OK")
</pallas_src>

<mosaic_0001>
module attributes {stable_mosaic.version = 11 : i64} {
  func.func @_self_attention_kernel(%arg0: i32, %arg1: memref<128x128xbf16, #tpu.memory_space<vmem>>, %arg2: memref<128x128xbf16, #tpu.memory_space<vmem>>, %arg3: memref<128x128xbf16, #tpu.memory_space<vmem>>, %arg4: memref<128x128xbf16, #tpu.memory_space<vmem>>, %arg5: memref<128x128xbf16, #tpu.memory_space<vmem>>, %arg6: memref<128x128xf32, #tpu.memory_space<vmem>>, %arg7: memref<64x128xf32, #tpu.memory_space<vmem>>, %arg8: memref<128x128xbf16, #tpu.memory_space<vmem>>, %arg9: memref<128x128xf32, #tpu.memory_space<vmem>>) attributes {dimension_semantics = [#tpu.dimension_semantics<arbitrary>], iteration_bounds = array<i64: 2>, scalar_prefetch = 0 : i64, scratch_operands = 2 : i64, tpu.core_type = #tpu.core_type<tc>, window_params = [{pipeline_mode = #tpu.pipeline_mode<synchronous>, transform_indices = @transform_0, window_bounds = array<i64: 128, 128>}, {pipeline_mode = #tpu.pipeline_mode<synchronous>, transform_indices = @transform_1, window_bounds = array<i64: 128, 128>}, {pipeline_mode = #tpu.pipeline_mode<synchronous>, transform_indices = @transform_2, window_bounds = array<i64: 128, 128>}, {pipeline_mode = #tpu.pipeline_mode<synchronous>, transform_indices = @transform_3, window_bounds = array<i64: 128, 128>}, {pipeline_mode = #tpu.pipeline_mode<synchronous>, transform_indices = @transform_4, window_bounds = array<i64: 128, 128>}, {pipeline_mode = #tpu.pipeline_mode<synchronous>, transform_indices = @transform_5, window_bounds = array<i64: 128, 128>}, {transform_indices = @transform_6, window_bounds = array<i64: 64, 128>}]} {
    %c0_i32 = arith.constant 0 : i32
    %0 = arith.cmpi eq, %arg0, %c0_i32 : i32
    %1 = arith.extui %0 : i1 to i32
    %c0_i32_0 = arith.constant 0 : i32
    %2 = arith.cmpi ne, %1, %c0_i32_0 : i32
    scf.if %2 {
      %c0_20 = arith.constant 0 : index
      %c0_21 = arith.constant 0 : index
      %44 = vector.load %arg1[%c0_20, %c0_21] : memref<128x128xbf16, #tpu.memory_space<vmem>>, vector<128x128xbf16>
      %c0_22 = arith.constant 0 : index
      %c0_23 = arith.constant 0 : index
      %45 = vector.load %arg2[%c0_22, %c0_23] : memref<128x128xbf16, #tpu.memory_space<vmem>>, vector<128x128xbf16>
      %cst_24 = arith.constant dense<0.000000e+00> : vector<128x128xf32>
      %46 = tpu.matmul %44, %45, %cst_24 {dimension_numbers = #tpu.dot_dimension_numbers<[1], [0], [0], [1], [0, 0, 1, 1], [], []>} : vector<128x128xbf16>, vector<128x128xbf16>, vector<128x128xf32> -> vector<128x128xf32>
      %47 = arith.truncf %46 : vector<128x128xf32> to vector<128x128xbf16>
      %c0_25 = arith.constant 0 : index
      %c0_26 = arith.constant 0 : index
      %48 = vector.load %arg8[%c0_25, %c0_26] : memref<128x128xbf16, #tpu.memory_space<vmem>>, vector<128x128xbf16>
      tpu.vector_store %arg8[%c0_25, %c0_26], %47 {strides = array<i32>} : memref<128x128xbf16, #tpu.memory_space<vmem>>, vector<128x128xbf16>,
      %cst_27 = arith.constant 0.000000e+00 : f32
      %49 = vector.broadcast %cst_27 : f32 to vector<128x128xf32>
      %c0_28 = arith.constant 0 : index
      %c0_29 = arith.constant 0 : index
      %50 = vector.load %arg9[%c0_28, %c0_29] : memref<128x128xf32, #tpu.memory_space<vmem>>, vector<128x128xf32>
      tpu.vector_store %arg9[%c0_28, %c0_29], %49 {strides = array<i32>} : memref<128x128xf32, #tpu.memory_space<vmem>>, vector<128x128xf32>,
    } else {
    }
    %c64_i32 = arith.constant 64 : i32
    %3 = arith.muli %arg0, %c64_i32 : i32
    %4 = tpu.assume_multiple %3, 8 : i32
    %5 = arith.index_cast %4 : i32 to index
    %c0 = arith.constant 0 : index
    %6 = vector.load %arg1[%5, %c0] : memref<128x128xbf16, #tpu.memory_space<vmem>>, vector<64x128xbf16>
    %c0_1 = arith.constant 0 : index
    %c0_2 = arith.constant 0 : index
    %7 = vector.load %arg3[%c0_1, %c0_2] : memref<128x128xbf16, #tpu.memory_space<vmem>>, vector<128x128xbf16>
    %cst = arith.constant dense<0.000000e+00> : vector<64x128xf32>
    %8 = tpu.matmul %6, %7, %cst {dimension_numbers = #tpu.dot_dimension_numbers<[1], [0], [0], [1], [0, 0, 1, 1], [], []>} : vector<64x128xbf16>, vector<128x128xbf16>, vector<64x128xf32> -> vector<64x128xf32>
    %c0_3 = arith.constant 0 : index
    %c0_4 = arith.constant 0 : index
    %9 = vector.load %arg4[%c0_3, %c0_4] : memref<128x128xbf16, #tpu.memory_space<vmem>>, vector<128x128xbf16>
    %cst_5 = arith.constant dense<0.000000e+00> : vector<128x64xf32>
    %10 = tpu.matmul %9, %6, %cst_5 {dimension_numbers = #tpu.dot_dimension_numbers<[1], [1], [0], [0], [0, 0, 1, 0], [], []>} : vector<128x128xbf16>, vector<64x128xbf16>, vector<128x64xf32> -> vector<128x64xf32>
    %11 = arith.truncf %8 : vector<64x128xf32> to vector<64x128xbf16>
    %c0_6 = arith.constant 0 : index
    %c0_7 = arith.constant 0 : index
    %12 = vector.load %arg8[%c0_6, %c0_7] : memref<128x128xbf16, #tpu.memory_space<vmem>>, vector<128x128xbf16>
    %cst_8 = arith.constant dense<0.000000e+00> : vector<64x128xf32>
    %13 = tpu.matmul %11, %12, %cst_8 {dimension_numbers = #tpu.dot_dimension_numbers<[1], [1], [0], [0], [0, 0, 1, 0], [], []>} : vector<64x128xbf16>, vector<128x128xbf16>, vector<64x128xf32> -> vector<64x128xf32>
    %14 = tpu.iota {dimensions = array<i32: 0>} : vector<64x128xi32>
    %15 = vector.broadcast %4 : i32 to vector<64x128xi32>
    %16 = arith.addi %14, %15 : vector<64x128xi32>
    %17 = tpu.iota {dimensions = array<i32: 1>} : vector<64x128xi32>
    %18 = arith.subi %16, %17 : vector<64x128xi32>
    %19 = math.absi %18 : vector<64x128xi32>
    %c20_i32 = arith.constant 20 : i32
    %20 = vector.broadcast %c20_i32 : i32 to vector<64x128xi32>
    %21 = arith.cmpi sge, %19, %20 : vector<64x128xi32>
    %cst_9 = arith.constant -1.000000e+30 : f32
    %22 = vector.broadcast %cst_9 : f32 to vector<64x128xf32>
    %23 = arith.select %21, %22, %13 : vector<64x128xi1>, vector<64x128xf32>
    %cst_10 = arith.constant dense<0xFF800000> : vector<64xf32>
    %24 = vector.multi_reduction <maximumf>, %23, %cst_10 [1] : vector<64x128xf32> to vector<64xf32>
    %25 = vector.shape_cast %24 : vector<64xf32> to vector<64x1xf32>
    %26 = vector.broadcast %25 : vector<64x1xf32> to vector<64x128xf32>
    %27 = arith.subf %23, %26 : vector<64x128xf32>
    %28 = math.exp %27 : vector<64x128xf32>
    %cst_11 = arith.constant dense<0.000000e+00> : vector<64xf32>
    %29 = vector.multi_reduction <add>, %28, %cst_11 [1] : vector<64x128xf32> to vector<64xf32>
    %30 = vector.shape_cast %29 : vector<64xf32> to vector<64x1xf32>
    %31 = tpu.reciprocal %30 : vector<64x1xf32> -> vector<64x1xf32>
    %32 = vector.broadcast %31 : vector<64x1xf32> to vector<64x128xf32>
    %33 = arith.mulf %28, %32 : vector<64x128xf32>
    %c0_12 = arith.constant 0 : index
    %c0_13 = arith.constant 0 : index
    %34 = vector.load %arg7[%c0_12, %c0_13] : memref<64x128xf32, #tpu.memory_space<vmem>>, vector<64x128xf32>
    tpu.vector_store %arg7[%c0_12, %c0_13], %33 {strides = array<i32>} : memref<64x128xf32, #tpu.memory_space<vmem>>, vector<64x128xf32>,
    %c0_14 = arith.constant 0 : index
    %c0_15 = arith.constant 0 : index
    %35 = vector.load %arg9[%c0_14, %c0_15] : memref<128x128xf32, #tpu.memory_space<vmem>>, vector<128x128xf32>
    %36 = arith.truncf %10 : vector<128x64xf32> to vector<128x64xbf16>
    %37 = arith.truncf %33 : vector<64x128xf32> to vector<64x128xbf16>
    %cst_16 = arith.constant dense<0.000000e+00> : vector<128x128xf32>
    %38 = tpu.matmul %36, %37, %cst_16 {dimension_numbers = #tpu.dot_dimension_numbers<[1], [0], [0], [1], [0, 0, 1, 1], [], []>} : vector<128x64xbf16>, vector<64x128xbf16>, vector<128x128xf32> -> vector<128x128xf32>
    %39 = arith.addf %35, %38 : vector<128x128xf32>
    %c0_17 = arith.constant 0 : index
    %c0_18 = arith.constant 0 : index
    %40 = vector.load %arg9[%c0_17, %c0_18] : memref<128x128xf32, #tpu.memory_space<vmem>>, vector<128x128xf32>
    tpu.vector_store %arg9[%c0_17, %c0_18], %39 {strides = array<i32>} : memref<128x128xf32, #tpu.memory_space<vmem>>, vector<128x128xf32>,
    %c1_i32 = arith.constant 1 : i32
    %41 = arith.cmpi eq, %arg0, %c1_i32 : i32
    %42 = arith.extui %41 : i1 to i32
    %c0_i32_19 = arith.constant 0 : i32
    %43 = arith.cmpi ne, %42, %c0_i32_19 : i32
    scf.if %43 {
      %c0_20 = arith.constant 0 : index
      %c0_21 = arith.constant 0 : index
      %44 = vector.load %arg9[%c0_20, %c0_21] : memref<128x128xf32, #tpu.memory_space<vmem>>, vector<128x128xf32>
      %45 = arith.truncf %44 : vector<128x128xf32> to vector<128x128xbf16>
      %c0_22 = arith.constant 0 : index
      %c0_23 = arith.constant 0 : index
      %46 = vector.load %arg5[%c0_22, %c0_23] : memref<128x128xbf16, #tpu.memory_space<vmem>>, vector<128x128xbf16>
      %cst_24 = arith.constant dense<0.000000e+00> : vector<128x128xf32>
      %47 = tpu.matmul %45, %46, %cst_24 {dimension_numbers = #tpu.dot_dimension_numbers<[0], [0], [1], [1], [0, 1, 1, 1], [], []>} : vector<128x128xbf16>, vector<128x128xbf16>, vector<128x128xf32> -> vector<128x128xf32>
      %c0_25 = arith.constant 0 : index
      %c0_26 = arith.constant 0 : index
      %48 = vector.load %arg6[%c0_25, %c0_26] : memref<128x128xf32, #tpu.memory_space<vmem>>, vector<128x128xf32>
      tpu.vector_store %arg6[%c0_25, %c0_26], %47 {strides = array<i32>} : memref<128x128xf32, #tpu.memory_space<vmem>>, vector<128x128xf32>,
    } else {
    }
    return
  }
  func.func @transform_0(%arg0: i32) -> (i32, i32) {
    %c0_i32 = arith.constant 0 : i32
    %c0_i32_0 = arith.constant 0 : i32
    %c0_i32_1 = arith.constant 0 : i32
    return %c0_i32, %c0_i32_0 : i32, i32
  }
  func.func @transform_1(%arg0: i32) -> (i32, i32) {
    %c0_i32 = arith.constant 0 : i32
    %c0_i32_0 = arith.constant 0 : i32
    %c0_i32_1 = arith.constant 0 : i32
    return %c0_i32, %c0_i32_0 : i32, i32
  }
  func.func @transform_2(%arg0: i32) -> (i32, i32) {
    %c0_i32 = arith.constant 0 : i32
    %c0_i32_0 = arith.constant 0 : i32
    %c0_i32_1 = arith.constant 0 : i32
    return %c0_i32, %c0_i32_0 : i32, i32
  }
  func.func @transform_3(%arg0: i32) -> (i32, i32) {
    %c0_i32 = arith.constant 0 : i32
    %c0_i32_0 = arith.constant 0 : i32
    %c0_i32_1 = arith.constant 0 : i32
    return %c0_i32, %c0_i32_0 : i32, i32
  }
  func.func @transform_4(%arg0: i32) -> (i32, i32) {
    %c0_i32 = arith.constant 0 : i32
    %c0_i32_0 = arith.constant 0 : i32
    %c0_i32_1 = arith.constant 0 : i32
    return %c0_i32, %c0_i32_0 : i32, i32
  }
  func.func @transform_5(%arg0: i32) -> (i32, i32) {
    %c0_i32 = arith.constant 0 : i32
    %c0_i32_0 = arith.constant 0 : i32
    %c0_i32_1 = arith.constant 0 : i32
    return %c0_i32, %c0_i32_0 : i32, i32
  }
  func.func @transform_6(%arg0: i32) -> (i32, i32) {
    %c0_i32 = arith.constant 0 : i32
    %c0_i32_0 = arith.constant 0 : i32
    return %arg0, %c0_i32 : i32, i32
  }
}

module attributes {stable_mosaic.version = 11 : i64} {
  func.func @_self_attention_kernel(%arg0: i32, %arg1: memref<128x128xbf16, #tpu.memory_space<vmem>>, %arg2: memref<128x128xbf16, #tpu.memory_space<vmem>>, %arg3: memref<128x128xbf16, #tpu.memory_space<vmem>>, %arg4: memref<128x128xbf16, #tpu.memory_space<vmem>>, %arg5: memref<128x128xbf16, #tpu.memory_space<vmem>>, %arg6: memref<128x128xf32, #tpu.memory_space<vmem>>, %arg7: memref<64x128xf32, #tpu.memory_space<vmem>>, %arg8: memref<128x128xbf16, #tpu.memory_space<vmem>>, %arg9: memref<128x128xf32, #tpu.memory_space<vmem>>) attributes {dimension_semantics = [#tpu.dimension_semantics<arbitrary>], iteration_bounds = array<i64: 2>, scalar_prefetch = 0 : i64, scratch_operands = 2 : i64, tpu.core_type = #tpu.core_type<tc>, window_params = [{pipeline_mode = #tpu.pipeline_mode<synchronous>, transform_indices = @transform_0, window_bounds = array<i64: 128, 128>}, {pipeline_mode = #tpu.pipeline_mode<synchronous>, transform_indices = @transform_1, window_bounds = array<i64: 128, 128>}, {pipeline_mode = #tpu.pipeline_mode<synchronous>, transform_indices = @transform_2, window_bounds = array<i64: 128, 128>}, {pipeline_mode = #tpu.pipeline_mode<synchronous>, transform_indices = @transform_3, window_bounds = array<i64: 128, 128>}, {pipeline_mode = #tpu.pipeline_mode<synchronous>, transform_indices = @transform_4, window_bounds = array<i64: 128, 128>}, {pipeline_mode = #tpu.pipeline_mode<synchronous>, transform_indices = @transform_5, window_bounds = array<i64: 128, 128>}, {transform_indices = @transform_6, window_bounds = array<i64: 64, 128>}]} {
    %c0_i32 = arith.constant 0 : i32
    %0 = arith.cmpi eq, %arg0, %c0_i32 : i32
    %1 = arith.extui %0 : i1 to i32
    %c0_i32_0 = arith.constant 0 : i32
    %2 = arith.cmpi ne, %1, %c0_i32_0 : i32
    scf.if %2 {
      %c0_20 = arith.constant 0 : index
      %c0_21 = arith.constant 0 : index
      %44 = vector.load %arg1[%c0_20, %c0_21] : memref<128x128xbf16, #tpu.memory_space<vmem>>, vector<128x128xbf16>
      %c0_22 = arith.constant 0 : index
      %c0_23 = arith.constant 0 : index
      %45 = vector.load %arg2[%c0_22, %c0_23] : memref<128x128xbf16, #tpu.memory_space<vmem>>, vector<128x128xbf16>
      %cst_24 = arith.constant dense<0.000000e+00> : vector<128x128xf32>
      %46 = tpu.matmul %44, %45, %cst_24 {dimension_numbers = #tpu.dot_dimension_numbers<[1], [0], [0], [1], [0, 0, 1, 1], [], []>} : vector<128x128xbf16>, vector<128x128xbf16>, vector<128x128xf32> -> vector<128x128xf32>
      %47 = arith.truncf %46 : vector<128x128xf32> to vector<128x128xbf16>
      %c0_25 = arith.constant 0 : index
      %c0_26 = arith.constant 0 : index
      %48 = vector.load %arg8[%c0_25, %c0_26] : memref<128x128xbf16, #tpu.memory_space<vmem>>, vector<128x128xbf16>
      tpu.vector_store %arg8[%c0_25, %c0_26], %47 {strides = array<i32>} : memref<128x128xbf16, #tpu.memory_space<vmem>>, vector<128x128xbf16>,
      %cst_27 = arith.constant 0.000000e+00 : f32
      %49 = vector.broadcast %cst_27 : f32 to vector<128x128xf32>
      %c0_28 = arith.constant 0 : index
      %c0_29 = arith.constant 0 : index
      %50 = vector.load %arg9[%c0_28, %c0_29] : memref<128x128xf32, #tpu.memory_space<vmem>>, vector<128x128xf32>
      tpu.vector_store %arg9[%c0_28, %c0_29], %49 {strides = array<i32>} : memref<128x128xf32, #tpu.memory_space<vmem>>, vector<128x128xf32>,
    } else {
    }
    %c64_i32 = arith.constant 64 : i32
    %3 = arith.muli %arg0, %c64_i32 : i32
    %4 = tpu.assume_multiple %3, 8 : i32
    %5 = arith.index_cast %4 : i32 to index
    %c0 = arith.constant 0 : index
    %6 = vector.load %arg1[%5, %c0] : memref<128x128xbf16, #tpu.memory_space<vmem>>, vector<64x128xbf16>
    %c0_1 = arith.constant 0 : index
    %c0_2 = arith.constant 0 : index
    %7 = vector.load %arg3[%c0_1, %c0_2] : memref<128x128xbf16, #tpu.memory_space<vmem>>, vector<128x128xbf16>
    %cst = arith.constant dense<0.000000e+00> : vector<64x128xf32>
    %8 = tpu.matmul %6, %7, %cst {dimension_numbers = #tpu.dot_dimension_numbers<[1], [0], [0], [1], [0, 0, 1, 1], [], []>} : vector<64x128xbf16>, vector<128x128xbf16>, vector<64x128xf32> -> vector<64x128xf32>
    %c0_3 = arith.constant 0 : index
    %c0_4 = arith.constant 0 : index
    %9 = vector.load %arg4[%c0_3, %c0_4] : memref<128x128xbf16, #tpu.memory_space<vmem>>, vector<128x128xbf16>
    %cst_5 = arith.constant dense<0.000000e+00> : vector<128x64xf32>
    %10 = tpu.matmul %9, %6, %cst_5 {dimension_numbers = #tpu.dot_dimension_numbers<[1], [1], [0], [0], [0, 0, 1, 0], [], []>} : vector<128x128xbf16>, vector<64x128xbf16>, vector<128x64xf32> -> vector<128x64xf32>
    %11 = arith.truncf %8 : vector<64x128xf32> to vector<64x128xbf16>
    %c0_6 = arith.constant 0 : index
    %c0_7 = arith.constant 0 : index
    %12 = vector.load %arg8[%c0_6, %c0_7] : memref<128x128xbf16, #tpu.memory_space<vmem>>, vector<128x128xbf16>
    %cst_8 = arith.constant dense<0.000000e+00> : vector<64x128xf32>
    %13 = tpu.matmul %11, %12, %cst_8 {dimension_numbers = #tpu.dot_dimension_numbers<[1], [1], [0], [0], [0, 0, 1, 0], [], []>} : vector<64x128xbf16>, vector<128x128xbf16>, vector<64x128xf32> -> vector<64x128xf32>
    %14 = tpu.iota {dimensions = array<i32: 0>} : vector<64x128xi32>
    %15 = vector.broadcast %4 : i32 to vector<64x128xi32>
    %16 = arith.addi %14, %15 : vector<64x128xi32>
    %17 = tpu.iota {dimensions = array<i32: 1>} : vector<64x128xi32>
    %18 = arith.subi %16, %17 : vector<64x128xi32>
    %19 = math.absi %18 : vector<64x128xi32>
    %c20_i32 = arith.constant 20 : i32
    %20 = vector.broadcast %c20_i32 : i32 to vector<64x128xi32>
    %21 = arith.cmpi sge, %19, %20 : vector<64x128xi32>
    %cst_9 = arith.constant -1.000000e+30 : f32
    %22 = vector.broadcast %cst_9 : f32 to vector<64x128xf32>
    %23 = arith.select %21, %22, %13 : vector<64x128xi1>, vector<64x128xf32>
    %cst_10 = arith.constant dense<0xFF800000> : vector<64xf32>
    %24 = vector.multi_reduction <maximumf>, %23, %cst_10 [1] : vector<64x128xf32> to vector<64xf32>
    %25 = vector.shape_cast %24 : vector<64xf32> to vector<64x1xf32>
    %26 = vector.broadcast %25 : vector<64x1xf32> to vector<64x128xf32>
    %27 = arith.subf %23, %26 : vector<64x128xf32>
    %28 = math.exp %27 : vector<64x128xf32>
    %cst_11 = arith.constant dense<0.000000e+00> : vector<64xf32>
    %29 = vector.multi_reduction <add>, %28, %cst_11 [1] : vector<64x128xf32> to vector<64xf32>
    %30 = vector.shape_cast %29 : vector<64xf32> to vector<64x1xf32>
    %31 = tpu.reciprocal %30 : vector<64x1xf32> -> vector<64x1xf32>
    %32 = vector.broadcast %31 : vector<64x1xf32> to vector<64x128xf32>
    %33 = arith.mulf %28, %32 : vector<64x128xf32>
    %c0_12 = arith.constant 0 : index
    %c0_13 = arith.constant 0 : index
    %34 = vector.load %arg7[%c0_12, %c0_13] : memref<64x128xf32, #tpu.memory_space<vmem>>, vector<64x128xf32>
    tpu.vector_store %arg7[%c0_12, %c0_13], %33 {strides = array<i32>} : memref<64x128xf32, #tpu.memory_space<vmem>>, vector<64x128xf32>,
    %c0_14 = arith.constant 0 : index
    %c0_15 = arith.constant 0 : index
    %35 = vector.load %arg9[%c0_14, %c0_15] : memref<128x128xf32, #tpu.memory_space<vmem>>, vector<128x128xf32>
    %36 = arith.truncf %10 : vector<128x64xf32> to vector<128x64xbf16>
    %37 = arith.truncf %33 : vector<64x128xf32> to vector<64x128xbf16>
    %cst_16 = arith.constant dense<0.000000e+00> : vector<128x128xf32>
    %38 = tpu.matmul %36, %37, %cst_16 {dimension_numbers = #tpu.dot_dimension_numbers<[1], [0], [0], [1], [0, 0, 1, 1], [], []>} : vector<128x64xbf16>, vector<64x128xbf16>, vector<128x128xf32> -> vector<128x128xf32>
    %39 = arith.addf %35, %38 : vector<128x128xf32>
    %c0_17 = arith.constant 0 : index
    %c0_18 = arith.constant 0 : index
    %40 = vector.load %arg9[%c0_17, %c0_18] : memref<128x128xf32, #tpu.memory_space<vmem>>, vector<128x128xf32>
    tpu.vector_store %arg9[%c0_17, %c0_18], %39 {strides = array<i32>} : memref<128x128xf32, #tpu.memory_space<vmem>>, vector<128x128xf32>,
    %c1_i32 = arith.constant 1 : i32
    %41 = arith.cmpi eq, %arg0, %c1_i32 : i32
    %42 = arith.extui %41 : i1 to i32
    %c0_i32_19 = arith.constant 0 : i32
    %43 = arith.cmpi ne, %42, %c0_i32_19 : i32
    scf.if %43 {
      %c0_20 = arith.constant 0 : index
      %c0_21 = arith.constant 0 : index
      %44 = vector.load %arg9[%c0_20, %c0_21] : memref<128x128xf32, #tpu.memory_space<vmem>>, vector<128x128xf32>
      %45 = arith.truncf %44 : vector<128x128xf32> to vector<128x128xbf16>
      %c0_22 = arith.constant 0 : index
      %c0_23 = arith.constant 0 : index
      %46 = vector.load %arg5[%c0_22, %c0_23] : memref<128x128xbf16, #tpu.memory_space<vmem>>, vector<128x128xbf16>
      %cst_24 = arith.constant dense<0.000000e+00> : vector<128x128xf32>
      %47 = tpu.matmul %45, %46, %cst_24 {dimension_numbers = #tpu.dot_dimension_numbers<[0], [0], [1], [1], [0, 1, 1, 1], [], []>} : vector<128x128xbf16>, vector<128x128xbf16>, vector<128x128xf32> -> vector<128x128xf32>
      %c0_25 = arith.constant 0 : index
      %c0_26 = arith.constant 0 : index
      %48 = vector.load %arg6[%c0_25, %c0_26] : memref<128x128xf32, #tpu.memory_space<vmem>>, vector<128x128xf32>
      tpu.vector_store %arg6[%c0_25, %c0_26], %47 {strides = array<i32>} : memref<128x128xf32, #tpu.memory_space<vmem>>, vector<128x128xf32>,
    } else {
    }
    return
  }
  func.func @transform_0(%arg0: i32) -> (i32, i32) {
    %c0_i32 = arith.constant 0 : i32
    %c0_i32_0 = arith.constant 0 : i32
    %c0_i32_1 = arith.constant 0 : i32
    return %c0_i32, %c0_i32_0 : i32, i32
  }
  func.func @transform_1(%arg0: i32) -> (i32, i32) {
    %c0_i32 = arith.constant 0 : i32
    %c0_i32_0 = arith.constant 0 : i32
    %c0_i32_1 = arith.constant 0 : i32
    return %c0_i32, %c0_i32_0 : i32, i32
  }
  func.func @transform_2(%arg0: i32) -> (i32, i32) {
    %c0_i32 = arith.constant 0 : i32
    %c0_i32_0 = arith.constant 0 : i32
    %c0_i32_1 = arith.constant 0 : i32
    return %c0_i32, %c0_i32_0 : i32, i32
  }
  func.func @transform_3(%arg0: i32) -> (i32, i32) {
    %c0_i32 = arith.constant 0 : i32
    %c0_i32_0 = arith.constant 0 : i32
    %c0_i32_1 = arith.constant 0 : i32
    return %c0_i32, %c0_i32_0 : i32, i32
  }
  func.func @transform_4(%arg0: i32) -> (i32, i32) {
    %c0_i32 = arith.constant 0 : i32
    %c0_i32_0 = arith.constant 0 : i32
    %c0_i32_1 = arith.constant 0 : i32
    return %c0_i32, %c0_i32_0 : i32, i32
  }
  func.func @transform_5(%arg0: i32) -> (i32, i32) {
    %c0_i32 = arith.constant 0 : i32
    %c0_i32_0 = arith.constant 0 : i32
    %c0_i32_1 = arith.constant 0 : i32
    return %c0_i32, %c0_i32_0 : i32, i32
  }
  func.func @transform_6(%arg0: i32) -> (i32, i32) {
    %c0_i32 = arith.constant 0 : i32
    %c0_i32_0 = arith.constant 0 : i32
    return %arg0, %c0_i32 : i32, i32
  }
}

</mosaic_0001>

<llo_original>
// kernel: tpu_custom_call.1
$region0: #{tpu_custom_call.1}
  #allocation0 [shape = 'u32[]', space=smem, size = 0x4, offset = 0x4, fixed_abs, tag = 'smem constant byte address 0x4 - core index']
  #allocation1 [shape = 'u32[72,128]{1,0:T(1,128)}', space=vmem, size = 0x9000, scoped, tag = 'internal scratch']
  #allocation2 [shape = 'bf16[128,128]{1,0:T(8,128)(2,1)}', space=vmem, size = 0x8000, scoped, tag = 'scratch operand']
  #allocation3 [shape = 'f32[128,128]{1,0:T(8,128)}', space=vmem, size = 0x10000, scoped, tag = 'scratch operand']
  %s0 = inlined_call_operand.hbm [shape: bf16[128,128], index: 0, kind: input, shape index: {}]
  %s1 = inlined_call_operand.hbm [shape: bf16[128,128], index: 1, kind: input, shape index: {}]
  %s2 = inlined_call_operand.hbm [shape: bf16[128,128], index: 2, kind: input, shape index: {}]
  %s3 = inlined_call_operand.hbm [shape: bf16[128,128], index: 3, kind: input, shape index: {}]
  %s4 = inlined_call_operand.hbm [shape: bf16[128,128], index: 4, kind: input, shape index: {}]
  %s5 = inlined_call_operand.hbm [shape: f32[128,128], index: 5, kind: output, shape index: {0}]
  %s6 = inlined_call_operand.hbm [shape: f32[128,128], index: 6, kind: output, shape index: {1}]
  %7 = xla_tuple %s5, %s6
  %s8 = sld [smem:[#allocation0]]
  $region89: #{tpu_custom_call.1} parent=0
    _
  %s10 = ssub.s32 1, %s8
  %s11 = scalar_select 0, %s10, %s8
  $region1: #{tpu_custom_call.1} parent=0
    #allocation4 [shape = 'u8[32768]{0}', space=vmem, size = 0x8000, scoped, tag = 'input window, operand 0, single buffered']
    #allocation5 [shape = 's32[2]{0}', space=sflag, size = 0x8, scoped, tag = 'scoped memory for tpu_custom_call.1']
    #allocation6 [shape = 's32[2]{0}', space=sflag, size = 0x8, scoped, tag = 'scoped memory for tpu_custom_call.1']
    #allocation7 [shape = 'u8[32768]{0}', space=vmem, size = 0x8000, scoped, tag = 'input window, operand 1, single buffered']
    #allocation8 [shape = 's32[1]{0}', space=sflag, size = 0x4, scoped, tag = 'scoped memory for tpu_custom_call.1']
    #allocation9 [shape = 'u8[32768]{0}', space=vmem, size = 0x8000, scoped, tag = 'input window, operand 2, single buffered']
    #allocation10 [shape = 'u8[32768]{0}', space=vmem, size = 0x8000, scoped, tag = 'input window, operand 3, single buffered']
    #allocation11 [shape = 's32[1]{0}', space=sflag, size = 0x4, scoped, tag = 'scoped memory for tpu_custom_call.1']
    #allocation12 [shape = 'u8[32768]{0}', space=vmem, size = 0x8000, scoped, tag = 'input window, operand 4, single buffered']
    #allocation13 [shape = 'u8[65536]{0}', space=vmem, size = 0x10000, scoped, tag = 'output window, operand 0, single buffered']
    #allocation14 [shape = 'u8[65536]{0}', space=vmem, size = 0x10000, scoped, tag = 'output window, operand 1']
    #allocation15 [shape = 's32[2]{0}', space=sflag, size = 0x8, scoped, tag = 'scoped memory for tpu_custom_call.1']
    %12 = vsyncpa [#allocation5], 0
    %13 = vsyncpa [#allocation8], 0
    %14 = vsyncpa [#allocation11], 0
    %15 = vsyncpa [#allocation6], 0
    %16 = vsyncpa [#allocation15], 0
    %s17 = scalar_lea.sflag [#allocation15], 1
    %18 = vsyncpa %s17, 0
    loop: start=0, step=1, limit=4
    $region2: #{tpu_custom_call.1} parent=1 // loop_pre_header
      _
    $region3: #{tpu_custom_call.1} parent=1 // loop_header
      %s20 = sphi 0, %s24
      %p21 = scmp.ge.s32.totalorder %s20, 4
      %s28 = sphi 0, %s28
      %s30 = sphi 0, %s28
      %s31 = sphi 0, %s30
      %s45 = sphi 0, %s31
      %s49 = sphi 0, %s49
      %s51 = sphi 0, %s49
      %s52 = sphi 0, %s51
      %s66 = sphi 0, %s52
      %s70 = sphi 0, %s70
      %s72 = sphi 0, %s70
      %s73 = sphi 0, %s72
      %s87 = sphi 0, %s73
      %s91 = sphi 0, %s91
      %s93 = sphi 0, %s91
      %s94 = sphi 0, %s93
      %s108 = sphi 0, %s94
      %s112 = sphi 0, %s112
      %s114 = sphi 0, %s112
      %s115 = sphi 0, %s114
      %s129 = sphi 0, %s115
      %s133 = sphi 0, %s133
      %s135 = sphi 0, %s133
      %s136 = sphi 0, %s135
      %s150 = sphi 0, %s136
      %s156 = sphi 0, %s158
      %s159 = sphi 0, %s156
      %s160 = sphi 0, %s159
      %s176 = sphi 0, %s160
    $region4: #{tpu_custom_call.1} parent=1 // loop_header_branch
      %23 = sbr.rel (%p21) target = $region8
    $region5: #{tpu_custom_call.1} parent=1 // loop_body
      %s25 = ssub.s32 %s20, 1
      %s26 = ssub.s32 %s20, 2
      %s27 = sadd.s32 %s20, 1
      %s29 = sadd.s32 %s28, 1
      %p32 = scmp.eq.s32.totalorder %s20, 1
      %p33 = scmp.ne.s32.totalorder %s28, %s30
      %p34 = scmp.eq.s32.totalorder %s20, 0
      %p35 = por %p33, %p34
      %p36 = scmp.ne.s32.totalorder %s28, %s30
      %p37 = scmp.eq.s32.totalorder %s25, 1
      %p38 = por %p36, %p37
      %p39 = scmp.ne.s32.totalorder %s30, %s31
      %p40 = scmp.eq.s32.totalorder %s25, 0
      %p41 = por %p39, %p40
      %p42 = scmp.ne.s32.totalorder %s30, %s31
      %p43 = scmp.eq.s32.totalorder %s26, 1
      %p44 = por %p42, %p43
      %p46 = scmp.ne.s32.totalorder %s31, %s45
      %p47 = scmp.eq.s32.totalorder %s26, 0
      %p48 = por %p46, %p47
      %s50 = sadd.s32 %s49, 1
      %p53 = scmp.eq.s32.totalorder %s20, 1
      %p54 = scmp.ne.s32.totalorder %s49, %s51
      %p55 = scmp.eq.s32.totalorder %s20, 0
      %p56 = por %p54, %p55
      %p57 = scmp.ne.s32.totalorder %s49, %s51
      %p58 = scmp.eq.s32.totalorder %s25, 1
      %p59 = por %p57, %p58
      %p60 = scmp.ne.s32.totalorder %s51, %s52
      %p61 = scmp.eq.s32.totalorder %s25, 0
      %p62 = por %p60, %p61
      %p63 = scmp.ne.s32.totalorder %s51, %s52
      %p64 = scmp.eq.s32.totalorder %s26, 1
      %p65 = por %p63, %p64
      %p67 = scmp.ne.s32.totalorder %s52, %s66
      %p68 = scmp.eq.s32.totalorder %s26, 0
      %p69 = por %p67, %p68
      %s71 = sadd.s32 %s70, 1
      %p74 = scmp.eq.s32.totalorder %s20, 1
      %p75 = scmp.ne.s32.totalorder %s70, %s72
      %p76 = scmp.eq.s32.totalorder %s20, 0
      %p77 = por %p75, %p76
      %p78 = scmp.ne.s32.totalorder %s70, %s72
      %p79 = scmp.eq.s32.totalorder %s25, 1
      %p80 = por %p78, %p79
      %p81 = scmp.ne.s32.totalorder %s72, %s73
      %p82 = scmp.eq.s32.totalorder %s25, 0
      %p83 = por %p81, %p82
      %p84 = scmp.ne.s32.totalorder %s72, %s73
      %p85 = scmp.eq.s32.totalorder %s26, 1
      %p86 = por %p84, %p85
      %p88 = scmp.ne.s32.totalorder %s73, %s87
      %p89 = scmp.eq.s32.totalorder %s26, 0
      %p90 = por %p88, %p89
      %s92 = sadd.s32 %s91, 1
      %p95 = scmp.eq.s32.totalorder %s20, 1
      %p96 = scmp.ne.s32.totalorder %s91, %s93
      %p97 = scmp.eq.s32.totalorder %s20, 0
      %p98 = por %p96, %p97
      %p99 = scmp.ne.s32.totalorder %s91, %s93
      %p100 = scmp.eq.s32.totalorder %s25, 1
      %p101 = por %p99, %p100
      %p102 = scmp.ne.s32.totalorder %s93, %s94
      %p103 = scmp.eq.s32.totalorder %s25, 0
      %p104 = por %p102, %p103
      %p105 = scmp.ne.s32.totalorder %s93, %s94
      %p106 = scmp.eq.s32.totalorder %s26, 1
      %p107 = por %p105, %p106
      %p109 = scmp.ne.s32.totalorder %s94, %s108
      %p110 = scmp.eq.s32.totalorder %s26, 0
      %p111 = por %p109, %p110
      %s113 = sadd.s32 %s112, 1
      %p116 = scmp.eq.s32.totalorder %s20, 1
      %p117 = scmp.ne.s32.totalorder %s112, %s114
      %p118 = scmp.eq.s32.totalorder %s20, 0
      %p119 = por %p117, %p118
      %p120 = scmp.ne.s32.totalorder %s112, %s114
      %p121 = scmp.eq.s32.totalorder %s25, 1
      %p122 = por %p120, %p121
      %p123 = scmp.ne.s32.totalorder %s114, %s115
      %p124 = scmp.eq.s32.totalorder %s25, 0
      %p125 = por %p123, %p124
      %p126 = scmp.ne.s32.totalorder %s114, %s115
      %p127 = scmp.eq.s32.totalorder %s26, 1
      %p128 = por %p126, %p127
      %p130 = scmp.ne.s32.totalorder %s115, %s129
      %p131 = scmp.eq.s32.totalorder %s26, 0
      %p132 = por %p130, %p131
      %s134 = sadd.s32 %s133, 1
      %p137 = scmp.eq.s32.totalorder %s20, 1
      %p138 = scmp.ne.s32.totalorder %s133, %s135
      %p139 = scmp.eq.s32.totalorder %s20, 0
      %p140 = por %p138, %p139
      %p141 = scmp.ne.s32.totalorder %s133, %s135
      %p142 = scmp.eq.s32.totalorder %s25, 1
      %p143 = por %p141, %p142
      %p144 = scmp.ne.s32.totalorder %s135, %s136
      %p145 = scmp.eq.s32.totalorder %s25, 0
      %p146 = por %p144, %p145
      %p147 = scmp.ne.s32.totalorder %s135, %s136
      %p148 = scmp.eq.s32.totalorder %s26, 1
      %p149 = por %p147, %p148
      %p151 = scmp.ne.s32.totalorder %s136, %s150
      %p152 = scmp.eq.s32.totalorder %s26, 0
      %p153 = por %p151, %p152
      %s154 = ssub.s32 %s20, %s27
      %p155 = scmp.eq.s32.totalorder %s154, 0
      %s157 = sadd.s32 %s156, 1
      %s158 = scalar_select %p155, %s156, %s157
      %p161 = pneg %p155
      %p162 = scmp.eq.s32.totalorder %s20, 1
      %p163 = por %p161, %p162
      %p164 = scmp.ne.s32.totalorder %s156, %s159
      %p165 = scmp.eq.s32.totalorder %s20, 0
      %p166 = por %p164, %p165
      %p167 = scmp.ne.s32.totalorder %s156, %s159
      %p168 = scmp.eq.s32.totalorder %s25, 1
      %p169 = por %p167, %p168
      %p170 = scmp.ne.s32.totalorder %s159, %s160
      %p171 = scmp.eq.s32.totalorder %s25, 0
      %p172 = por %p170, %p171
      %p173 = scmp.ne.s32.totalorder %s159, %s160
      %p174 = scmp.eq.s32.totalorder %s26, 1
      %p175 = por %p173, %p174
      %p177 = scmp.ne.s32.totalorder %s160, %s176
      %p178 = scmp.eq.s32.totalorder %s26, 0
      %p179 = por %p177, %p178
      %p180 = scmp.le.s32.totalorder 1, %s20
      %p181 = scmp.lt.s32.totalorder %s20, 3
      %p182 = pnand %p180, %p181
      %p183 = pneg %p182
      // Predicated region
      $region9: #{tpu_custom_call.1} parent=5 // pred_check
        _
      $region10: #{tpu_custom_call.1} parent=5 // pred_check_branch
        %185 = sbr.rel (%p182) target = $region12
      $region11: #{tpu_custom_call.1} parent=5 // pred_region
        %s186 = ssub.s32 %s20, 1
        // Predicated region
        $region13: #{tpu_custom_call.1} parent=11 // pred_check
          %p187 = pneg %p41
        $region14: #{tpu_custom_call.1} parent=11 // pred_check_branch
          %189 = sbr.rel (%p187) target = $region16
        $region15: #{tpu_custom_call.1} parent=11 // pred_region
          %191 = vsyncadd [#allocation5], 0
          %s192 = sshll.u32 %s0, 4
          %s193 = int_to_ptr.hbm [resolvable:$true] %s192
          %s194 = sshll.u32 [#allocation4], 4
          %s195 = int_to_ptr.vmem [resolvable:$true] %s194
          %200 = dma.hbm_to_vmem [thread:$0]  %s193, 1024, %s195, [#allocation5], 64, 64, 4
        $region16: #{tpu_custom_call.1} parent=11 // pred_fallthru
          _
        // Predicated region
        $region17: #{tpu_custom_call.1} parent=11 // pred_check
          %p201 = pneg %p62
        $region18: #{tpu_custom_call.1} parent=11 // pred_check_branch
          %203 = sbr.rel (%p201) target = $region20
        $region19: #{tpu_custom_call.1} parent=11 // pred_region
          %205 = vsyncadd [#allocation8], 0
          %s206 = sshll.u32 %s1, 4
          %s207 = int_to_ptr.hbm [resolvable:$true] %s206
          %s208 = sshll.u32 [#allocation7], 4
          %s209 = int_to_ptr.vmem [resolvable:$true] %s208
          %214 = dma.hbm_to_vmem [thread:$0]  %s207, 1024, %s209, [#allocation8], 64, 64, 4
        $region20: #{tpu_custom_call.1} parent=11 // pred_fallthru
          _
        // Predicated region
        $region21: #{tpu_custom_call.1} parent=11 // pred_check
          %p215 = pneg %p83
        $region22: #{tpu_custom_call.1} parent=11 // pred_check_branch
          %217 = sbr.rel (%p215) target = $region24
        $region23: #{tpu_custom_call.1} parent=11 // pred_region
          %219 = vsyncadd [#allocation8], 0
          %s220 = sshll.u32 %s2, 4
          %s221 = int_to_ptr.hbm [resolvable:$true] %s220
          %s222 = sshll.u32 [#allocation9], 4
          %s223 = int_to_ptr.vmem [resolvable:$true] %s222
          %228 = dma.hbm_to_vmem [thread:$0]  %s221, 1024, %s223, [#allocation8], 64, 64, 4
        $region24: #{tpu_custom_call.1} parent=11 // pred_fallthru
          _
        // Predicated region
        $region25: #{tpu_custom_call.1} parent=11 // pred_check
          %p229 = pneg %p104
        $region26: #{tpu_custom_call.1} parent=11 // pred_check_branch
          %231 = sbr.rel (%p229) target = $region28
        $region27: #{tpu_custom_call.1} parent=11 // pred_region
          %233 = vsyncadd [#allocation11], 0
          %s234 = sshll.u32 %s3, 4
          %s235 = int_to_ptr.hbm [resolvable:$true] %s234
          %s236 = sshll.u32 [#allocation10], 4
          %s237 = int_to_ptr.vmem [resolvable:$true] %s236
          %242 = dma.hbm_to_vmem [thread:$0]  %s235, 1024, %s237, [#allocation11], 64, 64, 4
        $region28: #{tpu_custom_call.1} parent=11 // pred_fallthru
          _
        // Predicated region
        $region29: #{tpu_custom_call.1} parent=11 // pred_check
          %p243 = pneg %p125
        $region30: #{tpu_custom_call.1} parent=11 // pred_check_branch
          %245 = sbr.rel (%p243) target = $region32
        $region31: #{tpu_custom_call.1} parent=11 // pred_region
          %247 = vsyncadd [#allocation11], 0
          %s248 = sshll.u32 %s4, 4
          %s249 = int_to_ptr.hbm [resolvable:$true] %s248
          %s250 = sshll.u32 [#allocation12], 4
          %s251 = int_to_ptr.vmem [resolvable:$true] %s250
          %256 = dma.hbm_to_vmem [thread:$0]  %s249, 1024, %s251, [#allocation11], 64, 64, 4
        $region32: #{tpu_custom_call.1} parent=11 // pred_fallthru
          _
      $region12: #{tpu_custom_call.1} parent=5 // pred_fallthru
        _
      %p257 = scmp.lt.s32.totalorder %s20, 2
      // Predicated region
      $region33: #{tpu_custom_call.1} parent=5 // pred_check
        %p258 = pneg %p257
      $region34: #{tpu_custom_call.1} parent=5 // pred_check_branch
        %260 = sbr.rel (%p258) target = $region36
      $region35: #{tpu_custom_call.1} parent=5 // pred_region
        _
      $region36: #{tpu_custom_call.1} parent=5 // pred_fallthru
        _
      %p261 = scmp.le.s32.totalorder 1, %s20
      %p262 = scmp.lt.s32.totalorder %s20, 3
      %p263 = pnand %p261, %p262
      %p264 = pneg %p263
      // Predicated region
      $region37: #{tpu_custom_call.1} parent=5 // pred_check
        _
      $region38: #{tpu_custom_call.1} parent=5 // pred_check_branch
        %266 = sbr.rel (%p263) target = $region40
      $region39: #{tpu_custom_call.1} parent=5 // pred_region
        %s267 = ssub.s32 %s20, 1
        // Predicated region
        $region41: #{tpu_custom_call.1} parent=39 // pred_check
          %p268 = pneg %p41
        $region42: #{tpu_custom_call.1} parent=39 // pred_check_branch
          %270 = sbr.rel (%p268) target = $region44
        $region43: #{tpu_custom_call.1} parent=39 // pred_region
          %272 = dma.done [#allocation5], 1024
        $region44: #{tpu_custom_call.1} parent=39 // pred_fallthru
          _
        // Predicated region
        $region45: #{tpu_custom_call.1} parent=39 // pred_check
          %p273 = pneg %p62
        $region46: #{tpu_custom_call.1} parent=39 // pred_check_branch
          %275 = sbr.rel (%p273) target = $region48
        $region47: #{tpu_custom_call.1} parent=39 // pred_region
          %277 = dma.done [#allocation8], 1024
        $region48: #{tpu_custom_call.1} parent=39 // pred_fallthru
          _
        // Predicated region
        $region49: #{tpu_custom_call.1} parent=39 // pred_check
          %p278 = pneg %p83
        $region50: #{tpu_custom_call.1} parent=39 // pred_check_branch
          %280 = sbr.rel (%p278) target = $region52
        $region51: #{tpu_custom_call.1} parent=39 // pred_region
          %282 = dma.done [#allocation8], 1024
        $region52: #{tpu_custom_call.1} parent=39 // pred_fallthru
          _
        // Predicated region
        $region53: #{tpu_custom_call.1} parent=39 // pred_check
          %p283 = pneg %p104
        $region54: #{tpu_custom_call.1} parent=39 // pred_check_branch
          %285 = sbr.rel (%p283) target = $region56
        $region55: #{tpu_custom_call.1} parent=39 // pred_region
          %287 = dma.done [#allocation11], 1024
        $region56: #{tpu_custom_call.1} parent=39 // pred_fallthru
          _
        // Predicated region
        $region57: #{tpu_custom_call.1} parent=39 // pred_check
          %p288 = pneg %p125
        $region58: #{tpu_custom_call.1} parent=39 // pred_check_branch
          %290 = sbr.rel (%p288) target = $region60
        $region59: #{tpu_custom_call.1} parent=39 // pred_region
          %292 = dma.done [#allocation11], 1024
        $region60: #{tpu_custom_call.1} parent=39 // pred_fallthru
          _
        %p293 = pneg %p41
        %p294 = pneg %p38
        %p295 = pneg %p62
        %p296 = pneg %p59
        %p297 = pneg %p83
        %p298 = pneg %p80
        %p299 = pneg %p104
        %p300 = pneg %p101
        %p301 = pneg %p125
        %p302 = pneg %p122
        %p303 = pneg %p146
        %p304 = pneg %p143
        %p305 = pneg %p172
        %p306 = pneg %p169
        %s307 = sand.u32 %s159, 1
        %s308 = scalar_lea.sflag [#allocation15], %s307
        %s309 = sand.u32 %s159, 1
        %s310 = smul.addr %s309, 64
        %s311 = scalar_lea.vmem [#allocation14], %s310
        %s312 = smul.u32 8, %s25
        %p314 = scmp.eq.s32.totalorder %s25, 0
        // Predicated region
        $region61: #{tpu_custom_call.1} parent=39 // pred_check
          %p315 = pneg %p314
        $region62: #{tpu_custom_call.1} parent=39 // pred_check_branch
          %317 = sbr.rel (%p315) target = $region64
        $region63: #{tpu_custom_call.1} parent=39 // pred_region
          %v318 = vld [vmem:[#allocation4] sm:$0xf]
          %v319 = vld [vmem:[#allocation4 + $0x4] sm:$0xf]
          %v320 = vld [vmem:[#allocation4 + $0x8] sm:$0xf]
          %v321 = vld [vmem:[#allocation4 + $0xc] sm:$0xf]
          %v322 = vld [vmem:[#allocation4 + $0x10] sm:$0xf]
          %v323 = vld [vmem:[#allocation4 + $0x14] sm:$0xf]
          %v324 = vld [vmem:[#allocation4 + $0x18] sm:$0xf]
          %v325 = vld [vmem:[#allocation4 + $0x1c] sm:$0xf]
          %v326 = vld [vmem:[#allocation4 + $0x20] sm:$0xf]
          %v327 = vld [vmem:[#allocation4 + $0x24] sm:$0xf]
          %v328 = vld [vmem:[#allocation4 + $0x28] sm:$0xf]
          %v329 = vld [vmem:[#allocation4 + $0x2c] sm:$0xf]
          %v330 = vld [vmem:[#allocation4 + $0x30] sm:$0xf]
          %v331 = vld [vmem:[#allocation4 + $0x34] sm:$0xf]
          %v332 = vld [vmem:[#allocation4 + $0x38] sm:$0xf]
          %v333 = vld [vmem:[#allocation4 + $0x3c] sm:$0xf]
          %v334 = vld [vmem:[#allocation7] sm:$0xf]
          %v335 = vld [vmem:[#allocation7 + $0x4] sm:$0xf]
          %v336 = vld [vmem:[#allocation7 + $0x8] sm:$0xf]
          %v337 = vld [vmem:[#allocation7 + $0xc] sm:$0xf]
          %v338 = vld [vmem:[#allocation7 + $0x10] sm:$0xf]
          %v339 = vld [vmem:[#allocation7 + $0x14] sm:$0xf]
          %v340 = vld [vmem:[#allocation7 + $0x18] sm:$0xf]
          %v341 = vld [vmem:[#allocation7 + $0x1c] sm:$0xf]
          %v342 = vld [vmem:[#allocation7 + $0x20] sm:$0xf]
          %v343 = vld [vmem:[#allocation7 + $0x24] sm:$0xf]
          %v344 = vld [vmem:[#allocation7 + $0x28] sm:$0xf]
          %v345 = vld [vmem:[#allocation7 + $0x2c] sm:$0xf]
          %v346 = vld [vmem:[#allocation7 + $0x30] sm:$0xf]
          %v347 = vld [vmem:[#allocation7 + $0x34] sm:$0xf]
          %v348 = vld [vmem:[#allocation7 + $0x38] sm:$0xf]
          %v349 = vld [vmem:[#allocation7 + $0x3c] sm:$0xf]
          %v366 = vunpack.c.l.b16 %v318
          %v367 = vunpack.c.l.b16 %v319
          %v368 = vunpack.c.l.b16 %v320
          %v369 = vunpack.c.l.b16 %v321
          %v370 = vunpack.c.l.b16 %v322
          %v371 = vunpack.c.l.b16 %v323
          %v372 = vunpack.c.l.b16 %v324
          %v373 = vunpack.c.l.b16 %v325
          %v374 = vunpack.c.l.b16 %v326
          %v375 = vunpack.c.l.b16 %v327
          %v376 = vunpack.c.l.b16 %v328
          %v377 = vunpack.c.l.b16 %v329
          %v378 = vunpack.c.l.b16 %v330
          %v379 = vunpack.c.l.b16 %v331
          %v380 = vunpack.c.l.b16 %v332
          %v381 = vunpack.c.l.b16 %v333
          %v382 = vpack.c.b16 %v367, %v366
          %v383 = vpack.c.b16 %v369, %v368
          %v384 = vpack.c.b16 %v371, %v370
          %v385 = vpack.c.b16 %v373, %v372
          %v386 = vpack.c.b16 %v375, %v374
          %v387 = vpack.c.b16 %v377, %v376
          %v388 = vpack.c.b16 %v379, %v378
          %v389 = vpack.c.b16 %v381, %v380
          %v414 = vunpack.c.l.b16 %v334
          %v415 = vunpack.c.l.b16 %v335
          %v416 = vunpack.c.l.b16 %v336
          %v417 = vunpack.c.l.b16 %v337
          %v418 = vunpack.c.l.b16 %v338
          %v419 = vunpack.c.l.b16 %v339
          %v420 = vunpack.c.l.b16 %v340
          %v421 = vunpack.c.l.b16 %v341
          %v422 = vunpack.c.l.b16 %v342
          %v423 = vunpack.c.l.b16 %v343
          %v424 = vunpack.c.l.b16 %v344
          %v425 = vunpack.c.l.b16 %v345
          %v426 = vunpack.c.l.b16 %v346
          %v427 = vunpack.c.l.b16 %v347
          %v428 = vunpack.c.l.b16 %v348
          %v429 = vunpack.c.l.b16 %v349
          %v430 = vpack.c.b16 %v415, %v414
          %v431 = vpack.c.b16 %v417, %v416
          %v432 = vpack.c.b16 %v419, %v418
          %v433 = vpack.c.b16 %v421, %v420
          %v434 = vpack.c.b16 %v423, %v422
          %v435 = vpack.c.b16 %v425, %v424
          %v436 = vpack.c.b16 %v427, %v426
          %v437 = vpack.c.b16 %v429, %v428
          %446 = vmatpush.bf16.msra.mxu0 %v437
          %447 = vmatpush.bf16.msra.mxu0 %v436
          %448 = vmatpush.bf16.msra.mxu0 %v435
          %449 = vmatpush.bf16.msra.mxu0 %v434
          %450 = vmatpush.bf16.msra.mxu0 %v433
          %451 = vmatpush.bf16.msra.mxu0 %v432
          %452 = vmatpush.bf16.msra.mxu0 %v431
          %453 = vmatpush.bf16.msra.mxu0 %v430
          %454 = vmatmul.bf16.gmra.mxu0 %v382
          %v455 = vpop.f32.mrf.mxu0
          %v456 = vadd.f32 0.0, %v455
          %v457 = vpop.f32.mrf.mxu0
          %v458 = vadd.f32 0.0, %v457
          %459 = vmatmul.bf16.gmra.mxu0 %v383
          %v460 = vpop.f32.mrf.mxu0
          %v461 = vadd.f32 0.0, %v460
          %v462 = vpop.f32.mrf.mxu0
          %v463 = vadd.f32 0.0, %v462
          %464 = vmatmul.bf16.gmra.mxu0 %v384
          %v465 = vpop.f32.mrf.mxu0
          %v466 = vadd.f32 0.0, %v465
          %v467 = vpop.f32.mrf.mxu0
          %v468 = vadd.f32 0.0, %v467
          %469 = vmatmul.bf16.gmra.mxu0 %v385
          %v470 = vpop.f32.mrf.mxu0
          %v471 = vadd.f32 0.0, %v470
          %v472 = vpop.f32.mrf.mxu0
          %v473 = vadd.f32 0.0, %v472
          %474 = vmatmul.bf16.gmra.mxu0 %v386
          %v475 = vpop.f32.mrf.mxu0
          %v476 = vadd.f32 0.0, %v475
          %v477 = vpop.f32.mrf.mxu0
          %v478 = vadd.f32 0.0, %v477
          %479 = vmatmul.bf16.gmra.mxu0 %v387
          %v480 = vpop.f32.mrf.mxu0
          %v481 = vadd.f32 0.0, %v480
          %v482 = vpop.f32.mrf.mxu0
          %v483 = vadd.f32 0.0, %v482
          %484 = vmatmul.bf16.gmra.mxu0 %v388
          %v485 = vpop.f32.mrf.mxu0
          %v486 = vadd.f32 0.0, %v485
          %v487 = vpop.f32.mrf.mxu0
          %v488 = vadd.f32 0.0, %v487
          %489 = vmatmul.bf16.gmra.mxu0 %v389
          %v490 = vpop.f32.mrf.mxu0
          %v491 = vadd.f32 0.0, %v490
          %v492 = vpop.f32.mrf.mxu0
          %v493 = vadd.f32 0.0, %v492
          %494 = vdwg.mxu0
          %v495 = vpack.c.bf16 %v456, %v456
          %v496 = vpack.c.bf16 %v458, %v458
          %v497 = vpack.c.bf16 %v461, %v461
          %v498 = vpack.c.bf16 %v463, %v463
          %v499 = vpack.c.bf16 %v466, %v466
          %v500 = vpack.c.bf16 %v468, %v468
          %v501 = vpack.c.bf16 %v471, %v471
          %v502 = vpack.c.bf16 %v473, %v473
          %v503 = vpack.c.bf16 %v476, %v476
          %v504 = vpack.c.bf16 %v478, %v478
          %v505 = vpack.c.bf16 %v481, %v481
          %v506 = vpack.c.bf16 %v483, %v483
          %v507 = vpack.c.bf16 %v486, %v486
          %v508 = vpack.c.bf16 %v488, %v488
          %v509 = vpack.c.bf16 %v491, %v491
          %v510 = vpack.c.bf16 %v493, %v493
          %511 = vst [vmem:[#allocation2] sm:$0xf] %v495
          %512 = vst [vmem:[#allocation2 + $0x4] sm:$0xf] %v496
          %513 = vst [vmem:[#allocation2 + $0x8] sm:$0xf] %v497
          %514 = vst [vmem:[#allocation2 + $0xc] sm:$0xf] %v498
          %515 = vst [vmem:[#allocation2 + $0x10] sm:$0xf] %v499
          %516 = vst [vmem:[#allocation2 + $0x14] sm:$0xf] %v500
          %517 = vst [vmem:[#allocation2 + $0x18] sm:$0xf] %v501
          %518 = vst [vmem:[#allocation2 + $0x1c] sm:$0xf] %v502
          %519 = vst [vmem:[#allocation2 + $0x20] sm:$0xf] %v503
          %520 = vst [vmem:[#allocation2 + $0x24] sm:$0xf] %v504
          %521 = vst [vmem:[#allocation2 + $0x28] sm:$0xf] %v505
          %522 = vst [vmem:[#allocation2 + $0x2c] sm:$0xf] %v506
          %523 = vst [vmem:[#allocation2 + $0x30] sm:$0xf] %v507
          %524 = vst [vmem:[#allocation2 + $0x34] sm:$0xf] %v508
          %525 = vst [vmem:[#allocation2 + $0x38] sm:$0xf] %v509
          %526 = vst [vmem:[#allocation2 + $0x3c] sm:$0xf] %v510
          %527 = vst [vmem:[#allocation3] sm:$0xff] 0.0
          %528 = vst [vmem:[#allocation3 + $0x8] sm:$0xff] 0.0
          %529 = vst [vmem:[#allocation3 + $0x10] sm:$0xff] 0.0
          %530 = vst [vmem:[#allocation3 + $0x18] sm:$0xff] 0.0
          %531 = vst [vmem:[#allocation3 + $0x20] sm:$0xff] 0.0
          %532 = vst [vmem:[#allocation3 + $0x28] sm:$0xff] 0.0
          %533 = vst [vmem:[#allocation3 + $0x30] sm:$0xff] 0.0
          %534 = vst [vmem:[#allocation3 + $0x38] sm:$0xff] 0.0
          %535 = vst [vmem:[#allocation3 + $0x40] sm:$0xff] 0.0
          %536 = vst [vmem:[#allocation3 + $0x48] sm:$0xff] 0.0
          %537 = vst [vmem:[#allocation3 + $0x50] sm:$0xff] 0.0
          %538 = vst [vmem:[#allocation3 + $0x58] sm:$0xff] 0.0
          %539 = vst [vmem:[#allocation3 + $0x60] sm:$0xff] 0.0
          %540 = vst [vmem:[#allocation3 + $0x68] sm:$0xff] 0.0
          %541 = vst [vmem:[#allocation3 + $0x70] sm:$0xff] 0.0
          %542 = vst [vmem:[#allocation3 + $0x78] sm:$0xff] 0.0
        $region64: #{tpu_custom_call.1} parent=39 // pred_fallthru
          _
        %s543 = smul.u32 %s25, 64
        %s544 = sshra.s32 %s543, 3
        %s545 = sand.u32 %s543, 7
        %s546 = smul.addr %s544, 4
        %s547 = scalar_lea.vmem [#allocation4], %s546
        %v548 = vld [vmem:[%s547] sm:$0xf]
        %v549 = vld [vmem:[%s547 + $0x4] sm:$0xf]
        %v550 = vld [vmem:[%s547 + $0x8] sm:$0xf]
        %v551 = vld [vmem:[%s547 + $0xc] sm:$0xf]
        %v552 = vld [vmem:[%s547 + $0x10] sm:$0xf]
        %v553 = vld [vmem:[%s547 + $0x14] sm:$0xf]
        %v554 = vld [vmem:[%s547 + $0x18] sm:$0xf]
        %v555 = vld [vmem:[%s547 + $0x1c] sm:$0xf]
        %v556 = vld [vmem:[#allocation9] sm:$0xf]
        %v557 = vld [vmem:[#allocation9 + $0x4] sm:$0xf]
        %v558 = vld [vmem:[#allocation9 + $0x8] sm:$0xf]
        %v559 = vld [vmem:[#allocation9 + $0xc] sm:$0xf]
        %v560 = vld [vmem:[#allocation9 + $0x10] sm:$0xf]
        %v561 = vld [vmem:[#allocation9 + $0x14] sm:$0xf]
        %v562 = vld [vmem:[#allocation9 + $0x18] sm:$0xf]
        %v563 = vld [vmem:[#allocation9 + $0x1c] sm:$0xf]
        %v564 = vld [vmem:[#allocation9 + $0x20] sm:$0xf]
        %v565 = vld [vmem:[#allocation9 + $0x24] sm:$0xf]
        %v566 = vld [vmem:[#allocation9 + $0x28] sm:$0xf]
        %v567 = vld [vmem:[#allocation9 + $0x2c] sm:$0xf]
        %v568 = vld [vmem:[#allocation9 + $0x30] sm:$0xf]
        %v569 = vld [vmem:[#allocation9 + $0x34] sm:$0xf]
        %v570 = vld [vmem:[#allocation9 + $0x38] sm:$0xf]
        %v571 = vld [vmem:[#allocation9 + $0x3c] sm:$0xf]
        %v580 = vunpack.c.l.b16 %v548
        %v581 = vunpack.c.l.b16 %v549
        %v582 = vunpack.c.l.b16 %v550
        %v583 = vunpack.c.l.b16 %v551
        %v584 = vunpack.c.l.b16 %v552
        %v585 = vunpack.c.l.b16 %v553
        %v586 = vunpack.c.l.b16 %v554
        %v587 = vunpack.c.l.b16 %v555
        %v588 = vpack.c.b16 %v581, %v580
        %v589 = vpack.c.b16 %v583, %v582
        %v590 = vpack.c.b16 %v585, %v584
        %v591 = vpack.c.b16 %v587, %v586
        %v612 = vunpack.c.l.b16 %v556
        %v613 = vunpack.c.l.b16 %v557
        %v614 = vunpack.c.l.b16 %v558
        %v615 = vunpack.c.l.b16 %v559
        %v616 = vunpack.c.l.b16 %v560
        %v617 = vunpack.c.l.b16 %v561
        %v618 = vunpack.c.l.b16 %v562
        %v619 = vunpack.c.l.b16 %v563
        %v620 = vunpack.c.l.b16 %v564
        %v621 = vunpack.c.l.b16 %v565
        %v622 = vunpack.c.l.b16 %v566
        %v623 = vunpack.c.l.b16 %v567
        %v624 = vunpack.c.l.b16 %v568
        %v625 = vunpack.c.l.b16 %v569
        %v626 = vunpack.c.l.b16 %v570
        %v627 = vunpack.c.l.b16 %v571
        %v628 = vpack.c.b16 %v613, %v612
        %v629 = vpack.c.b16 %v615, %v614
        %v630 = vpack.c.b16 %v617, %v616
        %v631 = vpack.c.b16 %v619, %v618
        %v632 = vpack.c.b16 %v621, %v620
        %v633 = vpack.c.b16 %v623, %v622
        %v634 = vpack.c.b16 %v625, %v624
        %v635 = vpack.c.b16 %v627, %v626
        %644 = vmatpush.bf16.msra.mxu0 %v635
        %645 = vmatpush.bf16.msra.mxu0 %v634
        %646 = vmatpush.bf16.msra.mxu0 %v633
        %647 = vmatpush.bf16.msra.mxu0 %v632
        %648 = vmatpush.bf16.msra.mxu0 %v631
        %649 = vmatpush.bf16.msra.mxu0 %v630
        %650 = vmatpush.bf16.msra.mxu0 %v629
        %651 = vmatpush.bf16.msra.mxu0 %v628
        %652 = vmatmul.bf16.gmra.mxu0 %v588
        %v653 = vpop.f32.mrf.mxu0
        %v654 = vadd.f32 0.0, %v653
        %v655 = vpop.f32.mrf.mxu0
        %v656 = vadd.f32 0.0, %v655
        %657 = vmatmul.bf16.gmra.mxu0 %v589
        %v658 = vpop.f32.mrf.mxu0
        %v659 = vadd.f32 0.0, %v658
        %v660 = vpop.f32.mrf.mxu0
        %v661 = vadd.f32 0.0, %v660
        %662 = vmatmul.bf16.gmra.mxu0 %v590
        %v663 = vpop.f32.mrf.mxu0
        %v664 = vadd.f32 0.0, %v663
        %v665 = vpop.f32.mrf.mxu0
        %v666 = vadd.f32 0.0, %v665
        %667 = vmatmul.bf16.gmra.mxu0 %v591
        %v668 = vpop.f32.mrf.mxu0
        %v669 = vadd.f32 0.0, %v668
        %v670 = vpop.f32.mrf.mxu0
        %v671 = vadd.f32 0.0, %v670
        %672 = vdwg.mxu0
        %v673 = vld [vmem:[#allocation10] sm:$0xf]
        %v674 = vld [vmem:[#allocation10 + $0x4] sm:$0xf]
        %v675 = vld [vmem:[#allocation10 + $0x8] sm:$0xf]
        %v676 = vld [vmem:[#allocation10 + $0xc] sm:$0xf]
        %v677 = vld [vmem:[#allocation10 + $0x10] sm:$0xf]
        %v678 = vld [vmem:[#allocation10 + $0x14] sm:$0xf]
        %v679 = vld [vmem:[#allocation10 + $0x18] sm:$0xf]
        %v680 = vld [vmem:[#allocation10 + $0x1c] sm:$0xf]
        %v681 = vld [vmem:[#allocation10 + $0x20] sm:$0xf]
        %v682 = vld [vmem:[#allocation10 + $0x24] sm:$0xf]
        %v683 = vld [vmem:[#allocation10 + $0x28] sm:$0xf]
        %v684 = vld [vmem:[#allocation10 + $0x2c] sm:$0xf]
        %v685 = vld [vmem:[#allocation10 + $0x30] sm:$0xf]
        %v686 = vld [vmem:[#allocation10 + $0x34] sm:$0xf]
        %v687 = vld [vmem:[#allocation10 + $0x38] sm:$0xf]
        %v688 = vld [vmem:[#allocation10 + $0x3c] sm:$0xf]
        %v705 = vunpack.c.l.b16 %v673
        %v706 = vunpack.c.l.b16 %v674
        %v707 = vunpack.c.l.b16 %v675
        %v708 = vunpack.c.l.b16 %v676
        %v709 = vunpack.c.l.b16 %v677
        %v710 = vunpack.c.l.b16 %v678
        %v711 = vunpack.c.l.b16 %v679
        %v712 = vunpack.c.l.b16 %v680
        %v713 = vunpack.c.l.b16 %v681
        %v714 = vunpack.c.l.b16 %v682
        %v715 = vunpack.c.l.b16 %v683
        %v716 = vunpack.c.l.b16 %v684
        %v717 = vunpack.c.l.b16 %v685
        %v718 = vunpack.c.l.b16 %v686
        %v719 = vunpack.c.l.b16 %v687
        %v720 = vunpack.c.l.b16 %v688
        %v721 = vpack.c.b16 %v706, %v705
        %v722 = vpack.c.b16 %v708, %v707
        %v723 = vpack.c.b16 %v710, %v709
        %v724 = vpack.c.b16 %v712, %v711
        %v725 = vpack.c.b16 %v714, %v713
        %v726 = vpack.c.b16 %v716, %v715
        %v727 = vpack.c.b16 %v718, %v717
        %v728 = vpack.c.b16 %v720, %v719
        %737 = vmatpush.bf16.xpose.msra.mxu0 0
        %738 = vmatpush.bf16.xpose.msra.mxu0 0
        %739 = vmatpush.bf16.xpose.msra.mxu0 0
        %740 = vmatpush.bf16.xpose.msra.mxu0 0
        %741 = vmatpush.bf16.xpose.msra.mxu0 %v591
        %742 = vmatpush.bf16.xpose.msra.mxu0 %v590
        %743 = vmatpush.bf16.xpose.msra.mxu0 %v589
        %744 = vmatpush.bf16.xpose.msra.mxu0 %v588
        %745 = vmatmul.bf16.gmra.mxu0 %v721
        %v746 = vpop.f32.mrf.mxu0
        %v747 = vadd.f32 0.0, %v746
        %v748 = vpop.f32.mrf.mxu0
        %v749 = vadd.f32 0.0, %v748
        %750 = vmatmul.bf16.gmra.mxu0 %v722
        %v751 = vpop.f32.mrf.mxu0
        %v752 = vadd.f32 0.0, %v751
        %v753 = vpop.f32.mrf.mxu0
        %v754 = vadd.f32 0.0, %v753
        %755 = vmatmul.bf16.gmra.mxu0 %v723
        %v756 = vpop.f32.mrf.mxu0
        %v757 = vadd.f32 0.0, %v756
        %v758 = vpop.f32.mrf.mxu0
        %v759 = vadd.f32 0.0, %v758
        %760 = vmatmul.bf16.gmra.mxu0 %v724
        %v761 = vpop.f32.mrf.mxu0
        %v762 = vadd.f32 0.0, %v761
        %v763 = vpop.f32.mrf.mxu0
        %v764 = vadd.f32 0.0, %v763
        %765 = vmatmul.bf16.gmra.mxu0 %v725
        %v766 = vpop.f32.mrf.mxu0
        %v767 = vadd.f32 0.0, %v766
        %v768 = vpop.f32.mrf.mxu0
        %v769 = vadd.f32 0.0, %v768
        %770 = vmatmul.bf16.gmra.mxu0 %v726
        %v771 = vpop.f32.mrf.mxu0
        %v772 = vadd.f32 0.0, %v771
        %v773 = vpop.f32.mrf.mxu0
        %v774 = vadd.f32 0.0, %v773
        %775 = vmatmul.bf16.gmra.mxu0 %v727
        %v776 = vpop.f32.mrf.mxu0
        %v777 = vadd.f32 0.0, %v776
        %v778 = vpop.f32.mrf.mxu0
        %v779 = vadd.f32 0.0, %v778
        %780 = vmatmul.bf16.gmra.mxu0 %v728
        %v781 = vpop.f32.mrf.mxu0
        %v782 = vadd.f32 0.0, %v781
        %v783 = vpop.f32.mrf.mxu0
        %v784 = vadd.f32 0.0, %v783
        %785 = vdwg.mxu0
        %v786 = vpack.c.bf16 %v656, %v654
        %v787 = vpack.c.bf16 %v661, %v659
        %v788 = vpack.c.bf16 %v666, %v664
        %v789 = vpack.c.bf16 %v671, %v669
        %v790 = vld [vmem:[#allocation2] sm:$0xf]
        %v791 = vld [vmem:[#allocation2 + $0x4] sm:$0xf]
        %v792 = vld [vmem:[#allocation2 + $0x8] sm:$0xf]
        %v793 = vld [vmem:[#allocation2 + $0xc] sm:$0xf]
        %v794 = vld [vmem:[#allocation2 + $0x10] sm:$0xf]
        %v795 = vld [vmem:[#allocation2 + $0x14] sm:$0xf]
        %v796 = vld [vmem:[#allocation2 + $0x18] sm:$0xf]
        %v797 = vld [vmem:[#allocation2 + $0x1c] sm:$0xf]
        %v798 = vld [vmem:[#allocation2 + $0x20] sm:$0xf]
        %v799 = vld [vmem:[#allocation2 + $0x24] sm:$0xf]
        %v800 = vld [vmem:[#allocation2 + $0x28] sm:$0xf]
        %v801 = vld [vmem:[#allocation2 + $0x2c] sm:$0xf]
        %v802 = vld [vmem:[#allocation2 + $0x30] sm:$0xf]
        %v803 = vld [vmem:[#allocation2 + $0x34] sm:$0xf]
        %v804 = vld [vmem:[#allocation2 + $0x38] sm:$0xf]
        %v805 = vld [vmem:[#allocation2 + $0x3c] sm:$0xf]
        %v822 = vunpack.c.l.b16 %v790
        %v823 = vunpack.c.l.b16 %v791
        %v824 = vunpack.c.l.b16 %v792
        %v825 = vunpack.c.l.b16 %v793
        %v826 = vunpack.c.l.b16 %v794
        %v827 = vunpack.c.l.b16 %v795
        %v828 = vunpack.c.l.b16 %v796
        %v829 = vunpack.c.l.b16 %v797
        %v830 = vunpack.c.l.b16 %v798
        %v831 = vunpack.c.l.b16 %v799
        %v832 = vunpack.c.l.b16 %v800
        %v833 = vunpack.c.l.b16 %v801
        %v834 = vunpack.c.l.b16 %v802
        %v835 = vunpack.c.l.b16 %v803
        %v836 = vunpack.c.l.b16 %v804
        %v837 = vunpack.c.l.b16 %v805
        %v838 = vpack.c.b16 %v823, %v822
        %v839 = vpack.c.b16 %v825, %v824
        %v840 = vpack.c.b16 %v827, %v826
        %v841 = vpack.c.b16 %v829, %v828
        %v842 = vpack.c.b16 %v831, %v830
        %v843 = vpack.c.b16 %v833, %v832
        %v844 = vpack.c.b16 %v835, %v834
        %v845 = vpack.c.b16 %v837, %v836
        %854 = vmatpush.bf16.xpose.msra.mxu0 %v845
        %855 = vmatpush.bf16.xpose.msra.mxu0 %v844
        %856 = vmatpush.bf16.xpose.msra.mxu0 %v843
        %857 = vmatpush.bf16.xpose.msra.mxu0 %v842
        %858 = vmatpush.bf16.xpose.msra.mxu0 %v841
        %859 = vmatpush.bf16.xpose.msra.mxu0 %v840
        %860 = vmatpush.bf16.xpose.msra.mxu0 %v839
        %861 = vmatpush.bf16.xpose.msra.mxu0 %v838
        %862 = vmatmul.bf16.gmra.mxu0 %v786
        %v863 = vpop.f32.mrf.mxu0
        %v864 = vadd.f32 0.0, %v863
        %v865 = vpop.f32.mrf.mxu0
        %v866 = vadd.f32 0.0, %v865
        %867 = vmatmul.bf16.gmra.mxu0 %v787
        %v868 = vpop.f32.mrf.mxu0
        %v869 = vadd.f32 0.0, %v868
        %v870 = vpop.f32.mrf.mxu0
        %v871 = vadd.f32 0.0, %v870
        %872 = vmatmul.bf16.gmra.mxu0 %v788
        %v873 = vpop.f32.mrf.mxu0
        %v874 = vadd.f32 0.0, %v873
        %v875 = vpop.f32.mrf.mxu0
        %v876 = vadd.f32 0.0, %v875
        %877 = vmatmul.bf16.gmra.mxu0 %v789
        %v878 = vpop.f32.mrf.mxu0
        %v879 = vadd.f32 0.0, %v878
        %v880 = vpop.f32.mrf.mxu0
        %v881 = vadd.f32 0.0, %v880
        %882 = vdwg.mxu0
        %v883 = vlaneseq
        %v884 = vshrl.u32 %v883, 7
        %v885 = vadd.s32 %v884, 8
        %v886 = vadd.s32 %v884, 16
        %v887 = vadd.s32 %v884, 24
        %v888 = vadd.s32 %v884, 32
        %v889 = vadd.s32 %v884, 40
        %v890 = vadd.s32 %v884, 48
        %v891 = vadd.s32 %v884, 56
        %v892 = vstv %s543
        %v893 = vadd.s32 %v884, %v892
        %v894 = vadd.s32 %v885, %v892
        %v895 = vadd.s32 %v886, %v892
        %v896 = vadd.s32 %v887, %v892
        %v897 = vadd.s32 %v888, %v892
        %v898 = vadd.s32 %v889, %v892
        %v899 = vadd.s32 %v890, %v892
        %v900 = vadd.s32 %v891, %v892
        %v901 = vlaneseq
        %v902 = vand.u32 %v901, 127
        %v903 = vsub.s32 %v893, %v902
        %v904 = vsub.s32 %v894, %v902
        %v905 = vsub.s32 %v895, %v902
        %v906 = vsub.s32 %v896, %v902
        %v907 = vsub.s32 %v897, %v902
        %v908 = vsub.s32 %v898, %v902
        %v909 = vsub.s32 %v899, %v902
        %v910 = vsub.s32 %v900, %v902
        %vm911 = vcmp.lt.s32.totalorder %v903, 0
        %v912 = vsub.s32 0, %v903
        %v913 = vsel %vm911, %v912, %v903
        %vm914 = vcmp.lt.s32.totalorder %v904, 0
        %v915 = vsub.s32 0, %v904
        %v916 = vsel %vm914, %v915, %v904
        %vm917 = vcmp.lt.s32.totalorder %v905, 0
        %v918 = vsub.s32 0, %v905
        %v919 = vsel %vm917, %v918, %v905
        %vm920 = vcmp.lt.s32.totalorder %v906, 0
        %v921 = vsub.s32 0, %v906
        %v922 = vsel %vm920, %v921, %v906
        %vm923 = vcmp.lt.s32.totalorder %v907, 0
        %v924 = vsub.s32 0, %v907
        %v925 = vsel %vm923, %v924, %v907
        %vm926 = vcmp.lt.s32.totalorder %v908, 0
        %v927 = vsub.s32 0, %v908
        %v928 = vsel %vm926, %v927, %v908
        %vm929 = vcmp.lt.s32.totalorder %v909, 0
        %v930 = vsub.s32 0, %v909
        %v931 = vsel %vm929, %v930, %v909
        %vm932 = vcmp.lt.s32.totalorder %v910, 0
        %v933 = vsub.s32 0, %v910
        %v934 = vsel %vm932, %v933, %v910
        %vm935 = vcmp.ge.s32.totalorder %v913, 20
        %vm936 = vcmp.ge.s32.totalorder %v916, 20
        %vm937 = vcmp.ge.s32.totalorder %v919, 20
        %vm938 = vcmp.ge.s32.totalorder %v922, 20
        %vm939 = vcmp.ge.s32.totalorder %v925, 20
        %vm940 = vcmp.ge.s32.totalorder %v928, 20
        %vm941 = vcmp.ge.s32.totalorder %v931, 20
        %vm942 = vcmp.ge.s32.totalorder %v934, 20
        %v943 = vsel %vm935, -1e+30, %v864
        %v944 = vsel %vm936, -1e+30, %v866
        %v945 = vsel %vm937, -1e+30, %v869
        %v946 = vsel %vm938, -1e+30, %v871
        %v947 = vsel %vm939, -1e+30, %v874
        %v948 = vsel %vm940, -1e+30, %v876
        %v949 = vsel %vm941, -1e+30, %v879
        %v950 = vsel %vm942, -1e+30, %v881
        %951 = vmax.xlane.f32.xlu0 %v943
        %v952 = vpop.xlane.xlu0 %951
        %953 = vmax.xlane.f32.xlu0 %v944
        %v954 = vpop.xlane.xlu0 %953
        %955 = vmax.xlane.f32.xlu0 %v945
        %v956 = vpop.xlane.xlu0 %955
        %957 = vmax.xlane.f32.xlu0 %v946
        %v958 = vpop.xlane.xlu0 %957
        %959 = vmax.xlane.f32.xlu0 %v947
        %v960 = vpop.xlane.xlu0 %959
        %961 = vmax.xlane.f32.xlu0 %v948
        %v962 = vpop.xlane.xlu0 %961
        %963 = vmax.xlane.f32.xlu0 %v949
        %v964 = vpop.xlane.xlu0 %963
        %965 = vmax.xlane.f32.xlu0 %v950
        %v966 = vpop.xlane.xlu0 %965
        %v967 = vsub.f32 %v943, %v952
        %v968 = vsub.f32 %v944, %v954
        %v969 = vsub.f32 %v945, %v956
        %v970 = vsub.f32 %v946, %v958
        %v971 = vsub.f32 %v947, %v960
        %v972 = vsub.f32 %v948, %v962
        %v973 = vsub.f32 %v949, %v964
        %v974 = vsub.f32 %v950, %v966
        %v975 = vmul.f32 %v967, 1.442695
        %v976 = vpow.pop %v975
        %v977 = vmul.f32 %v968, 1.442695
        %v978 = vpow.pop %v977
        %v979 = vmul.f32 %v969, 1.442695
        %v980 = vpow.pop %v979
        %v981 = vmul.f32 %v970, 1.442695
        %v982 = vpow.pop %v981
        %v983 = vmul.f32 %v971, 1.442695
        %v984 = vpow.pop %v983
        %v985 = vmul.f32 %v972, 1.442695
        %v986 = vpow.pop %v985
        %v987 = vmul.f32 %v973, 1.442695
        %v988 = vpow.pop %v987
        %v989 = vmul.f32 %v974, 1.442695
        %v990 = vpow.pop %v989
        %991 = vadd.xlane.f32.xlu0 %v976
        %v992 = vpop.xlane.xlu0 %991
        %993 = vadd.xlane.f32.xlu0 %v978
        %v994 = vpop.xlane.xlu0 %993
        %995 = vadd.xlane.f32.xlu0 %v980
        %v996 = vpop.xlane.xlu0 %995
        %997 = vadd.xlane.f32.xlu0 %v982
        %v998 = vpop.xlane.xlu0 %997
        %999 = vadd.xlane.f32.xlu0 %v984
        %v1000 = vpop.xlane.xlu0 %999
        %1001 = vadd.xlane.f32.xlu0 %v986
        %v1002 = vpop.xlane.xlu0 %1001
        %1003 = vadd.xlane.f32.xlu0 %v988
        %v1004 = vpop.xlane.xlu0 %1003
        %1005 = vadd.xlane.f32.xlu0 %v990
        %v1006 = vpop.xlane.xlu0 %1005
        %v1007 = vrcp.pop %v992
        %v1008 = vmul.f32 %v992, %v1007
        %v1009 = vsub.f32 1.0, %v1008
        %v1010 = vmul.f32 %v1007, %v1009
        %v1011 = vadd.f32 %v1007, %v1010
        %vm1012 = vweird.f32 %v992
        %vm1013 = vweird.f32 %v1007
        %vm1014 = vmor %vm1012, %vm1013
        %v1015 = vsel %vm1014, %v1007, %v1011
        %v1016 = vand.u32 2147483647, %v992
        %vm1017 = vcmp.eq.f32.partialorder %v1016, 8.507059e+37
        %v1018 = vand.u32 %v992, 2147483648
        %v1019 = vor.u32 1.1754944e-38, %v1018
        %v1020 = vsel %vm1017, %v1019, %v1015
        %v1021 = vrcp.pop %v994
        %v1022 = vmul.f32 %v994, %v1021
        %v1023 = vsub.f32 1.0, %v1022
        %v1024 = vmul.f32 %v1021, %v1023
        %v1025 = vadd.f32 %v1021, %v1024
        %vm1026 = vweird.f32 %v994
        %vm1027 = vweird.f32 %v1021
        %vm1028 = vmor %vm1026, %vm1027
        %v1029 = vsel %vm1028, %v1021, %v1025
        %v1030 = vand.u32 2147483647, %v994
        %vm1031 = vcmp.eq.f32.partialorder %v1030, 8.507059e+37
        %v1032 = vand.u32 %v994, 2147483648
        %v1033 = vor.u32 1.1754944e-38, %v1032
        %v1034 = vsel %vm1031, %v1033, %v1029
        %v1035 = vrcp.pop %v996
        %v1036 = vmul.f32 %v996, %v1035
        %v1037 = vsub.f32 1.0, %v1036
        %v1038 = vmul.f32 %v1035, %v1037
        %v1039 = vadd.f32 %v1035, %v1038
        %vm1040 = vweird.f32 %v996
        %vm1041 = vweird.f32 %v1035
        %vm1042 = vmor %vm1040, %vm1041
        %v1043 = vsel %vm1042, %v1035, %v1039
        %v1044 = vand.u32 2147483647, %v996
        %vm1045 = vcmp.eq.f32.partialorder %v1044, 8.507059e+37
        %v1046 = vand.u32 %v996, 2147483648
        %v1047 = vor.u32 1.1754944e-38, %v1046
        %v1048 = vsel %vm1045, %v1047, %v1043
        %v1049 = vrcp.pop %v998
        %v1050 = vmul.f32 %v998, %v1049
        %v1051 = vsub.f32 1.0, %v1050
        %v1052 = vmul.f32 %v1049, %v1051
        %v1053 = vadd.f32 %v1049, %v1052
        %vm1054 = vweird.f32 %v998
        %vm1055 = vweird.f32 %v1049
        %vm1056 = vmor %vm1054, %vm1055
        %v1057 = vsel %vm1056, %v1049, %v1053
        %v1058 = vand.u32 2147483647, %v998
        %vm1059 = vcmp.eq.f32.partialorder %v1058, 8.507059e+37
        %v1060 = vand.u32 %v998, 2147483648
        %v1061 = vor.u32 1.1754944e-38, %v1060
        %v1062 = vsel %vm1059, %v1061, %v1057
        %v1063 = vrcp.pop %v1000
        %v1064 = vmul.f32 %v1000, %v1063
        %v1065 = vsub.f32 1.0, %v1064
        %v1066 = vmul.f32 %v1063, %v1065
        %v1067 = vadd.f32 %v1063, %v1066
        %vm1068 = vweird.f32 %v1000
        %vm1069 = vweird.f32 %v1063
        %vm1070 = vmor %vm1068, %vm1069
        %v1071 = vsel %vm1070, %v1063, %v1067
        %v1072 = vand.u32 2147483647, %v1000
        %vm1073 = vcmp.eq.f32.partialorder %v1072, 8.507059e+37
        %v1074 = vand.u32 %v1000, 2147483648
        %v1075 = vor.u32 1.1754944e-38, %v1074
        %v1076 = vsel %vm1073, %v1075, %v1071
        %v1077 = vrcp.pop %v1002
        %v1078 = vmul.f32 %v1002, %v1077
        %v1079 = vsub.f32 1.0, %v1078
        %v1080 = vmul.f32 %v1077, %v1079
        %v1081 = vadd.f32 %v1077, %v1080
        %vm1082 = vweird.f32 %v1002
        %vm1083 = vweird.f32 %v1077
        %vm1084 = vmor %vm1082, %vm1083
        %v1085 = vsel %vm1084, %v1077, %v1081
        %v1086 = vand.u32 2147483647, %v1002
        %vm1087 = vcmp.eq.f32.partialorder %v1086, 8.507059e+37
        %v1088 = vand.u32 %v1002, 2147483648
        %v1089 = vor.u32 1.1754944e-38, %v1088
        %v1090 = vsel %vm1087, %v1089, %v1085
        %v1091 = vrcp.pop %v1004
        %v1092 = vmul.f32 %v1004, %v1091
        %v1093 = vsub.f32 1.0, %v1092
        %v1094 = vmul.f32 %v1091, %v1093
        %v1095 = vadd.f32 %v1091, %v1094
        %vm1096 = vweird.f32 %v1004
        %vm1097 = vweird.f32 %v1091
        %vm1098 = vmor %vm1096, %vm1097
        %v1099 = vsel %vm1098, %v1091, %v1095
        %v1100 = vand.u32 2147483647, %v1004
        %vm1101 = vcmp.eq.f32.partialorder %v1100, 8.507059e+37
        %v1102 = vand.u32 %v1004, 2147483648
        %v1103 = vor.u32 1.1754944e-38, %v1102
        %v1104 = vsel %vm1101, %v1103, %v1099
        %v1105 = vrcp.pop %v1006
        %v1106 = vmul.f32 %v1006, %v1105
        %v1107 = vsub.f32 1.0, %v1106
        %v1108 = vmul.f32 %v1105, %v1107
        %v1109 = vadd.f32 %v1105, %v1108
        %vm1110 = vweird.f32 %v1006
        %vm1111 = vweird.f32 %v1105
        %vm1112 = vmor %vm1110, %vm1111
        %v1113 = vsel %vm1112, %v1105, %v1109
        %v1114 = vand.u32 2147483647, %v1006
        %vm1115 = vcmp.eq.f32.partialorder %v1114, 8.507059e+37
        %v1116 = vand.u32 %v1006, 2147483648
        %v1117 = vor.u32 1.1754944e-38, %v1116
        %v1118 = vsel %vm1115, %v1117, %v1113
        %v1119 = vmul.f32 %v976, %v1020
        %v1120 = vmul.f32 %v978, %v1034
        %v1121 = vmul.f32 %v980, %v1048
        %v1122 = vmul.f32 %v982, %v1062
        %v1123 = vmul.f32 %v984, %v1076
        %v1124 = vmul.f32 %v986, %v1090
        %v1125 = vmul.f32 %v988, %v1104
        %v1126 = vmul.f32 %v990, %v1118
        %1127 = vst [vmem:[%s311] sm:$0xff] %v1119
        %1128 = vst [vmem:[%s311 + $0x8] sm:$0xff] %v1120
        %1129 = vst [vmem:[%s311 + $0x10] sm:$0xff] %v1121
        %1130 = vst [vmem:[%s311 + $0x18] sm:$0xff] %v1122
        %1131 = vst [vmem:[%s311 + $0x20] sm:$0xff] %v1123
        %1132 = vst [vmem:[%s311 + $0x28] sm:$0xff] %v1124
        %1133 = vst [vmem:[%s311 + $0x30] sm:$0xff] %v1125
        %1134 = vst [vmem:[%s311 + $0x38] sm:$0xff] %v1126
        %v1135 = vld [vmem:[#allocation3] sm:$0xff]
        %v1136 = vld [vmem:[#allocation3 + $0x8] sm:$0xff]
        %v1137 = vld [vmem:[#allocation3 + $0x10] sm:$0xff]
        %v1138 = vld [vmem:[#allocation3 + $0x18] sm:$0xff]
        %v1139 = vld [vmem:[#allocation3 + $0x20] sm:$0xff]
        %v1140 = vld [vmem:[#allocation3 + $0x28] sm:$0xff]
        %v1141 = vld [vmem:[#allocation3 + $0x30] sm:$0xff]
        %v1142 = vld [vmem:[#allocation3 + $0x38] sm:$0xff]
        %v1143 = vld [vmem:[#allocation3 + $0x40] sm:$0xff]
        %v1144 = vld [vmem:[#allocation3 + $0x48] sm:$0xff]
        %v1145 = vld [vmem:[#allocation3 + $0x50] sm:$0xff]
        %v1146 = vld [vmem:[#allocation3 + $0x58] sm:$0xff]
        %v1147 = vld [vmem:[#allocation3 + $0x60] sm:$0xff]
        %v1148 = vld [vmem:[#allocation3 + $0x68] sm:$0xff]
        %v1149 = vld [vmem:[#allocation3 + $0x70] sm:$0xff]
        %v1150 = vld [vmem:[#allocation3 + $0x78] sm:$0xff]
        %v1151 = vpack.c.bf16 %v749, %v747
        %v1152 = vpack.c.bf16 %v754, %v752
        %v1153 = vpack.c.bf16 %v759, %v757
        %v1154 = vpack.c.bf16 %v764, %v762
        %v1155 = vpack.c.bf16 %v769, %v767
        %v1156 = vpack.c.bf16 %v774, %v772
        %v1157 = vpack.c.bf16 %v779, %v777
        %v1158 = vpack.c.bf16 %v784, %v782
        %v1159 = vpack.c.bf16 %v1120, %v1119
        %v1160 = vpack.c.bf16 %v1122, %v1121
        %v1161 = vpack.c.bf16 %v1124, %v1123
        %v1162 = vpack.c.bf16 %v1126, %v1125
        %vm1163 = vcmask 523264
        %v1165 = vsel %vm1163, %v1151, 0
        %v1168 = vsel %vm1163, %v1152, 0
        %v1171 = vsel %vm1163, %v1153, 0
        %v1174 = vsel %vm1163, %v1154, 0
        %v1177 = vsel %vm1163, %v1155, 0
        %v1180 = vsel %vm1163, %v1156, 0
        %v1183 = vsel %vm1163, %v1157, 0
        %v1186 = vsel %vm1163, %v1158, 0
        %1188 = vmatpush.bf16.msra.mxu0 0
        %1189 = vmatpush.bf16.msra.mxu0 0
        %1190 = vmatpush.bf16.msra.mxu0 0
        %1191 = vmatpush.bf16.msra.mxu0 0
        %1192 = vmatpush.bf16.msra.mxu0 %v1162
        %1193 = vmatpush.bf16.msra.mxu0 %v1161
        %1194 = vmatpush.bf16.msra.mxu0 %v1160
        %1195 = vmatpush.bf16.msra.mxu0 %v1159
        %1196 = vmatmul.bf16.gmra.mxu0 %v1165
        %v1197 = vpop.f32.mrf.mxu0
        %v1198 = vadd.f32 0.0, %v1197
        %v1199 = vpop.f32.mrf.mxu0
        %v1200 = vadd.f32 0.0, %v1199
        %1201 = vmatmul.bf16.gmra.mxu0 %v1168
        %v1202 = vpop.f32.mrf.mxu0
        %v1203 = vadd.f32 0.0, %v1202
        %v1204 = vpop.f32.mrf.mxu0
        %v1205 = vadd.f32 0.0, %v1204
        %1206 = vmatmul.bf16.gmra.mxu0 %v1171
        %v1207 = vpop.f32.mrf.mxu0
        %v1208 = vadd.f32 0.0, %v1207
        %v1209 = vpop.f32.mrf.mxu0
        %v1210 = vadd.f32 0.0, %v1209
        %1211 = vmatmul.bf16.gmra.mxu0 %v1174
        %v1212 = vpop.f32.mrf.mxu0
        %v1213 = vadd.f32 0.0, %v1212
        %v1214 = vpop.f32.mrf.mxu0
        %v1215 = vadd.f32 0.0, %v1214
        %1216 = vmatmul.bf16.gmra.mxu0 %v1177
        %v1217 = vpop.f32.mrf.mxu0
        %v1218 = vadd.f32 0.0, %v1217
        %v1219 = vpop.f32.mrf.mxu0
        %v1220 = vadd.f32 0.0, %v1219
        %1221 = vmatmul.bf16.gmra.mxu0 %v1180
        %v1222 = vpop.f32.mrf.mxu0
        %v1223 = vadd.f32 0.0, %v1222
        %v1224 = vpop.f32.mrf.mxu0
        %v1225 = vadd.f32 0.0, %v1224
        %1226 = vmatmul.bf16.gmra.mxu0 %v1183
        %v1227 = vpop.f32.mrf.mxu0
        %v1228 = vadd.f32 0.0, %v1227
        %v1229 = vpop.f32.mrf.mxu0
        %v1230 = vadd.f32 0.0, %v1229
        %1231 = vmatmul.bf16.gmra.mxu0 %v1186
        %v1232 = vpop.f32.mrf.mxu0
        %v1233 = vadd.f32 0.0, %v1232
        %v1234 = vpop.f32.mrf.mxu0
        %v1235 = vadd.f32 0.0, %v1234
        %1236 = vdwg.mxu0
        %v1237 = vadd.f32 %v1135, %v1198
        %v1238 = vadd.f32 %v1136, %v1200
        %v1239 = vadd.f32 %v1137, %v1203
        %v1240 = vadd.f32 %v1138, %v1205
        %v1241 = vadd.f32 %v1139, %v1208
        %v1242 = vadd.f32 %v1140, %v1210
        %v1243 = vadd.f32 %v1141, %v1213
        %v1244 = vadd.f32 %v1142, %v1215
        %v1245 = vadd.f32 %v1143, %v1218
        %v1246 = vadd.f32 %v1144, %v1220
        %v1247 = vadd.f32 %v1145, %v1223
        %v1248 = vadd.f32 %v1146, %v1225
        %v1249 = vadd.f32 %v1147, %v1228
        %v1250 = vadd.f32 %v1148, %v1230
        %v1251 = vadd.f32 %v1149, %v1233
        %v1252 = vadd.f32 %v1150, %v1235
        %1253 = vst [vmem:[#allocation3] sm:$0xff] %v1237
        %1254 = vst [vmem:[#allocation3 + $0x8] sm:$0xff] %v1238
        %1255 = vst [vmem:[#allocation3 + $0x10] sm:$0xff] %v1239
        %1256 = vst [vmem:[#allocation3 + $0x18] sm:$0xff] %v1240
        %1257 = vst [vmem:[#allocation3 + $0x20] sm:$0xff] %v1241
        %1258 = vst [vmem:[#allocation3 + $0x28] sm:$0xff] %v1242
        %1259 = vst [vmem:[#allocation3 + $0x30] sm:$0xff] %v1243
        %1260 = vst [vmem:[#allocation3 + $0x38] sm:$0xff] %v1244
        %1261 = vst [vmem:[#allocation3 + $0x40] sm:$0xff] %v1245
        %1262 = vst [vmem:[#allocation3 + $0x48] sm:$0xff] %v1246
        %1263 = vst [vmem:[#allocation3 + $0x50] sm:$0xff] %v1247
        %1264 = vst [vmem:[#allocation3 + $0x58] sm:$0xff] %v1248
        %1265 = vst [vmem:[#allocation3 + $0x60] sm:$0xff] %v1249
        %1266 = vst [vmem:[#allocation3 + $0x68] sm:$0xff] %v1250
        %1267 = vst [vmem:[#allocation3 + $0x70] sm:$0xff] %v1251
        %1268 = vst [vmem:[#allocation3 + $0x78] sm:$0xff] %v1252
        %p1269 = scmp.eq.s32.totalorder %s25, 1
        // Predicated region
        $region65: #{tpu_custom_call.1} parent=39 // pred_check
          %p1270 = pneg %p1269
        $region66: #{tpu_custom_call.1} parent=39 // pred_check_branch
          %1272 = sbr.rel (%p1270) target = $region68
        $region67: #{tpu_custom_call.1} parent=39 // pred_region
          %v1273 = vld [vmem:[#allocation3] sm:$0xff]
          %v1274 = vld [vmem:[#allocation3 + $0x8] sm:$0xff]
          %v1275 = vld [vmem:[#allocation3 + $0x10] sm:$0xff]
          %v1276 = vld [vmem:[#allocation3 + $0x18] sm:$0xff]
          %v1277 = vld [vmem:[#allocation3 + $0x20] sm:$0xff]
          %v1278 = vld [vmem:[#allocation3 + $0x28] sm:$0xff]
          %v1279 = vld [vmem:[#allocation3 + $0x30] sm:$0xff]
          %v1280 = vld [vmem:[#allocation3 + $0x38] sm:$0xff]
          %v1281 = vld [vmem:[#allocation3 + $0x40] sm:$0xff]
          %v1282 = vld [vmem:[#allocation3 + $0x48] sm:$0xff]
          %v1283 = vld [vmem:[#allocation3 + $0x50] sm:$0xff]
          %v1284 = vld [vmem:[#allocation3 + $0x58] sm:$0xff]
          %v1285 = vld [vmem:[#allocation3 + $0x60] sm:$0xff]
          %v1286 = vld [vmem:[#allocation3 + $0x68] sm:$0xff]
          %v1287 = vld [vmem:[#allocation3 + $0x70] sm:$0xff]
          %v1288 = vld [vmem:[#allocation3 + $0x78] sm:$0xff]
          %v1289 = vpack.c.bf16 %v1274, %v1273
          %v1290 = vpack.c.bf16 %v1276, %v1275
          %v1291 = vpack.c.bf16 %v1278, %v1277
          %v1292 = vpack.c.bf16 %v1280, %v1279
          %v1293 = vpack.c.bf16 %v1282, %v1281
          %v1294 = vpack.c.bf16 %v1284, %v1283
          %v1295 = vpack.c.bf16 %v1286, %v1285
          %v1296 = vpack.c.bf16 %v1288, %v1287
          %v1297 = vld [vmem:[#allocation12] sm:$0xf]
          %v1298 = vld [vmem:[#allocation12 + $0x4] sm:$0xf]
          %v1299 = vld [vmem:[#allocation12 + $0x8] sm:$0xf]
          %v1300 = vld [vmem:[#allocation12 + $0xc] sm:$0xf]
          %v1301 = vld [vmem:[#allocation12 + $0x10] sm:$0xf]
          %v1302 = vld [vmem:[#allocation12 + $0x14] sm:$0xf]
          %v1303 = vld [vmem:[#allocation12 + $0x18] sm:$0xf]
          %v1304 = vld [vmem:[#allocation12 + $0x1c] sm:$0xf]
          %v1305 = vld [vmem:[#allocation12 + $0x20] sm:$0xf]
          %v1306 = vld [vmem:[#allocation12 + $0x24] sm:$0xf]
          %v1307 = vld [vmem:[#allocation12 + $0x28] sm:$0xf]
          %v1308 = vld [vmem:[#allocation12 + $0x2c] sm:$0xf]
          %v1309 = vld [vmem:[#allocation12 + $0x30] sm:$0xf]
          %v1310 = vld [vmem:[#allocation12 + $0x34] sm:$0xf]
          %v1311 = vld [vmem:[#allocation12 + $0x38] sm:$0xf]
          %v1312 = vld [vmem:[#allocation12 + $0x3c] sm:$0xf]
          %1313 = vxpose.xlu0.c.b16.start [1/8] %v1289, 128
          %1314 = vxpose.xlu0.c.b16.cont [2/8] %v1290, 128
          %1315 = vxpose.xlu0.c.b16.cont [3/8] %v1291, 128
          %1316 = vxpose.xlu0.c.b16.cont [4/8] %v1292, 128
          %1317 = vxpose.xlu0.c.b16.cont [5/8] %v1293, 128
          %1318 = vxpose.xlu0.c.b16.cont [6/8] %v1294, 128
          %1319 = vxpose.xlu0.c.b16.cont [7/8] %v1295, 128
          %1320 = vxpose.xlu0.c.b16.end [8/8] %v1296, 128
          %v1321 = vpop.trf.xlu0
          %v1322 = vpop.trf.xlu0
          %v1323 = vpop.trf.xlu0
          %v1324 = vpop.trf.xlu0
          %v1325 = vpop.trf.xlu0
          %v1326 = vpop.trf.xlu0
          %v1327 = vpop.trf.xlu0
          %v1328 = vpop.trf.xlu0
          %v1345 = vunpack.c.l.b16 %v1297
          %v1346 = vunpack.c.l.b16 %v1298
          %v1347 = vunpack.c.l.b16 %v1299
          %v1348 = vunpack.c.l.b16 %v1300
          %v1349 = vunpack.c.l.b16 %v1301
          %v1350 = vunpack.c.l.b16 %v1302
          %v1351 = vunpack.c.l.b16 %v1303
          %v1352 = vunpack.c.l.b16 %v1304
          %v1353 = vunpack.c.l.b16 %v1305
          %v1354 = vunpack.c.l.b16 %v1306
          %v1355 = vunpack.c.l.b16 %v1307
          %v1356 = vunpack.c.l.b16 %v1308
          %v1357 = vunpack.c.l.b16 %v1309
          %v1358 = vunpack.c.l.b16 %v1310
          %v1359 = vunpack.c.l.b16 %v1311
          %v1360 = vunpack.c.l.b16 %v1312
          %v1361 = vpack.c.b16 %v1346, %v1345
          %v1362 = vpack.c.b16 %v1348, %v1347
          %v1363 = vpack.c.b16 %v1350, %v1349
          %v1364 = vpack.c.b16 %v1352, %v1351
          %v1365 = vpack.c.b16 %v1354, %v1353
          %v1366 = vpack.c.b16 %v1356, %v1355
          %v1367 = vpack.c.b16 %v1358, %v1357
          %v1368 = vpack.c.b16 %v1360, %v1359
          %1377 = vmatpush.bf16.msra.mxu0 %v1368
          %1378 = vmatpush.bf16.msra.mxu0 %v1367
          %1379 = vmatpush.bf16.msra.mxu0 %v1366
          %1380 = vmatpush.bf16.msra.mxu0 %v1365
          %1381 = vmatpush.bf16.msra.mxu0 %v1364
          %1382 = vmatpush.bf16.msra.mxu0 %v1363
          %1383 = vmatpush.bf16.msra.mxu0 %v1362
          %1384 = vmatpush.bf16.msra.mxu0 %v1361
          %1385 = vmatmul.bf16.gmra.mxu0 %v1321
          %v1386 = vpop.f32.mrf.mxu0
          %v1387 = vadd.f32 0.0, %v1386
          %v1388 = vpop.f32.mrf.mxu0
          %v1389 = vadd.f32 0.0, %v1388
          %1390 = vmatmul.bf16.gmra.mxu0 %v1322
          %v1391 = vpop.f32.mrf.mxu0
          %v1392 = vadd.f32 0.0, %v1391
          %v1393 = vpop.f32.mrf.mxu0
          %v1394 = vadd.f32 0.0, %v1393
          %1395 = vmatmul.bf16.gmra.mxu0 %v1323
          %v1396 = vpop.f32.mrf.mxu0
          %v1397 = vadd.f32 0.0, %v1396
          %v1398 = vpop.f32.mrf.mxu0
          %v1399 = vadd.f32 0.0, %v1398
          %1400 = vmatmul.bf16.gmra.mxu0 %v1324
          %v1401 = vpop.f32.mrf.mxu0
          %v1402 = vadd.f32 0.0, %v1401
          %v1403 = vpop.f32.mrf.mxu0
          %v1404 = vadd.f32 0.0, %v1403
          %1405 = vmatmul.bf16.gmra.mxu0 %v1325
          %v1406 = vpop.f32.mrf.mxu0
          %v1407 = vadd.f32 0.0, %v1406
          %v1408 = vpop.f32.mrf.mxu0
          %v1409 = vadd.f32 0.0, %v1408
          %1410 = vmatmul.bf16.gmra.mxu0 %v1326
          %v1411 = vpop.f32.mrf.mxu0
          %v1412 = vadd.f32 0.0, %v1411
          %v1413 = vpop.f32.mrf.mxu0
          %v1414 = vadd.f32 0.0, %v1413
          %1415 = vmatmul.bf16.gmra.mxu0 %v1327
          %v1416 = vpop.f32.mrf.mxu0
          %v1417 = vadd.f32 0.0, %v1416
          %v1418 = vpop.f32.mrf.mxu0
          %v1419 = vadd.f32 0.0, %v1418
          %1420 = vmatmul.bf16.gmra.mxu0 %v1328
          %v1421 = vpop.f32.mrf.mxu0
          %v1422 = vadd.f32 0.0, %v1421
          %v1423 = vpop.f32.mrf.mxu0
          %v1424 = vadd.f32 0.0, %v1423
          %1425 = vdwg.mxu0
          %1426 = vst [vmem:[#allocation13] sm:$0xff] %v1387
          %1427 = vst [vmem:[#allocation13 + $0x8] sm:$0xff] %v1389
          %1428 = vst [vmem:[#allocation13 + $0x10] sm:$0xff] %v1392
          %1429 = vst [vmem:[#allocation13 + $0x18] sm:$0xff] %v1394
          %1430 = vst [vmem:[#allocation13 + $0x20] sm:$0xff] %v1397
          %1431 = vst [vmem:[#allocation13 + $0x28] sm:$0xff] %v1399
          %1432 = vst [vmem:[#allocation13 + $0x30] sm:$0xff] %v1402
          %1433 = vst [vmem:[#allocation13 + $0x38] sm:$0xff] %v1404
          %1434 = vst [vmem:[#allocation13 + $0x40] sm:$0xff] %v1407
          %1435 = vst [vmem:[#allocation13 + $0x48] sm:$0xff] %v1409
          %1436 = vst [vmem:[#allocation13 + $0x50] sm:$0xff] %v1412
          %1437 = vst [vmem:[#allocation13 + $0x58] sm:$0xff] %v1414
          %1438 = vst [vmem:[#allocation13 + $0x60] sm:$0xff] %v1417
          %1439 = vst [vmem:[#allocation13 + $0x68] sm:$0xff] %v1419
          %1440 = vst [vmem:[#allocation13 + $0x70] sm:$0xff] %v1422
          %1441 = vst [vmem:[#allocation13 + $0x78] sm:$0xff] %v1424
        $region68: #{tpu_custom_call.1} parent=39 // pred_fallthru
          _
        %s1442 = sand.u32 %s159, 1
        %s1443 = scalar_lea.sflag [#allocation15], %s1442
        %s1444 = sand.u32 %s159, 1
        %s1445 = smul.addr %s1444, 64
        %s1446 = scalar_lea.vmem [#allocation14], %s1445
        // Predicated region
        $region69: #{tpu_custom_call.1} parent=39 // pred_check
          %p1447 = pneg %p143
        $region70: #{tpu_custom_call.1} parent=39 // pred_check_branch
          %1449 = sbr.rel (%p1447) target = $region72
        $region71: #{tpu_custom_call.1} parent=39 // pred_region
          %1451 = vsyncadd [#allocation6], 0
          %s1452 = sshll.u32 [#allocation13], 4
          %s1453 = int_to_ptr.vmem [resolvable:$true] %s1452
          %s1454 = sshll.u32 %s5, 4
          %s1455 = int_to_ptr.hbm [resolvable:$true] %s1454
          %1460 = dma.vmem_to_hbm [thread:$0]  %s1453, 2048, %s1455, [#allocation6], 128, 128, 8
        $region72: #{tpu_custom_call.1} parent=39 // pred_fallthru
          _
        // Predicated region
        $region73: #{tpu_custom_call.1} parent=39 // pred_check
          %p1461 = pneg %p169
        $region74: #{tpu_custom_call.1} parent=39 // pred_check_branch
          %1463 = sbr.rel (%p1461) target = $region76
        $region75: #{tpu_custom_call.1} parent=39 // pred_region
          %s1464 = smul.u32 8, %s25
          %1466 = vsyncadd %s1443, 0
          %s1467 = smul.addr %s1464, 8
          %s1468 = scalar_lea.hbm %s6, %s1467
          %s1469 = sshll.u32 %s1446, 4
          %s1470 = int_to_ptr.vmem [resolvable:$true] %s1469
          %s1471 = sshll.u32 %s1468, 4
          %s1472 = int_to_ptr.hbm [resolvable:$true] %s1471
          %1477 = dma.vmem_to_hbm [thread:$0]  %s1470, 1024, %s1472, %s1443, 128, 128, 8
        $region76: #{tpu_custom_call.1} parent=39 // pred_fallthru
          _
        // Predicated region
        $region77: #{tpu_custom_call.1} parent=39 // pred_check
          %p1478 = pneg %p143
        $region78: #{tpu_custom_call.1} parent=39 // pred_check_branch
          %1480 = sbr.rel (%p1478) target = $region80
        $region79: #{tpu_custom_call.1} parent=39 // pred_region
          %1482 = dma.done [#allocation6], 2048
        $region80: #{tpu_custom_call.1} parent=39 // pred_fallthru
          _
      $region40: #{tpu_custom_call.1} parent=5 // pred_fallthru
        _
      %p1483 = scmp.le.s32.totalorder 2, %s20
      // Predicated region
      $region81: #{tpu_custom_call.1} parent=5 // pred_check
        %p1484 = pneg %p1483
      $region82: #{tpu_custom_call.1} parent=5 // pred_check_branch
        %1486 = sbr.rel (%p1484) target = $region84
      $region83: #{tpu_custom_call.1} parent=5 // pred_region
        %s1487 = ssub.s32 %s20, 2
        // Predicated region
        $region85: #{tpu_custom_call.1} parent=83 // pred_check
          %p1488 = pneg %p175
        $region86: #{tpu_custom_call.1} parent=83 // pred_check_branch
          %1490 = sbr.rel (%p1488) target = $region88
        $region87: #{tpu_custom_call.1} parent=83 // pred_region
          %s1491 = sand.u32 %s160, 1
          %s1492 = scalar_lea.sflag [#allocation15], %s1491
          %s1493 = sand.u32 %s160, 1
          %s1494 = smul.addr %s1493, 64
          %s1495 = scalar_lea.vmem [#allocation14], %s1494
          %1497 = dma.done %s1492, 1024
        $region88: #{tpu_custom_call.1} parent=83 // pred_fallthru
          _
      $region84: #{tpu_custom_call.1} parent=5 // pred_fallthru
        _
    $region6: #{tpu_custom_call.1} parent=1 // loop_footer
      %s24 = sadd.s32 1, %s20
    $region7: #{tpu_custom_call.1} parent=1 // loop_footer_branch
      %19 = sbr.rel target = $region3
    $region8: #{tpu_custom_call.1} parent=1 // loop_exit
      _
    %1498 = vsyncpa [#allocation5], 1
    %s1499 = scalar_lea.sflag [#allocation5], 1
    %1500 = vsyncpa %s1499, 1
    %1501 = vsyncpa [#allocation8], 1
    %1502 = vsyncpa [#allocation11], 1
    %1503 = vsyncpa [#allocation6], 1
    %s1504 = scalar_lea.sflag [#allocation6], 1
    %1505 = vsyncpa %s1504, 1
    %1506 = vsyncpa [#allocation15], 1
    %s1507 = scalar_lea.sflag [#allocation15], 1
    %1508 = vsyncpa %s1507, 1

// kernel: tpu_custom_call.1
$region0: #{tpu_custom_call.1}
  #allocation0 [shape = 'u32[]', space=smem, size = 0x4, offset = 0x4, fixed_abs, tag = 'smem constant byte address 0x4 - core index']
  #allocation1 [shape = 'u32[72,128]{1,0:T(1,128)}', space=vmem, size = 0x9000, scoped, tag = 'internal scratch']
  #allocation2 [shape = 'bf16[128,128]{1,0:T(8,128)(2,1)}', space=vmem, size = 0x8000, scoped, tag = 'scratch operand']
  #allocation3 [shape = 'f32[128,128]{1,0:T(8,128)}', space=vmem, size = 0x10000, scoped, tag = 'scratch operand']
  %s0 = inlined_call_operand.hbm [shape: bf16[128,128], index: 0, kind: input, shape index: {}]
  %s1 = inlined_call_operand.hbm [shape: bf16[128,128], index: 1, kind: input, shape index: {}]
  %s2 = inlined_call_operand.hbm [shape: bf16[128,128], index: 2, kind: input, shape index: {}]
  %s3 = inlined_call_operand.hbm [shape: bf16[128,128], index: 3, kind: input, shape index: {}]
  %s4 = inlined_call_operand.hbm [shape: bf16[128,128], index: 4, kind: input, shape index: {}]
  %s5 = inlined_call_operand.hbm [shape: f32[128,128], index: 5, kind: output, shape index: {0}]
  %s6 = inlined_call_operand.hbm [shape: f32[128,128], index: 6, kind: output, shape index: {1}]
  %7 = xla_tuple %s5, %s6
  %s8 = sld [smem:[#allocation0]]
  $region89: #{tpu_custom_call.1} parent=0
    _
  %s10 = ssub.s32 1, %s8
  %s11 = scalar_select 0, %s10, %s8
  $region1: #{tpu_custom_call.1} parent=0
    #allocation4 [shape = 'u8[32768]{0}', space=vmem, size = 0x8000, scoped, tag = 'input window, operand 0, single buffered']
    #allocation5 [shape = 's32[2]{0}', space=sflag, size = 0x8, scoped, tag = 'scoped memory for tpu_custom_call.1']
    #allocation6 [shape = 's32[2]{0}', space=sflag, size = 0x8, scoped, tag = 'scoped memory for tpu_custom_call.1']
    #allocation7 [shape = 'u8[32768]{0}', space=vmem, size = 0x8000, scoped, tag = 'input window, operand 1, single buffered']
    #allocation8 [shape = 's32[1]{0}', space=sflag, size = 0x4, scoped, tag = 'scoped memory for tpu_custom_call.1']
    #allocation9 [shape = 'u8[32768]{0}', space=vmem, size = 0x8000, scoped, tag = 'input window, operand 2, single buffered']
    #allocation10 [shape = 'u8[32768]{0}', space=vmem, size = 0x8000, scoped, tag = 'input window, operand 3, single buffered']
    #allocation11 [shape = 's32[1]{0}', space=sflag, size = 0x4, scoped, tag = 'scoped memory for tpu_custom_call.1']
    #allocation12 [shape = 'u8[32768]{0}', space=vmem, size = 0x8000, scoped, tag = 'input window, operand 4, single buffered']
    #allocation13 [shape = 'u8[65536]{0}', space=vmem, size = 0x10000, scoped, tag = 'output window, operand 0, single buffered']
    #allocation14 [shape = 'u8[65536]{0}', space=vmem, size = 0x10000, scoped, tag = 'output window, operand 1']
    #allocation15 [shape = 's32[2]{0}', space=sflag, size = 0x8, scoped, tag = 'scoped memory for tpu_custom_call.1']
    %12 = vsyncpa [#allocation5], 0
    %13 = vsyncpa [#allocation8], 0
    %14 = vsyncpa [#allocation11], 0
    %15 = vsyncpa [#allocation6], 0
    %16 = vsyncpa [#allocation15], 0
    %s17 = scalar_lea.sflag [#allocation15], 1
    %18 = vsyncpa %s17, 0
    loop: start=0, step=1, limit=4
    $region2: #{tpu_custom_call.1} parent=1 // loop_pre_header
      _
    $region3: #{tpu_custom_call.1} parent=1 // loop_header
      %s20 = sphi 0, %s24
      %p21 = scmp.ge.s32.totalorder %s20, 4
      %s28 = sphi 0, %s28
      %s30 = sphi 0, %s28
      %s31 = sphi 0, %s30
      %s45 = sphi 0, %s31
      %s49 = sphi 0, %s49
      %s51 = sphi 0, %s49
      %s52 = sphi 0, %s51
      %s66 = sphi 0, %s52
      %s70 = sphi 0, %s70
      %s72 = sphi 0, %s70
      %s73 = sphi 0, %s72
      %s87 = sphi 0, %s73
      %s91 = sphi 0, %s91
      %s93 = sphi 0, %s91
      %s94 = sphi 0, %s93
      %s108 = sphi 0, %s94
      %s112 = sphi 0, %s112
      %s114 = sphi 0, %s112
      %s115 = sphi 0, %s114
      %s129 = sphi 0, %s115
      %s133 = sphi 0, %s133
      %s135 = sphi 0, %s133
      %s136 = sphi 0, %s135
      %s150 = sphi 0, %s136
      %s156 = sphi 0, %s158
      %s159 = sphi 0, %s156
      %s160 = sphi 0, %s159
      %s176 = sphi 0, %s160
    $region4: #{tpu_custom_call.1} parent=1 // loop_header_branch
      %23 = sbr.rel (%p21) target = $region8
    $region5: #{tpu_custom_call.1} parent=1 // loop_body
      %s25 = ssub.s32 %s20, 1
      %s26 = ssub.s32 %s20, 2
      %s27 = sadd.s32 %s20, 1
      %s29 = sadd.s32 %s28, 1
      %p32 = scmp.eq.s32.totalorder %s20, 1
      %p33 = scmp.ne.s32.totalorder %s28, %s30
      %p34 = scmp.eq.s32.totalorder %s20, 0
      %p35 = por %p33, %p34
      %p36 = scmp.ne.s32.totalorder %s28, %s30
      %p37 = scmp.eq.s32.totalorder %s25, 1
      %p38 = por %p36, %p37
      %p39 = scmp.ne.s32.totalorder %s30, %s31
      %p40 = scmp.eq.s32.totalorder %s25, 0
      %p41 = por %p39, %p40
      %p42 = scmp.ne.s32.totalorder %s30, %s31
      %p43 = scmp.eq.s32.totalorder %s26, 1
      %p44 = por %p42, %p43
      %p46 = scmp.ne.s32.totalorder %s31, %s45
      %p47 = scmp.eq.s32.totalorder %s26, 0
      %p48 = por %p46, %p47
      %s50 = sadd.s32 %s49, 1
      %p53 = scmp.eq.s32.totalorder %s20, 1
      %p54 = scmp.ne.s32.totalorder %s49, %s51
      %p55 = scmp.eq.s32.totalorder %s20, 0
      %p56 = por %p54, %p55
      %p57 = scmp.ne.s32.totalorder %s49, %s51
      %p58 = scmp.eq.s32.totalorder %s25, 1
      %p59 = por %p57, %p58
      %p60 = scmp.ne.s32.totalorder %s51, %s52
      %p61 = scmp.eq.s32.totalorder %s25, 0
      %p62 = por %p60, %p61
      %p63 = scmp.ne.s32.totalorder %s51, %s52
      %p64 = scmp.eq.s32.totalorder %s26, 1
      %p65 = por %p63, %p64
      %p67 = scmp.ne.s32.totalorder %s52, %s66
      %p68 = scmp.eq.s32.totalorder %s26, 0
      %p69 = por %p67, %p68
      %s71 = sadd.s32 %s70, 1
      %p74 = scmp.eq.s32.totalorder %s20, 1
      %p75 = scmp.ne.s32.totalorder %s70, %s72
      %p76 = scmp.eq.s32.totalorder %s20, 0
      %p77 = por %p75, %p76
      %p78 = scmp.ne.s32.totalorder %s70, %s72
      %p79 = scmp.eq.s32.totalorder %s25, 1
      %p80 = por %p78, %p79
      %p81 = scmp.ne.s32.totalorder %s72, %s73
      %p82 = scmp.eq.s32.totalorder %s25, 0
      %p83 = por %p81, %p82
      %p84 = scmp.ne.s32.totalorder %s72, %s73
      %p85 = scmp.eq.s32.totalorder %s26, 1
      %p86 = por %p84, %p85
      %p88 = scmp.ne.s32.totalorder %s73, %s87
      %p89 = scmp.eq.s32.totalorder %s26, 0
      %p90 = por %p88, %p89
      %s92 = sadd.s32 %s91, 1
      %p95 = scmp.eq.s32.totalorder %s20, 1
      %p96 = scmp.ne.s32.totalorder %s91, %s93
      %p97 = scmp.eq.s32.totalorder %s20, 0
      %p98 = por %p96, %p97
      %p99 = scmp.ne.s32.totalorder %s91, %s93
      %p100 = scmp.eq.s32.totalorder %s25, 1
      %p101 = por %p99, %p100
      %p102 = scmp.ne.s32.totalorder %s93, %s94
      %p103 = scmp.eq.s32.totalorder %s25, 0
      %p104 = por %p102, %p103
      %p105 = scmp.ne.s32.totalorder %s93, %s94
      %p106 = scmp.eq.s32.totalorder %s26, 1
      %p107 = por %p105, %p106
      %p109 = scmp.ne.s32.totalorder %s94, %s108
      %p110 = scmp.eq.s32.totalorder %s26, 0
      %p111 = por %p109, %p110
      %s113 = sadd.s32 %s112, 1
      %p116 = scmp.eq.s32.totalorder %s20, 1
      %p117 = scmp.ne.s32.totalorder %s112, %s114
      %p118 = scmp.eq.s32.totalorder %s20, 0
      %p119 = por %p117, %p118
      %p120 = scmp.ne.s32.totalorder %s112, %s114
      %p121 = scmp.eq.s32.totalorder %s25, 1
      %p122 = por %p120, %p121
      %p123 = scmp.ne.s32.totalorder %s114, %s115
      %p124 = scmp.eq.s32.totalorder %s25, 0
      %p125 = por %p123, %p124
      %p126 = scmp.ne.s32.totalorder %s114, %s115
      %p127 = scmp.eq.s32.totalorder %s26, 1
      %p128 = por %p126, %p127
      %p130 = scmp.ne.s32.totalorder %s115, %s129
      %p131 = scmp.eq.s32.totalorder %s26, 0
      %p132 = por %p130, %p131
      %s134 = sadd.s32 %s133, 1
      %p137 = scmp.eq.s32.totalorder %s20, 1
      %p138 = scmp.ne.s32.totalorder %s133, %s135
      %p139 = scmp.eq.s32.totalorder %s20, 0
      %p140 = por %p138, %p139
      %p141 = scmp.ne.s32.totalorder %s133, %s135
      %p142 = scmp.eq.s32.totalorder %s25, 1
      %p143 = por %p141, %p142
      %p144 = scmp.ne.s32.totalorder %s135, %s136
      %p145 = scmp.eq.s32.totalorder %s25, 0
      %p146 = por %p144, %p145
      %p147 = scmp.ne.s32.totalorder %s135, %s136
      %p148 = scmp.eq.s32.totalorder %s26, 1
      %p149 = por %p147, %p148
      %p151 = scmp.ne.s32.totalorder %s136, %s150
      %p152 = scmp.eq.s32.totalorder %s26, 0
      %p153 = por %p151, %p152
      %s154 = ssub.s32 %s20, %s27
      %p155 = scmp.eq.s32.totalorder %s154, 0
      %s157 = sadd.s32 %s156, 1
      %s158 = scalar_select %p155, %s156, %s157
      %p161 = pneg %p155
      %p162 = scmp.eq.s32.totalorder %s20, 1
      %p163 = por %p161, %p162
      %p164 = scmp.ne.s32.totalorder %s156, %s159
      %p165 = scmp.eq.s32.totalorder %s20, 0
      %p166 = por %p164, %p165
      %p167 = scmp.ne.s32.totalorder %s156, %s159
      %p168 = scmp.eq.s32.totalorder %s25, 1
      %p169 = por %p167, %p168
      %p170 = scmp.ne.s32.totalorder %s159, %s160
      %p171 = scmp.eq.s32.totalorder %s25, 0
      %p172 = por %p170, %p171
      %p173 = scmp.ne.s32.totalorder %s159, %s160
      %p174 = scmp.eq.s32.totalorder %s26, 1
      %p175 = por %p173, %p174
      %p177 = scmp.ne.s32.totalorder %s160, %s176
      %p178 = scmp.eq.s32.totalorder %s26, 0
      %p179 = por %p177, %p178
      %p180 = scmp.le.s32.totalorder 1, %s20
      %p181 = scmp.lt.s32.totalorder %s20, 3
      %p182 = pnand %p180, %p181
      %p183 = pneg %p182
      // Predicated region
      $region9: #{tpu_custom_call.1} parent=5 // pred_check
        _
      $region10: #{tpu_custom_call.1} parent=5 // pred_check_branch
        %185 = sbr.rel (%p182) target = $region12
      $region11: #{tpu_custom_call.1} parent=5 // pred_region
        %s186 = ssub.s32 %s20, 1
        // Predicated region
        $region13: #{tpu_custom_call.1} parent=11 // pred_check
          %p187 = pneg %p41
        $region14: #{tpu_custom_call.1} parent=11 // pred_check_branch
          %189 = sbr.rel (%p187) target = $region16
        $region15: #{tpu_custom_call.1} parent=11 // pred_region
          %191 = vsyncadd [#allocation5], 0
          %s192 = sshll.u32 %s0, 4
          %s193 = int_to_ptr.hbm [resolvable:$true] %s192
          %s194 = sshll.u32 [#allocation4], 4
          %s195 = int_to_ptr.vmem [resolvable:$true] %s194
          %200 = dma.hbm_to_vmem [thread:$0]  %s193, 1024, %s195, [#allocation5], 64, 64, 4
        $region16: #{tpu_custom_call.1} parent=11 // pred_fallthru
          _
        // Predicated region
        $region17: #{tpu_custom_call.1} parent=11 // pred_check
          %p201 = pneg %p62
        $region18: #{tpu_custom_call.1} parent=11 // pred_check_branch
          %203 = sbr.rel (%p201) target = $region20
        $region19: #{tpu_custom_call.1} parent=11 // pred_region
          %205 = vsyncadd [#allocation8], 0
          %s206 = sshll.u32 %s1, 4
          %s207 = int_to_ptr.hbm [resolvable:$true] %s206
          %s208 = sshll.u32 [#allocation7], 4
          %s209 = int_to_ptr.vmem [resolvable:$true] %s208
          %214 = dma.hbm_to_vmem [thread:$0]  %s207, 1024, %s209, [#allocation8], 64, 64, 4
        $region20: #{tpu_custom_call.1} parent=11 // pred_fallthru
          _
        // Predicated region
        $region21: #{tpu_custom_call.1} parent=11 // pred_check
          %p215 = pneg %p83
        $region22: #{tpu_custom_call.1} parent=11 // pred_check_branch
          %217 = sbr.rel (%p215) target = $region24
        $region23: #{tpu_custom_call.1} parent=11 // pred_region
          %219 = vsyncadd [#allocation8], 0
          %s220 = sshll.u32 %s2, 4
          %s221 = int_to_ptr.hbm [resolvable:$true] %s220
          %s222 = sshll.u32 [#allocation9], 4
          %s223 = int_to_ptr.vmem [resolvable:$true] %s222
          %228 = dma.hbm_to_vmem [thread:$0]  %s221, 1024, %s223, [#allocation8], 64, 64, 4
        $region24: #{tpu_custom_call.1} parent=11 // pred_fallthru
          _
        // Predicated region
        $region25: #{tpu_custom_call.1} parent=11 // pred_check
          %p229 = pneg %p104
        $region26: #{tpu_custom_call.1} parent=11 // pred_check_branch
          %231 = sbr.rel (%p229) target = $region28
        $region27: #{tpu_custom_call.1} parent=11 // pred_region
          %233 = vsyncadd [#allocation11], 0
          %s234 = sshll.u32 %s3, 4
          %s235 = int_to_ptr.hbm [resolvable:$true] %s234
          %s236 = sshll.u32 [#allocation10], 4
          %s237 = int_to_ptr.vmem [resolvable:$true] %s236
          %242 = dma.hbm_to_vmem [thread:$0]  %s235, 1024, %s237, [#allocation11], 64, 64, 4
        $region28: #{tpu_custom_call.1} parent=11 // pred_fallthru
          _
        // Predicated region
        $region29: #{tpu_custom_call.1} parent=11 // pred_check
          %p243 = pneg %p125
        $region30: #{tpu_custom_call.1} parent=11 // pred_check_branch
          %245 = sbr.rel (%p243) target = $region32
        $region31: #{tpu_custom_call.1} parent=11 // pred_region
          %247 = vsyncadd [#allocation11], 0
          %s248 = sshll.u32 %s4, 4
          %s249 = int_to_ptr.hbm [resolvable:$true] %s248
          %s250 = sshll.u32 [#allocation12], 4
          %s251 = int_to_ptr.vmem [resolvable:$true] %s250
          %256 = dma.hbm_to_vmem [thread:$0]  %s249, 1024, %s251, [#allocation11], 64, 64, 4
        $region32: #{tpu_custom_call.1} parent=11 // pred_fallthru
          _
      $region12: #{tpu_custom_call.1} parent=5 // pred_fallthru
        _
      %p257 = scmp.lt.s32.totalorder %s20, 2
      // Predicated region
      $region33: #{tpu_custom_call.1} parent=5 // pred_check
        %p258 = pneg %p257
      $region34: #{tpu_custom_call.1} parent=5 // pred_check_branch
        %260 = sbr.rel (%p258) target = $region36
      $region35: #{tpu_custom_call.1} parent=5 // pred_region
        _
      $region36: #{tpu_custom_call.1} parent=5 // pred_fallthru
        _
      %p261 = scmp.le.s32.totalorder 1, %s20
      %p262 = scmp.lt.s32.totalorder %s20, 3
      %p263 = pnand %p261, %p262
      %p264 = pneg %p263
      // Predicated region
      $region37: #{tpu_custom_call.1} parent=5 // pred_check
        _
      $region38: #{tpu_custom_call.1} parent=5 // pred_check_branch
        %266 = sbr.rel (%p263) target = $region40
      $region39: #{tpu_custom_call.1} parent=5 // pred_region
        %s267 = ssub.s32 %s20, 1
        // Predicated region
        $region41: #{tpu_custom_call.1} parent=39 // pred_check
          %p268 = pneg %p41
        $region42: #{tpu_custom_call.1} parent=39 // pred_check_branch
          %270 = sbr.rel (%p268) target = $region44
        $region43: #{tpu_custom_call.1} parent=39 // pred_region
          %272 = dma.done [#allocation5], 1024
        $region44: #{tpu_custom_call.1} parent=39 // pred_fallthru
          _
        // Predicated region
        $region45: #{tpu_custom_call.1} parent=39 // pred_check
          %p273 = pneg %p62
        $region46: #{tpu_custom_call.1} parent=39 // pred_check_branch
          %275 = sbr.rel (%p273) target = $region48
        $region47: #{tpu_custom_call.1} parent=39 // pred_region
          %277 = dma.done [#allocation8], 1024
        $region48: #{tpu_custom_call.1} parent=39 // pred_fallthru
          _
        // Predicated region
        $region49: #{tpu_custom_call.1} parent=39 // pred_check
          %p278 = pneg %p83
        $region50: #{tpu_custom_call.1} parent=39 // pred_check_branch
          %280 = sbr.rel (%p278) target = $region52
        $region51: #{tpu_custom_call.1} parent=39 // pred_region
          %282 = dma.done [#allocation8], 1024
        $region52: #{tpu_custom_call.1} parent=39 // pred_fallthru
          _
        // Predicated region
        $region53: #{tpu_custom_call.1} parent=39 // pred_check
          %p283 = pneg %p104
        $region54: #{tpu_custom_call.1} parent=39 // pred_check_branch
          %285 = sbr.rel (%p283) target = $region56
        $region55: #{tpu_custom_call.1} parent=39 // pred_region
          %287 = dma.done [#allocation11], 1024
        $region56: #{tpu_custom_call.1} parent=39 // pred_fallthru
          _
        // Predicated region
        $region57: #{tpu_custom_call.1} parent=39 // pred_check
          %p288 = pneg %p125
        $region58: #{tpu_custom_call.1} parent=39 // pred_check_branch
          %290 = sbr.rel (%p288) target = $region60
        $region59: #{tpu_custom_call.1} parent=39 // pred_region
          %292 = dma.done [#allocation11], 1024
        $region60: #{tpu_custom_call.1} parent=39 // pred_fallthru
          _
        %p293 = pneg %p41
        %p294 = pneg %p38
        %p295 = pneg %p62
        %p296 = pneg %p59
        %p297 = pneg %p83
        %p298 = pneg %p80
        %p299 = pneg %p104
        %p300 = pneg %p101
        %p301 = pneg %p125
        %p302 = pneg %p122
        %p303 = pneg %p146
        %p304 = pneg %p143
        %p305 = pneg %p172
        %p306 = pneg %p169
        %s307 = sand.u32 %s159, 1
        %s308 = scalar_lea.sflag [#allocation15], %s307
        %s309 = sand.u32 %s159, 1
        %s310 = smul.addr %s309, 64
        %s311 = scalar_lea.vmem [#allocation14], %s310
        %s312 = smul.u32 8, %s25
        %p314 = scmp.eq.s32.totalorder %s25, 0
        // Predicated region
        $region61: #{tpu_custom_call.1} parent=39 // pred_check
          %p315 = pneg %p314
        $region62: #{tpu_custom_call.1} parent=39 // pred_check_branch
          %317 = sbr.rel (%p315) target = $region64
        $region63: #{tpu_custom_call.1} parent=39 // pred_region
          %v318 = vld [vmem:[#allocation4] sm:$0xf]
          %v319 = vld [vmem:[#allocation4 + $0x4] sm:$0xf]
          %v320 = vld [vmem:[#allocation4 + $0x8] sm:$0xf]
          %v321 = vld [vmem:[#allocation4 + $0xc] sm:$0xf]
          %v322 = vld [vmem:[#allocation4 + $0x10] sm:$0xf]
          %v323 = vld [vmem:[#allocation4 + $0x14] sm:$0xf]
          %v324 = vld [vmem:[#allocation4 + $0x18] sm:$0xf]
          %v325 = vld [vmem:[#allocation4 + $0x1c] sm:$0xf]
          %v326 = vld [vmem:[#allocation4 + $0x20] sm:$0xf]
          %v327 = vld [vmem:[#allocation4 + $0x24] sm:$0xf]
          %v328 = vld [vmem:[#allocation4 + $0x28] sm:$0xf]
          %v329 = vld [vmem:[#allocation4 + $0x2c] sm:$0xf]
          %v330 = vld [vmem:[#allocation4 + $0x30] sm:$0xf]
          %v331 = vld [vmem:[#allocation4 + $0x34] sm:$0xf]
          %v332 = vld [vmem:[#allocation4 + $0x38] sm:$0xf]
          %v333 = vld [vmem:[#allocation4 + $0x3c] sm:$0xf]
          %v334 = vld [vmem:[#allocation7] sm:$0xf]
          %v335 = vld [vmem:[#allocation7 + $0x4] sm:$0xf]
          %v336 = vld [vmem:[#allocation7 + $0x8] sm:$0xf]
          %v337 = vld [vmem:[#allocation7 + $0xc] sm:$0xf]
          %v338 = vld [vmem:[#allocation7 + $0x10] sm:$0xf]
          %v339 = vld [vmem:[#allocation7 + $0x14] sm:$0xf]
          %v340 = vld [vmem:[#allocation7 + $0x18] sm:$0xf]
          %v341 = vld [vmem:[#allocation7 + $0x1c] sm:$0xf]
          %v342 = vld [vmem:[#allocation7 + $0x20] sm:$0xf]
          %v343 = vld [vmem:[#allocation7 + $0x24] sm:$0xf]
          %v344 = vld [vmem:[#allocation7 + $0x28] sm:$0xf]
          %v345 = vld [vmem:[#allocation7 + $0x2c] sm:$0xf]
          %v346 = vld [vmem:[#allocation7 + $0x30] sm:$0xf]
          %v347 = vld [vmem:[#allocation7 + $0x34] sm:$0xf]
          %v348 = vld [vmem:[#allocation7 + $0x38] sm:$0xf]
          %v349 = vld [vmem:[#allocation7 + $0x3c] sm:$0xf]
          %v366 = vunpack.c.l.b16 %v318
          %v367 = vunpack.c.l.b16 %v319
          %v368 = vunpack.c.l.b16 %v320
          %v369 = vunpack.c.l.b16 %v321
          %v370 = vunpack.c.l.b16 %v322
          %v371 = vunpack.c.l.b16 %v323
          %v372 = vunpack.c.l.b16 %v324
          %v373 = vunpack.c.l.b16 %v325
          %v374 = vunpack.c.l.b16 %v326
          %v375 = vunpack.c.l.b16 %v327
          %v376 = vunpack.c.l.b16 %v328
          %v377 = vunpack.c.l.b16 %v329
          %v378 = vunpack.c.l.b16 %v330
          %v379 = vunpack.c.l.b16 %v331
          %v380 = vunpack.c.l.b16 %v332
          %v381 = vunpack.c.l.b16 %v333
          %v382 = vpack.c.b16 %v367, %v366
          %v383 = vpack.c.b16 %v369, %v368
          %v384 = vpack.c.b16 %v371, %v370
          %v385 = vpack.c.b16 %v373, %v372
          %v386 = vpack.c.b16 %v375, %v374
          %v387 = vpack.c.b16 %v377, %v376
          %v388 = vpack.c.b16 %v379, %v378
          %v389 = vpack.c.b16 %v381, %v380
          %v414 = vunpack.c.l.b16 %v334
          %v415 = vunpack.c.l.b16 %v335
          %v416 = vunpack.c.l.b16 %v336
          %v417 = vunpack.c.l.b16 %v337
          %v418 = vunpack.c.l.b16 %v338
          %v419 = vunpack.c.l.b16 %v339
          %v420 = vunpack.c.l.b16 %v340
          %v421 = vunpack.c.l.b16 %v341
          %v422 = vunpack.c.l.b16 %v342
          %v423 = vunpack.c.l.b16 %v343
          %v424 = vunpack.c.l.b16 %v344
          %v425 = vunpack.c.l.b16 %v345
          %v426 = vunpack.c.l.b16 %v346
          %v427 = vunpack.c.l.b16 %v347
          %v428 = vunpack.c.l.b16 %v348
          %v429 = vunpack.c.l.b16 %v349
          %v430 = vpack.c.b16 %v415, %v414
          %v431 = vpack.c.b16 %v417, %v416
          %v432 = vpack.c.b16 %v419, %v418
          %v433 = vpack.c.b16 %v421, %v420
          %v434 = vpack.c.b16 %v423, %v422
          %v435 = vpack.c.b16 %v425, %v424
          %v436 = vpack.c.b16 %v427, %v426
          %v437 = vpack.c.b16 %v429, %v428
          %446 = vmatpush.bf16.msra.mxu0 %v437
          %447 = vmatpush.bf16.msra.mxu0 %v436
          %448 = vmatpush.bf16.msra.mxu0 %v435
          %449 = vmatpush.bf16.msra.mxu0 %v434
          %450 = vmatpush.bf16.msra.mxu0 %v433
          %451 = vmatpush.bf16.msra.mxu0 %v432
          %452 = vmatpush.bf16.msra.mxu0 %v431
          %453 = vmatpush.bf16.msra.mxu0 %v430
          %454 = vmatmul.bf16.gmra.mxu0 %v382
          %v455 = vpop.f32.mrf.mxu0
          %v456 = vadd.f32 0.0, %v455
          %v457 = vpop.f32.mrf.mxu0
          %v458 = vadd.f32 0.0, %v457
          %459 = vmatmul.bf16.gmra.mxu0 %v383
          %v460 = vpop.f32.mrf.mxu0
          %v461 = vadd.f32 0.0, %v460
          %v462 = vpop.f32.mrf.mxu0
          %v463 = vadd.f32 0.0, %v462
          %464 = vmatmul.bf16.gmra.mxu0 %v384
          %v465 = vpop.f32.mrf.mxu0
          %v466 = vadd.f32 0.0, %v465
          %v467 = vpop.f32.mrf.mxu0
          %v468 = vadd.f32 0.0, %v467
          %469 = vmatmul.bf16.gmra.mxu0 %v385
          %v470 = vpop.f32.mrf.mxu0
          %v471 = vadd.f32 0.0, %v470
          %v472 = vpop.f32.mrf.mxu0
          %v473 = vadd.f32 0.0, %v472
          %474 = vmatmul.bf16.gmra.mxu0 %v386
          %v475 = vpop.f32.mrf.mxu0
          %v476 = vadd.f32 0.0, %v475
          %v477 = vpop.f32.mrf.mxu0
          %v478 = vadd.f32 0.0, %v477
          %479 = vmatmul.bf16.gmra.mxu0 %v387
          %v480 = vpop.f32.mrf.mxu0
          %v481 = vadd.f32 0.0, %v480
          %v482 = vpop.f32.mrf.mxu0
          %v483 = vadd.f32 0.0, %v482
          %484 = vmatmul.bf16.gmra.mxu0 %v388
          %v485 = vpop.f32.mrf.mxu0
          %v486 = vadd.f32 0.0, %v485
          %v487 = vpop.f32.mrf.mxu0
          %v488 = vadd.f32 0.0, %v487
          %489 = vmatmul.bf16.gmra.mxu0 %v389
          %v490 = vpop.f32.mrf.mxu0
          %v491 = vadd.f32 0.0, %v490
          %v492 = vpop.f32.mrf.mxu0
          %v493 = vadd.f32 0.0, %v492
          %494 = vdwg.mxu0
          %v495 = vpack.c.bf16 %v456, %v456
          %v496 = vpack.c.bf16 %v458, %v458
          %v497 = vpack.c.bf16 %v461, %v461
          %v498 = vpack.c.bf16 %v463, %v463
          %v499 = vpack.c.bf16 %v466, %v466
          %v500 = vpack.c.bf16 %v468, %v468
          %v501 = vpack.c.bf16 %v471, %v471
          %v502 = vpack.c.bf16 %v473, %v473
          %v503 = vpack.c.bf16 %v476, %v476
          %v504 = vpack.c.bf16 %v478, %v478
          %v505 = vpack.c.bf16 %v481, %v481
          %v506 = vpack.c.bf16 %v483, %v483
          %v507 = vpack.c.bf16 %v486, %v486
          %v508 = vpack.c.bf16 %v488, %v488
          %v509 = vpack.c.bf16 %v491, %v491
          %v510 = vpack.c.bf16 %v493, %v493
          %511 = vst [vmem:[#allocation2] sm:$0xf] %v495
          %512 = vst [vmem:[#allocation2 + $0x4] sm:$0xf] %v496
          %513 = vst [vmem:[#allocation2 + $0x8] sm:$0xf] %v497
          %514 = vst [vmem:[#allocation2 + $0xc] sm:$0xf] %v498
          %515 = vst [vmem:[#allocation2 + $0x10] sm:$0xf] %v499
          %516 = vst [vmem:[#allocation2 + $0x14] sm:$0xf] %v500
          %517 = vst [vmem:[#allocation2 + $0x18] sm:$0xf] %v501
          %518 = vst [vmem:[#allocation2 + $0x1c] sm:$0xf] %v502
          %519 = vst [vmem:[#allocation2 + $0x20] sm:$0xf] %v503
          %520 = vst [vmem:[#allocation2 + $0x24] sm:$0xf] %v504
          %521 = vst [vmem:[#allocation2 + $0x28] sm:$0xf] %v505
          %522 = vst [vmem:[#allocation2 + $0x2c] sm:$0xf] %v506
          %523 = vst [vmem:[#allocation2 + $0x30] sm:$0xf] %v507
          %524 = vst [vmem:[#allocation2 + $0x34] sm:$0xf] %v508
          %525 = vst [vmem:[#allocation2 + $0x38] sm:$0xf] %v509
          %526 = vst [vmem:[#allocation2 + $0x3c] sm:$0xf] %v510
          %527 = vst [vmem:[#allocation3] sm:$0xff] 0.0
          %528 = vst [vmem:[#allocation3 + $0x8] sm:$0xff] 0.0
          %529 = vst [vmem:[#allocation3 + $0x10] sm:$0xff] 0.0
          %530 = vst [vmem:[#allocation3 + $0x18] sm:$0xff] 0.0
          %531 = vst [vmem:[#allocation3 + $0x20] sm:$0xff] 0.0
          %532 = vst [vmem:[#allocation3 + $0x28] sm:$0xff] 0.0
          %533 = vst [vmem:[#allocation3 + $0x30] sm:$0xff] 0.0
          %534 = vst [vmem:[#allocation3 + $0x38] sm:$0xff] 0.0
          %535 = vst [vmem:[#allocation3 + $0x40] sm:$0xff] 0.0
          %536 = vst [vmem:[#allocation3 + $0x48] sm:$0xff] 0.0
          %537 = vst [vmem:[#allocation3 + $0x50] sm:$0xff] 0.0
          %538 = vst [vmem:[#allocation3 + $0x58] sm:$0xff] 0.0
          %539 = vst [vmem:[#allocation3 + $0x60] sm:$0xff] 0.0
          %540 = vst [vmem:[#allocation3 + $0x68] sm:$0xff] 0.0
          %541 = vst [vmem:[#allocation3 + $0x70] sm:$0xff] 0.0
          %542 = vst [vmem:[#allocation3 + $0x78] sm:$0xff] 0.0
        $region64: #{tpu_custom_call.1} parent=39 // pred_fallthru
          _
        %s543 = smul.u32 %s25, 64
        %s544 = sshra.s32 %s543, 3
        %s545 = sand.u32 %s543, 7
        %s546 = smul.addr %s544, 4
        %s547 = scalar_lea.vmem [#allocation4], %s546
        %v548 = vld [vmem:[%s547] sm:$0xf]
        %v549 = vld [vmem:[%s547 + $0x4] sm:$0xf]
        %v550 = vld [vmem:[%s547 + $0x8] sm:$0xf]
        %v551 = vld [vmem:[%s547 + $0xc] sm:$0xf]
        %v552 = vld [vmem:[%s547 + $0x10] sm:$0xf]
        %v553 = vld [vmem:[%s547 + $0x14] sm:$0xf]
        %v554 = vld [vmem:[%s547 + $0x18] sm:$0xf]
        %v555 = vld [vmem:[%s547 + $0x1c] sm:$0xf]
        %v556 = vld [vmem:[#allocation9] sm:$0xf]
        %v557 = vld [vmem:[#allocation9 + $0x4] sm:$0xf]
        %v558 = vld [vmem:[#allocation9 + $0x8] sm:$0xf]
        %v559 = vld [vmem:[#allocation9 + $0xc] sm:$0xf]
        %v560 = vld [vmem:[#allocation9 + $0x10] sm:$0xf]
        %v561 = vld [vmem:[#allocation9 + $0x14] sm:$0xf]
        %v562 = vld [vmem:[#allocation9 + $0x18] sm:$0xf]
        %v563 = vld [vmem:[#allocation9 + $0x1c] sm:$0xf]
        %v564 = vld [vmem:[#allocation9 + $0x20] sm:$0xf]
        %v565 = vld [vmem:[#allocation9 + $0x24] sm:$0xf]
        %v566 = vld [vmem:[#allocation9 + $0x28] sm:$0xf]
        %v567 = vld [vmem:[#allocation9 + $0x2c] sm:$0xf]
        %v568 = vld [vmem:[#allocation9 + $0x30] sm:$0xf]
        %v569 = vld [vmem:[#allocation9 + $0x34] sm:$0xf]
        %v570 = vld [vmem:[#allocation9 + $0x38] sm:$0xf]
        %v571 = vld [vmem:[#allocation9 + $0x3c] sm:$0xf]
        %v580 = vunpack.c.l.b16 %v548
        %v581 = vunpack.c.l.b16 %v549
        %v582 = vunpack.c.l.b16 %v550
        %v583 = vunpack.c.l.b16 %v551
        %v584 = vunpack.c.l.b16 %v552
        %v585 = vunpack.c.l.b16 %v553
        %v586 = vunpack.c.l.b16 %v554
        %v587 = vunpack.c.l.b16 %v555
        %v588 = vpack.c.b16 %v581, %v580
        %v589 = vpack.c.b16 %v583, %v582
        %v590 = vpack.c.b16 %v585, %v584
        %v591 = vpack.c.b16 %v587, %v586
        %v612 = vunpack.c.l.b16 %v556
        %v613 = vunpack.c.l.b16 %v557
        %v614 = vunpack.c.l.b16 %v558
        %v615 = vunpack.c.l.b16 %v559
        %v616 = vunpack.c.l.b16 %v560
        %v617 = vunpack.c.l.b16 %v561
        %v618 = vunpack.c.l.b16 %v562
        %v619 = vunpack.c.l.b16 %v563
        %v620 = vunpack.c.l.b16 %v564
        %v621 = vunpack.c.l.b16 %v565
        %v622 = vunpack.c.l.b16 %v566
        %v623 = vunpack.c.l.b16 %v567
        %v624 = vunpack.c.l.b16 %v568
        %v625 = vunpack.c.l.b16 %v569
        %v626 = vunpack.c.l.b16 %v570
        %v627 = vunpack.c.l.b16 %v571
        %v628 = vpack.c.b16 %v613, %v612
        %v629 = vpack.c.b16 %v615, %v614
        %v630 = vpack.c.b16 %v617, %v616
        %v631 = vpack.c.b16 %v619, %v618
        %v632 = vpack.c.b16 %v621, %v620
        %v633 = vpack.c.b16 %v623, %v622
        %v634 = vpack.c.b16 %v625, %v624
        %v635 = vpack.c.b16 %v627, %v626
        %644 = vmatpush.bf16.msra.mxu0 %v635
        %645 = vmatpush.bf16.msra.mxu0 %v634
        %646 = vmatpush.bf16.msra.mxu0 %v633
        %647 = vmatpush.bf16.msra.mxu0 %v632
        %648 = vmatpush.bf16.msra.mxu0 %v631
        %649 = vmatpush.bf16.msra.mxu0 %v630
        %650 = vmatpush.bf16.msra.mxu0 %v629
        %651 = vmatpush.bf16.msra.mxu0 %v628
        %652 = vmatmul.bf16.gmra.mxu0 %v588
        %v653 = vpop.f32.mrf.mxu0
        %v654 = vadd.f32 0.0, %v653
        %v655 = vpop.f32.mrf.mxu0
        %v656 = vadd.f32 0.0, %v655
        %657 = vmatmul.bf16.gmra.mxu0 %v589
        %v658 = vpop.f32.mrf.mxu0
        %v659 = vadd.f32 0.0, %v658
        %v660 = vpop.f32.mrf.mxu0
        %v661 = vadd.f32 0.0, %v660
        %662 = vmatmul.bf16.gmra.mxu0 %v590
        %v663 = vpop.f32.mrf.mxu0
        %v664 = vadd.f32 0.0, %v663
        %v665 = vpop.f32.mrf.mxu0
        %v666 = vadd.f32 0.0, %v665
        %667 = vmatmul.bf16.gmra.mxu0 %v591
        %v668 = vpop.f32.mrf.mxu0
        %v669 = vadd.f32 0.0, %v668
        %v670 = vpop.f32.mrf.mxu0
        %v671 = vadd.f32 0.0, %v670
        %672 = vdwg.mxu0
        %v673 = vld [vmem:[#allocation10] sm:$0xf]
        %v674 = vld [vmem:[#allocation10 + $0x4] sm:$0xf]
        %v675 = vld [vmem:[#allocation10 + $0x8] sm:$0xf]
        %v676 = vld [vmem:[#allocation10 + $0xc] sm:$0xf]
        %v677 = vld [vmem:[#allocation10 + $0x10] sm:$0xf]
        %v678 = vld [vmem:[#allocation10 + $0x14] sm:$0xf]
        %v679 = vld [vmem:[#allocation10 + $0x18] sm:$0xf]
        %v680 = vld [vmem:[#allocation10 + $0x1c] sm:$0xf]
        %v681 = vld [vmem:[#allocation10 + $0x20] sm:$0xf]
        %v682 = vld [vmem:[#allocation10 + $0x24] sm:$0xf]
        %v683 = vld [vmem:[#allocation10 + $0x28] sm:$0xf]
        %v684 = vld [vmem:[#allocation10 + $0x2c] sm:$0xf]
        %v685 = vld [vmem:[#allocation10 + $0x30] sm:$0xf]
        %v686 = vld [vmem:[#allocation10 + $0x34] sm:$0xf]
        %v687 = vld [vmem:[#allocation10 + $0x38] sm:$0xf]
        %v688 = vld [vmem:[#allocation10 + $0x3c] sm:$0xf]
        %v705 = vunpack.c.l.b16 %v673
        %v706 = vunpack.c.l.b16 %v674
        %v707 = vunpack.c.l.b16 %v675
        %v708 = vunpack.c.l.b16 %v676
        %v709 = vunpack.c.l.b16 %v677
        %v710 = vunpack.c.l.b16 %v678
        %v711 = vunpack.c.l.b16 %v679
        %v712 = vunpack.c.l.b16 %v680
        %v713 = vunpack.c.l.b16 %v681
        %v714 = vunpack.c.l.b16 %v682
        %v715 = vunpack.c.l.b16 %v683
        %v716 = vunpack.c.l.b16 %v684
        %v717 = vunpack.c.l.b16 %v685
        %v718 = vunpack.c.l.b16 %v686
        %v719 = vunpack.c.l.b16 %v687
        %v720 = vunpack.c.l.b16 %v688
        %v721 = vpack.c.b16 %v706, %v705
        %v722 = vpack.c.b16 %v708, %v707
        %v723 = vpack.c.b16 %v710, %v709
        %v724 = vpack.c.b16 %v712, %v711
        %v725 = vpack.c.b16 %v714, %v713
        %v726 = vpack.c.b16 %v716, %v715
        %v727 = vpack.c.b16 %v718, %v717
        %v728 = vpack.c.b16 %v720, %v719
        %737 = vmatpush.bf16.xpose.msra.mxu0 0
        %738 = vmatpush.bf16.xpose.msra.mxu0 0
        %739 = vmatpush.bf16.xpose.msra.mxu0 0
        %740 = vmatpush.bf16.xpose.msra.mxu0 0
        %741 = vmatpush.bf16.xpose.msra.mxu0 %v591
        %742 = vmatpush.bf16.xpose.msra.mxu0 %v590
        %743 = vmatpush.bf16.xpose.msra.mxu0 %v589
        %744 = vmatpush.bf16.xpose.msra.mxu0 %v588
        %745 = vmatmul.bf16.gmra.mxu0 %v721
        %v746 = vpop.f32.mrf.mxu0
        %v747 = vadd.f32 0.0, %v746
        %v748 = vpop.f32.mrf.mxu0
        %v749 = vadd.f32 0.0, %v748
        %750 = vmatmul.bf16.gmra.mxu0 %v722
        %v751 = vpop.f32.mrf.mxu0
        %v752 = vadd.f32 0.0, %v751
        %v753 = vpop.f32.mrf.mxu0
        %v754 = vadd.f32 0.0, %v753
        %755 = vmatmul.bf16.gmra.mxu0 %v723
        %v756 = vpop.f32.mrf.mxu0
        %v757 = vadd.f32 0.0, %v756
        %v758 = vpop.f32.mrf.mxu0
        %v759 = vadd.f32 0.0, %v758
        %760 = vmatmul.bf16.gmra.mxu0 %v724
        %v761 = vpop.f32.mrf.mxu0
        %v762 = vadd.f32 0.0, %v761
        %v763 = vpop.f32.mrf.mxu0
        %v764 = vadd.f32 0.0, %v763
        %765 = vmatmul.bf16.gmra.mxu0 %v725
        %v766 = vpop.f32.mrf.mxu0
        %v767 = vadd.f32 0.0, %v766
        %v768 = vpop.f32.mrf.mxu0
        %v769 = vadd.f32 0.0, %v768
        %770 = vmatmul.bf16.gmra.mxu0 %v726
        %v771 = vpop.f32.mrf.mxu0
        %v772 = vadd.f32 0.0, %v771
        %v773 = vpop.f32.mrf.mxu0
        %v774 = vadd.f32 0.0, %v773
        %775 = vmatmul.bf16.gmra.mxu0 %v727
        %v776 = vpop.f32.mrf.mxu0
        %v777 = vadd.f32 0.0, %v776
        %v778 = vpop.f32.mrf.mxu0
        %v779 = vadd.f32 0.0, %v778
        %780 = vmatmul.bf16.gmra.mxu0 %v728
        %v781 = vpop.f32.mrf.mxu0
        %v782 = vadd.f32 0.0, %v781
        %v783 = vpop.f32.mrf.mxu0
        %v784 = vadd.f32 0.0, %v783
        %785 = vdwg.mxu0
        %v786 = vpack.c.bf16 %v656, %v654
        %v787 = vpack.c.bf16 %v661, %v659
        %v788 = vpack.c.bf16 %v666, %v664
        %v789 = vpack.c.bf16 %v671, %v669
        %v790 = vld [vmem:[#allocation2] sm:$0xf]
        %v791 = vld [vmem:[#allocation2 + $0x4] sm:$0xf]
        %v792 = vld [vmem:[#allocation2 + $0x8] sm:$0xf]
        %v793 = vld [vmem:[#allocation2 + $0xc] sm:$0xf]
        %v794 = vld [vmem:[#allocation2 + $0x10] sm:$0xf]
        %v795 = vld [vmem:[#allocation2 + $0x14] sm:$0xf]
        %v796 = vld [vmem:[#allocation2 + $0x18] sm:$0xf]
        %v797 = vld [vmem:[#allocation2 + $0x1c] sm:$0xf]
        %v798 = vld [vmem:[#allocation2 + $0x20] sm:$0xf]
        %v799 = vld [vmem:[#allocation2 + $0x24] sm:$0xf]
        %v800 = vld [vmem:[#allocation2 + $0x28] sm:$0xf]
        %v801 = vld [vmem:[#allocation2 + $0x2c] sm:$0xf]
        %v802 = vld [vmem:[#allocation2 + $0x30] sm:$0xf]
        %v803 = vld [vmem:[#allocation2 + $0x34] sm:$0xf]
        %v804 = vld [vmem:[#allocation2 + $0x38] sm:$0xf]
        %v805 = vld [vmem:[#allocation2 + $0x3c] sm:$0xf]
        %v822 = vunpack.c.l.b16 %v790
        %v823 = vunpack.c.l.b16 %v791
        %v824 = vunpack.c.l.b16 %v792
        %v825 = vunpack.c.l.b16 %v793
        %v826 = vunpack.c.l.b16 %v794
        %v827 = vunpack.c.l.b16 %v795
        %v828 = vunpack.c.l.b16 %v796
        %v829 = vunpack.c.l.b16 %v797
        %v830 = vunpack.c.l.b16 %v798
        %v831 = vunpack.c.l.b16 %v799
        %v832 = vunpack.c.l.b16 %v800
        %v833 = vunpack.c.l.b16 %v801
        %v834 = vunpack.c.l.b16 %v802
        %v835 = vunpack.c.l.b16 %v803
        %v836 = vunpack.c.l.b16 %v804
        %v837 = vunpack.c.l.b16 %v805
        %v838 = vpack.c.b16 %v823, %v822
        %v839 = vpack.c.b16 %v825, %v824
        %v840 = vpack.c.b16 %v827, %v826
        %v841 = vpack.c.b16 %v829, %v828
        %v842 = vpack.c.b16 %v831, %v830
        %v843 = vpack.c.b16 %v833, %v832
        %v844 = vpack.c.b16 %v835, %v834
        %v845 = vpack.c.b16 %v837, %v836
        %854 = vmatpush.bf16.xpose.msra.mxu0 %v845
        %855 = vmatpush.bf16.xpose.msra.mxu0 %v844
        %856 = vmatpush.bf16.xpose.msra.mxu0 %v843
        %857 = vmatpush.bf16.xpose.msra.mxu0 %v842
        %858 = vmatpush.bf16.xpose.msra.mxu0 %v841
        %859 = vmatpush.bf16.xpose.msra.mxu0 %v840
        %860 = vmatpush.bf16.xpose.msra.mxu0 %v839
        %861 = vmatpush.bf16.xpose.msra.mxu0 %v838
        %862 = vmatmul.bf16.gmra.mxu0 %v786
        %v863 = vpop.f32.mrf.mxu0
        %v864 = vadd.f32 0.0, %v863
        %v865 = vpop.f32.mrf.mxu0
        %v866 = vadd.f32 0.0, %v865
        %867 = vmatmul.bf16.gmra.mxu0 %v787
        %v868 = vpop.f32.mrf.mxu0
        %v869 = vadd.f32 0.0, %v868
        %v870 = vpop.f32.mrf.mxu0
        %v871 = vadd.f32 0.0, %v870
        %872 = vmatmul.bf16.gmra.mxu0 %v788
        %v873 = vpop.f32.mrf.mxu0
        %v874 = vadd.f32 0.0, %v873
        %v875 = vpop.f32.mrf.mxu0
        %v876 = vadd.f32 0.0, %v875
        %877 = vmatmul.bf16.gmra.mxu0 %v789
        %v878 = vpop.f32.mrf.mxu0
        %v879 = vadd.f32 0.0, %v878
        %v880 = vpop.f32.mrf.mxu0
        %v881 = vadd.f32 0.0, %v880
        %882 = vdwg.mxu0
        %v883 = vlaneseq
        %v884 = vshrl.u32 %v883, 7
        %v885 = vadd.s32 %v884, 8
        %v886 = vadd.s32 %v884, 16
        %v887 = vadd.s32 %v884, 24
        %v888 = vadd.s32 %v884, 32
        %v889 = vadd.s32 %v884, 40
        %v890 = vadd.s32 %v884, 48
        %v891 = vadd.s32 %v884, 56
        %v892 = vstv %s543
        %v893 = vadd.s32 %v884, %v892
        %v894 = vadd.s32 %v885, %v892
        %v895 = vadd.s32 %v886, %v892
        %v896 = vadd.s32 %v887, %v892
        %v897 = vadd.s32 %v888, %v892
        %v898 = vadd.s32 %v889, %v892
        %v899 = vadd.s32 %v890, %v892
        %v900 = vadd.s32 %v891, %v892
        %v901 = vlaneseq
        %v902 = vand.u32 %v901, 127
        %v903 = vsub.s32 %v893, %v902
        %v904 = vsub.s32 %v894, %v902
        %v905 = vsub.s32 %v895, %v902
        %v906 = vsub.s32 %v896, %v902
        %v907 = vsub.s32 %v897, %v902
        %v908 = vsub.s32 %v898, %v902
        %v909 = vsub.s32 %v899, %v902
        %v910 = vsub.s32 %v900, %v902
        %vm911 = vcmp.lt.s32.totalorder %v903, 0
        %v912 = vsub.s32 0, %v903
        %v913 = vsel %vm911, %v912, %v903
        %vm914 = vcmp.lt.s32.totalorder %v904, 0
        %v915 = vsub.s32 0, %v904
        %v916 = vsel %vm914, %v915, %v904
        %vm917 = vcmp.lt.s32.totalorder %v905, 0
        %v918 = vsub.s32 0, %v905
        %v919 = vsel %vm917, %v918, %v905
        %vm920 = vcmp.lt.s32.totalorder %v906, 0
        %v921 = vsub.s32 0, %v906
        %v922 = vsel %vm920, %v921, %v906
        %vm923 = vcmp.lt.s32.totalorder %v907, 0
        %v924 = vsub.s32 0, %v907
        %v925 = vsel %vm923, %v924, %v907
        %vm926 = vcmp.lt.s32.totalorder %v908, 0
        %v927 = vsub.s32 0, %v908
        %v928 = vsel %vm926, %v927, %v908
        %vm929 = vcmp.lt.s32.totalorder %v909, 0
        %v930 = vsub.s32 0, %v909
        %v931 = vsel %vm929, %v930, %v909
        %vm932 = vcmp.lt.s32.totalorder %v910, 0
        %v933 = vsub.s32 0, %v910
        %v934 = vsel %vm932, %v933, %v910
        %vm935 = vcmp.ge.s32.totalorder %v913, 20
        %vm936 = vcmp.ge.s32.totalorder %v916, 20
        %vm937 = vcmp.ge.s32.totalorder %v919, 20
        %vm938 = vcmp.ge.s32.totalorder %v922, 20
        %vm939 = vcmp.ge.s32.totalorder %v925, 20
        %vm940 = vcmp.ge.s32.totalorder %v928, 20
        %vm941 = vcmp.ge.s32.totalorder %v931, 20
        %vm942 = vcmp.ge.s32.totalorder %v934, 20
        %v943 = vsel %vm935, -1e+30, %v864
        %v944 = vsel %vm936, -1e+30, %v866
        %v945 = vsel %vm937, -1e+30, %v869
        %v946 = vsel %vm938, -1e+30, %v871
        %v947 = vsel %vm939, -1e+30, %v874
        %v948 = vsel %vm940, -1e+30, %v876
        %v949 = vsel %vm941, -1e+30, %v879
        %v950 = vsel %vm942, -1e+30, %v881
        %951 = vmax.xlane.f32.xlu0 %v943
        %v952 = vpop.xlane.xlu0 %951
        %953 = vmax.xlane.f32.xlu0 %v944
        %v954 = vpop.xlane.xlu0 %953
        %955 = vmax.xlane.f32.xlu0 %v945
        %v956 = vpop.xlane.xlu0 %955
        %957 = vmax.xlane.f32.xlu0 %v946
        %v958 = vpop.xlane.xlu0 %957
        %959 = vmax.xlane.f32.xlu0 %v947
        %v960 = vpop.xlane.xlu0 %959
        %961 = vmax.xlane.f32.xlu0 %v948
        %v962 = vpop.xlane.xlu0 %961
        %963 = vmax.xlane.f32.xlu0 %v949
        %v964 = vpop.xlane.xlu0 %963
        %965 = vmax.xlane.f32.xlu0 %v950
        %v966 = vpop.xlane.xlu0 %965
        %v967 = vsub.f32 %v943, %v952
        %v968 = vsub.f32 %v944, %v954
        %v969 = vsub.f32 %v945, %v956
        %v970 = vsub.f32 %v946, %v958
        %v971 = vsub.f32 %v947, %v960
        %v972 = vsub.f32 %v948, %v962
        %v973 = vsub.f32 %v949, %v964
        %v974 = vsub.f32 %v950, %v966
        %v975 = vmul.f32 %v967, 1.442695
        %v976 = vpow.pop %v975
        %v977 = vmul.f32 %v968, 1.442695
        %v978 = vpow.pop %v977
        %v979 = vmul.f32 %v969, 1.442695
        %v980 = vpow.pop %v979
        %v981 = vmul.f32 %v970, 1.442695
        %v982 = vpow.pop %v981
        %v983 = vmul.f32 %v971, 1.442695
        %v984 = vpow.pop %v983
        %v985 = vmul.f32 %v972, 1.442695
        %v986 = vpow.pop %v985
        %v987 = vmul.f32 %v973, 1.442695
        %v988 = vpow.pop %v987
        %v989 = vmul.f32 %v974, 1.442695
        %v990 = vpow.pop %v989
        %991 = vadd.xlane.f32.xlu0 %v976
        %v992 = vpop.xlane.xlu0 %991
        %993 = vadd.xlane.f32.xlu0 %v978
        %v994 = vpop.xlane.xlu0 %993
        %995 = vadd.xlane.f32.xlu0 %v980
        %v996 = vpop.xlane.xlu0 %995
        %997 = vadd.xlane.f32.xlu0 %v982
        %v998 = vpop.xlane.xlu0 %997
        %999 = vadd.xlane.f32.xlu0 %v984
        %v1000 = vpop.xlane.xlu0 %999
        %1001 = vadd.xlane.f32.xlu0 %v986
        %v1002 = vpop.xlane.xlu0 %1001
        %1003 = vadd.xlane.f32.xlu0 %v988
        %v1004 = vpop.xlane.xlu0 %1003
        %1005 = vadd.xlane.f32.xlu0 %v990
        %v1006 = vpop.xlane.xlu0 %1005
        %v1007 = vrcp.pop %v992
        %v1008 = vmul.f32 %v992, %v1007
        %v1009 = vsub.f32 1.0, %v1008
        %v1010 = vmul.f32 %v1007, %v1009
        %v1011 = vadd.f32 %v1007, %v1010
        %vm1012 = vweird.f32 %v992
        %vm1013 = vweird.f32 %v1007
        %vm1014 = vmor %vm1012, %vm1013
        %v1015 = vsel %vm1014, %v1007, %v1011
        %v1016 = vand.u32 2147483647, %v992
        %vm1017 = vcmp.eq.f32.partialorder %v1016, 8.507059e+37
        %v1018 = vand.u32 %v992, 2147483648
        %v1019 = vor.u32 1.1754944e-38, %v1018
        %v1020 = vsel %vm1017, %v1019, %v1015
        %v1021 = vrcp.pop %v994
        %v1022 = vmul.f32 %v994, %v1021
        %v1023 = vsub.f32 1.0, %v1022
        %v1024 = vmul.f32 %v1021, %v1023
        %v1025 = vadd.f32 %v1021, %v1024
        %vm1026 = vweird.f32 %v994
        %vm1027 = vweird.f32 %v1021
        %vm1028 = vmor %vm1026, %vm1027
        %v1029 = vsel %vm1028, %v1021, %v1025
        %v1030 = vand.u32 2147483647, %v994
        %vm1031 = vcmp.eq.f32.partialorder %v1030, 8.507059e+37
        %v1032 = vand.u32 %v994, 2147483648
        %v1033 = vor.u32 1.1754944e-38, %v1032
        %v1034 = vsel %vm1031, %v1033, %v1029
        %v1035 = vrcp.pop %v996
        %v1036 = vmul.f32 %v996, %v1035
        %v1037 = vsub.f32 1.0, %v1036
        %v1038 = vmul.f32 %v1035, %v1037
        %v1039 = vadd.f32 %v1035, %v1038
        %vm1040 = vweird.f32 %v996
        %vm1041 = vweird.f32 %v1035
        %vm1042 = vmor %vm1040, %vm1041
        %v1043 = vsel %vm1042, %v1035, %v1039
        %v1044 = vand.u32 2147483647, %v996
        %vm1045 = vcmp.eq.f32.partialorder %v1044, 8.507059e+37
        %v1046 = vand.u32 %v996, 2147483648
        %v1047 = vor.u32 1.1754944e-38, %v1046
        %v1048 = vsel %vm1045, %v1047, %v1043
        %v1049 = vrcp.pop %v998
        %v1050 = vmul.f32 %v998, %v1049
        %v1051 = vsub.f32 1.0, %v1050
        %v1052 = vmul.f32 %v1049, %v1051
        %v1053 = vadd.f32 %v1049, %v1052
        %vm1054 = vweird.f32 %v998
        %vm1055 = vweird.f32 %v1049
        %vm1056 = vmor %vm1054, %vm1055
        %v1057 = vsel %vm1056, %v1049, %v1053
        %v1058 = vand.u32 2147483647, %v998
        %vm1059 = vcmp.eq.f32.partialorder %v1058, 8.507059e+37
        %v1060 = vand.u32 %v998, 2147483648
        %v1061 = vor.u32 1.1754944e-38, %v1060
        %v1062 = vsel %vm1059, %v1061, %v1057
        %v1063 = vrcp.pop %v1000
        %v1064 = vmul.f32 %v1000, %v1063
        %v1065 = vsub.f32 1.0, %v1064
        %v1066 = vmul.f32 %v1063, %v1065
        %v1067 = vadd.f32 %v1063, %v1066
        %vm1068 = vweird.f32 %v1000
        %vm1069 = vweird.f32 %v1063
        %vm1070 = vmor %vm1068, %vm1069
        %v1071 = vsel %vm1070, %v1063, %v1067
        %v1072 = vand.u32 2147483647, %v1000
        %vm1073 = vcmp.eq.f32.partialorder %v1072, 8.507059e+37
        %v1074 = vand.u32 %v1000, 2147483648
        %v1075 = vor.u32 1.1754944e-38, %v1074
        %v1076 = vsel %vm1073, %v1075, %v1071
        %v1077 = vrcp.pop %v1002
        %v1078 = vmul.f32 %v1002, %v1077
        %v1079 = vsub.f32 1.0, %v1078
        %v1080 = vmul.f32 %v1077, %v1079
        %v1081 = vadd.f32 %v1077, %v1080
        %vm1082 = vweird.f32 %v1002
        %vm1083 = vweird.f32 %v1077
        %vm1084 = vmor %vm1082, %vm1083
        %v1085 = vsel %vm1084, %v1077, %v1081
        %v1086 = vand.u32 2147483647, %v1002
        %vm1087 = vcmp.eq.f32.partialorder %v1086, 8.507059e+37
        %v1088 = vand.u32 %v1002, 2147483648
        %v1089 = vor.u32 1.1754944e-38, %v1088
        %v1090 = vsel %vm1087, %v1089, %v1085
        %v1091 = vrcp.pop %v1004
        %v1092 = vmul.f32 %v1004, %v1091
        %v1093 = vsub.f32 1.0, %v1092
        %v1094 = vmul.f32 %v1091, %v1093
        %v1095 = vadd.f32 %v1091, %v1094
        %vm1096 = vweird.f32 %v1004
        %vm1097 = vweird.f32 %v1091
        %vm1098 = vmor %vm1096, %vm1097
        %v1099 = vsel %vm1098, %v1091, %v1095
        %v1100 = vand.u32 2147483647, %v1004
        %vm1101 = vcmp.eq.f32.partialorder %v1100, 8.507059e+37
        %v1102 = vand.u32 %v1004, 2147483648
        %v1103 = vor.u32 1.1754944e-38, %v1102
        %v1104 = vsel %vm1101, %v1103, %v1099
        %v1105 = vrcp.pop %v1006
        %v1106 = vmul.f32 %v1006, %v1105
        %v1107 = vsub.f32 1.0, %v1106
        %v1108 = vmul.f32 %v1105, %v1107
        %v1109 = vadd.f32 %v1105, %v1108
        %vm1110 = vweird.f32 %v1006
        %vm1111 = vweird.f32 %v1105
        %vm1112 = vmor %vm1110, %vm1111
        %v1113 = vsel %vm1112, %v1105, %v1109
        %v1114 = vand.u32 2147483647, %v1006
        %vm1115 = vcmp.eq.f32.partialorder %v1114, 8.507059e+37
        %v1116 = vand.u32 %v1006, 2147483648
        %v1117 = vor.u32 1.1754944e-38, %v1116
        %v1118 = vsel %vm1115, %v1117, %v1113
        %v1119 = vmul.f32 %v976, %v1020
        %v1120 = vmul.f32 %v978, %v1034
        %v1121 = vmul.f32 %v980, %v1048
        %v1122 = vmul.f32 %v982, %v1062
        %v1123 = vmul.f32 %v984, %v1076
        %v1124 = vmul.f32 %v986, %v1090
        %v1125 = vmul.f32 %v988, %v1104
        %v1126 = vmul.f32 %v990, %v1118
        %1127 = vst [vmem:[%s311] sm:$0xff] %v1119
        %1128 = vst [vmem:[%s311 + $0x8] sm:$0xff] %v1120
        %1129 = vst [vmem:[%s311 + $0x10] sm:$0xff] %v1121
        %1130 = vst [vmem:[%s311 + $0x18] sm:$0xff] %v1122
        %1131 = vst [vmem:[%s311 + $0x20] sm:$0xff] %v1123
        %1132 = vst [vmem:[%s311 + $0x28] sm:$0xff] %v1124
        %1133 = vst [vmem:[%s311 + $0x30] sm:$0xff] %v1125
        %1134 = vst [vmem:[%s311 + $0x38] sm:$0xff] %v1126
        %v1135 = vld [vmem:[#allocation3] sm:$0xff]
        %v1136 = vld [vmem:[#allocation3 + $0x8] sm:$0xff]
        %v1137 = vld [vmem:[#allocation3 + $0x10] sm:$0xff]
        %v1138 = vld [vmem:[#allocation3 + $0x18] sm:$0xff]
        %v1139 = vld [vmem:[#allocation3 + $0x20] sm:$0xff]
        %v1140 = vld [vmem:[#allocation3 + $0x28] sm:$0xff]
        %v1141 = vld [vmem:[#allocation3 + $0x30] sm:$0xff]
        %v1142 = vld [vmem:[#allocation3 + $0x38] sm:$0xff]
        %v1143 = vld [vmem:[#allocation3 + $0x40] sm:$0xff]
        %v1144 = vld [vmem:[#allocation3 + $0x48] sm:$0xff]
        %v1145 = vld [vmem:[#allocation3 + $0x50] sm:$0xff]
        %v1146 = vld [vmem:[#allocation3 + $0x58] sm:$0xff]
        %v1147 = vld [vmem:[#allocation3 + $0x60] sm:$0xff]
        %v1148 = vld [vmem:[#allocation3 + $0x68] sm:$0xff]
        %v1149 = vld [vmem:[#allocation3 + $0x70] sm:$0xff]
        %v1150 = vld [vmem:[#allocation3 + $0x78] sm:$0xff]
        %v1151 = vpack.c.bf16 %v749, %v747
        %v1152 = vpack.c.bf16 %v754, %v752
        %v1153 = vpack.c.bf16 %v759, %v757
        %v1154 = vpack.c.bf16 %v764, %v762
        %v1155 = vpack.c.bf16 %v769, %v767
        %v1156 = vpack.c.bf16 %v774, %v772
        %v1157 = vpack.c.bf16 %v779, %v777
        %v1158 = vpack.c.bf16 %v784, %v782
        %v1159 = vpack.c.bf16 %v1120, %v1119
        %v1160 = vpack.c.bf16 %v1122, %v1121
        %v1161 = vpack.c.bf16 %v1124, %v1123
        %v1162 = vpack.c.bf16 %v1126, %v1125
        %vm1163 = vcmask 523264
        %v1165 = vsel %vm1163, %v1151, 0
        %v1168 = vsel %vm1163, %v1152, 0
        %v1171 = vsel %vm1163, %v1153, 0
        %v1174 = vsel %vm1163, %v1154, 0
        %v1177 = vsel %vm1163, %v1155, 0
        %v1180 = vsel %vm1163, %v1156, 0
        %v1183 = vsel %vm1163, %v1157, 0
        %v1186 = vsel %vm1163, %v1158, 0
        %1188 = vmatpush.bf16.msra.mxu0 0
        %1189 = vmatpush.bf16.msra.mxu0 0
        %1190 = vmatpush.bf16.msra.mxu0 0
        %1191 = vmatpush.bf16.msra.mxu0 0
        %1192 = vmatpush.bf16.msra.mxu0 %v1162
        %1193 = vmatpush.bf16.msra.mxu0 %v1161
        %1194 = vmatpush.bf16.msra.mxu0 %v1160
        %1195 = vmatpush.bf16.msra.mxu0 %v1159
        %1196 = vmatmul.bf16.gmra.mxu0 %v1165
        %v1197 = vpop.f32.mrf.mxu0
        %v1198 = vadd.f32 0.0, %v1197
        %v1199 = vpop.f32.mrf.mxu0
        %v1200 = vadd.f32 0.0, %v1199
        %1201 = vmatmul.bf16.gmra.mxu0 %v1168
        %v1202 = vpop.f32.mrf.mxu0
        %v1203 = vadd.f32 0.0, %v1202
        %v1204 = vpop.f32.mrf.mxu0
        %v1205 = vadd.f32 0.0, %v1204
        %1206 = vmatmul.bf16.gmra.mxu0 %v1171
        %v1207 = vpop.f32.mrf.mxu0
        %v1208 = vadd.f32 0.0, %v1207
        %v1209 = vpop.f32.mrf.mxu0
        %v1210 = vadd.f32 0.0, %v1209
        %1211 = vmatmul.bf16.gmra.mxu0 %v1174
        %v1212 = vpop.f32.mrf.mxu0
        %v1213 = vadd.f32 0.0, %v1212
        %v1214 = vpop.f32.mrf.mxu0
        %v1215 = vadd.f32 0.0, %v1214
        %1216 = vmatmul.bf16.gmra.mxu0 %v1177
        %v1217 = vpop.f32.mrf.mxu0
        %v1218 = vadd.f32 0.0, %v1217
        %v1219 = vpop.f32.mrf.mxu0
        %v1220 = vadd.f32 0.0, %v1219
        %1221 = vmatmul.bf16.gmra.mxu0 %v1180
        %v1222 = vpop.f32.mrf.mxu0
        %v1223 = vadd.f32 0.0, %v1222
        %v1224 = vpop.f32.mrf.mxu0
        %v1225 = vadd.f32 0.0, %v1224
        %1226 = vmatmul.bf16.gmra.mxu0 %v1183
        %v1227 = vpop.f32.mrf.mxu0
        %v1228 = vadd.f32 0.0, %v1227
        %v1229 = vpop.f32.mrf.mxu0
        %v1230 = vadd.f32 0.0, %v1229
        %1231 = vmatmul.bf16.gmra.mxu0 %v1186
        %v1232 = vpop.f32.mrf.mxu0
        %v1233 = vadd.f32 0.0, %v1232
        %v1234 = vpop.f32.mrf.mxu0
        %v1235 = vadd.f32 0.0, %v1234
        %1236 = vdwg.mxu0
        %v1237 = vadd.f32 %v1135, %v1198
        %v1238 = vadd.f32 %v1136, %v1200
        %v1239 = vadd.f32 %v1137, %v1203
        %v1240 = vadd.f32 %v1138, %v1205
        %v1241 = vadd.f32 %v1139, %v1208
        %v1242 = vadd.f32 %v1140, %v1210
        %v1243 = vadd.f32 %v1141, %v1213
        %v1244 = vadd.f32 %v1142, %v1215
        %v1245 = vadd.f32 %v1143, %v1218
        %v1246 = vadd.f32 %v1144, %v1220
        %v1247 = vadd.f32 %v1145, %v1223
        %v1248 = vadd.f32 %v1146, %v1225
        %v1249 = vadd.f32 %v1147, %v1228
        %v1250 = vadd.f32 %v1148, %v1230
        %v1251 = vadd.f32 %v1149, %v1233
        %v1252 = vadd.f32 %v1150, %v1235
        %1253 = vst [vmem:[#allocation3] sm:$0xff] %v1237
        %1254 = vst [vmem:[#allocation3 + $0x8] sm:$0xff] %v1238
        %1255 = vst [vmem:[#allocation3 + $0x10] sm:$0xff] %v1239
        %1256 = vst [vmem:[#allocation3 + $0x18] sm:$0xff] %v1240
        %1257 = vst [vmem:[#allocation3 + $0x20] sm:$0xff] %v1241
        %1258 = vst [vmem:[#allocation3 + $0x28] sm:$0xff] %v1242
        %1259 = vst [vmem:[#allocation3 + $0x30] sm:$0xff] %v1243
        %1260 = vst [vmem:[#allocation3 + $0x38] sm:$0xff] %v1244
        %1261 = vst [vmem:[#allocation3 + $0x40] sm:$0xff] %v1245
        %1262 = vst [vmem:[#allocation3 + $0x48] sm:$0xff] %v1246
        %1263 = vst [vmem:[#allocation3 + $0x50] sm:$0xff] %v1247
        %1264 = vst [vmem:[#allocation3 + $0x58] sm:$0xff] %v1248
        %1265 = vst [vmem:[#allocation3 + $0x60] sm:$0xff] %v1249
        %1266 = vst [vmem:[#allocation3 + $0x68] sm:$0xff] %v1250
        %1267 = vst [vmem:[#allocation3 + $0x70] sm:$0xff] %v1251
        %1268 = vst [vmem:[#allocation3 + $0x78] sm:$0xff] %v1252
        %p1269 = scmp.eq.s32.totalorder %s25, 1
        // Predicated region
        $region65: #{tpu_custom_call.1} parent=39 // pred_check
          %p1270 = pneg %p1269
        $region66: #{tpu_custom_call.1} parent=39 // pred_check_branch
          %1272 = sbr.rel (%p1270) target = $region68
        $region67: #{tpu_custom_call.1} parent=39 // pred_region
          %v1273 = vld [vmem:[#allocation3] sm:$0xff]
          %v1274 = vld [vmem:[#allocation3 + $0x8] sm:$0xff]
          %v1275 = vld [vmem:[#allocation3 + $0x10] sm:$0xff]
          %v1276 = vld [vmem:[#allocation3 + $0x18] sm:$0xff]
          %v1277 = vld [vmem:[#allocation3 + $0x20] sm:$0xff]
          %v1278 = vld [vmem:[#allocation3 + $0x28] sm:$0xff]
          %v1279 = vld [vmem:[#allocation3 + $0x30] sm:$0xff]
          %v1280 = vld [vmem:[#allocation3 + $0x38] sm:$0xff]
          %v1281 = vld [vmem:[#allocation3 + $0x40] sm:$0xff]
          %v1282 = vld [vmem:[#allocation3 + $0x48] sm:$0xff]
          %v1283 = vld [vmem:[#allocation3 + $0x50] sm:$0xff]
          %v1284 = vld [vmem:[#allocation3 + $0x58] sm:$0xff]
          %v1285 = vld [vmem:[#allocation3 + $0x60] sm:$0xff]
          %v1286 = vld [vmem:[#allocation3 + $0x68] sm:$0xff]
          %v1287 = vld [vmem:[#allocation3 + $0x70] sm:$0xff]
          %v1288 = vld [vmem:[#allocation3 + $0x78] sm:$0xff]
          %v1289 = vpack.c.bf16 %v1274, %v1273
          %v1290 = vpack.c.bf16 %v1276, %v1275
          %v1291 = vpack.c.bf16 %v1278, %v1277
          %v1292 = vpack.c.bf16 %v1280, %v1279
          %v1293 = vpack.c.bf16 %v1282, %v1281
          %v1294 = vpack.c.bf16 %v1284, %v1283
          %v1295 = vpack.c.bf16 %v1286, %v1285
          %v1296 = vpack.c.bf16 %v1288, %v1287
          %v1297 = vld [vmem:[#allocation12] sm:$0xf]
          %v1298 = vld [vmem:[#allocation12 + $0x4] sm:$0xf]
          %v1299 = vld [vmem:[#allocation12 + $0x8] sm:$0xf]
          %v1300 = vld [vmem:[#allocation12 + $0xc] sm:$0xf]
          %v1301 = vld [vmem:[#allocation12 + $0x10] sm:$0xf]
          %v1302 = vld [vmem:[#allocation12 + $0x14] sm:$0xf]
          %v1303 = vld [vmem:[#allocation12 + $0x18] sm:$0xf]
          %v1304 = vld [vmem:[#allocation12 + $0x1c] sm:$0xf]
          %v1305 = vld [vmem:[#allocation12 + $0x20] sm:$0xf]
          %v1306 = vld [vmem:[#allocation12 + $0x24] sm:$0xf]
          %v1307 = vld [vmem:[#allocation12 + $0x28] sm:$0xf]
          %v1308 = vld [vmem:[#allocation12 + $0x2c] sm:$0xf]
          %v1309 = vld [vmem:[#allocation12 + $0x30] sm:$0xf]
          %v1310 = vld [vmem:[#allocation12 + $0x34] sm:$0xf]
          %v1311 = vld [vmem:[#allocation12 + $0x38] sm:$0xf]
          %v1312 = vld [vmem:[#allocation12 + $0x3c] sm:$0xf]
          %1313 = vxpose.xlu0.c.b16.start [1/8] %v1289, 128
          %1314 = vxpose.xlu0.c.b16.cont [2/8] %v1290, 128
          %1315 = vxpose.xlu0.c.b16.cont [3/8] %v1291, 128
          %1316 = vxpose.xlu0.c.b16.cont [4/8] %v1292, 128
          %1317 = vxpose.xlu0.c.b16.cont [5/8] %v1293, 128
          %1318 = vxpose.xlu0.c.b16.cont [6/8] %v1294, 128
          %1319 = vxpose.xlu0.c.b16.cont [7/8] %v1295, 128
          %1320 = vxpose.xlu0.c.b16.end [8/8] %v1296, 128
          %v1321 = vpop.trf.xlu0
          %v1322 = vpop.trf.xlu0
          %v1323 = vpop.trf.xlu0
          %v1324 = vpop.trf.xlu0
          %v1325 = vpop.trf.xlu0
          %v1326 = vpop.trf.xlu0
          %v1327 = vpop.trf.xlu0
          %v1328 = vpop.trf.xlu0
          %v1345 = vunpack.c.l.b16 %v1297
          %v1346 = vunpack.c.l.b16 %v1298
          %v1347 = vunpack.c.l.b16 %v1299
          %v1348 = vunpack.c.l.b16 %v1300
          %v1349 = vunpack.c.l.b16 %v1301
          %v1350 = vunpack.c.l.b16 %v1302
          %v1351 = vunpack.c.l.b16 %v1303
          %v1352 = vunpack.c.l.b16 %v1304
          %v1353 = vunpack.c.l.b16 %v1305
          %v1354 = vunpack.c.l.b16 %v1306
          %v1355 = vunpack.c.l.b16 %v1307
          %v1356 = vunpack.c.l.b16 %v1308
          %v1357 = vunpack.c.l.b16 %v1309
          %v1358 = vunpack.c.l.b16 %v1310
          %v1359 = vunpack.c.l.b16 %v1311
          %v1360 = vunpack.c.l.b16 %v1312
          %v1361 = vpack.c.b16 %v1346, %v1345
          %v1362 = vpack.c.b16 %v1348, %v1347
          %v1363 = vpack.c.b16 %v1350, %v1349
          %v1364 = vpack.c.b16 %v1352, %v1351
          %v1365 = vpack.c.b16 %v1354, %v1353
          %v1366 = vpack.c.b16 %v1356, %v1355
          %v1367 = vpack.c.b16 %v1358, %v1357
          %v1368 = vpack.c.b16 %v1360, %v1359
          %1377 = vmatpush.bf16.msra.mxu0 %v1368
          %1378 = vmatpush.bf16.msra.mxu0 %v1367
          %1379 = vmatpush.bf16.msra.mxu0 %v1366
          %1380 = vmatpush.bf16.msra.mxu0 %v1365
          %1381 = vmatpush.bf16.msra.mxu0 %v1364
          %1382 = vmatpush.bf16.msra.mxu0 %v1363
          %1383 = vmatpush.bf16.msra.mxu0 %v1362
          %1384 = vmatpush.bf16.msra.mxu0 %v1361
          %1385 = vmatmul.bf16.gmra.mxu0 %v1321
          %v1386 = vpop.f32.mrf.mxu0
          %v1387 = vadd.f32 0.0, %v1386
          %v1388 = vpop.f32.mrf.mxu0
          %v1389 = vadd.f32 0.0, %v1388
          %1390 = vmatmul.bf16.gmra.mxu0 %v1322
          %v1391 = vpop.f32.mrf.mxu0
          %v1392 = vadd.f32 0.0, %v1391
          %v1393 = vpop.f32.mrf.mxu0
          %v1394 = vadd.f32 0.0, %v1393
          %1395 = vmatmul.bf16.gmra.mxu0 %v1323
          %v1396 = vpop.f32.mrf.mxu0
          %v1397 = vadd.f32 0.0, %v1396
          %v1398 = vpop.f32.mrf.mxu0
          %v1399 = vadd.f32 0.0, %v1398
          %1400 = vmatmul.bf16.gmra.mxu0 %v1324
          %v1401 = vpop.f32.mrf.mxu0
          %v1402 = vadd.f32 0.0, %v1401
          %v1403 = vpop.f32.mrf.mxu0
          %v1404 = vadd.f32 0.0, %v1403
          %1405 = vmatmul.bf16.gmra.mxu0 %v1325
          %v1406 = vpop.f32.mrf.mxu0
          %v1407 = vadd.f32 0.0, %v1406
          %v1408 = vpop.f32.mrf.mxu0
          %v1409 = vadd.f32 0.0, %v1408
          %1410 = vmatmul.bf16.gmra.mxu0 %v1326
          %v1411 = vpop.f32.mrf.mxu0
          %v1412 = vadd.f32 0.0, %v1411
          %v1413 = vpop.f32.mrf.mxu0
          %v1414 = vadd.f32 0.0, %v1413
          %1415 = vmatmul.bf16.gmra.mxu0 %v1327
          %v1416 = vpop.f32.mrf.mxu0
          %v1417 = vadd.f32 0.0, %v1416
          %v1418 = vpop.f32.mrf.mxu0
          %v1419 = vadd.f32 0.0, %v1418
          %1420 = vmatmul.bf16.gmra.mxu0 %v1328
          %v1421 = vpop.f32.mrf.mxu0
          %v1422 = vadd.f32 0.0, %v1421
          %v1423 = vpop.f32.mrf.mxu0
          %v1424 = vadd.f32 0.0, %v1423
          %1425 = vdwg.mxu0
          %1426 = vst [vmem:[#allocation13] sm:$0xff] %v1387
          %1427 = vst [vmem:[#allocation13 + $0x8] sm:$0xff] %v1389
          %1428 = vst [vmem:[#allocation13 + $0x10] sm:$0xff] %v1392
          %1429 = vst [vmem:[#allocation13 + $0x18] sm:$0xff] %v1394
          %1430 = vst [vmem:[#allocation13 + $0x20] sm:$0xff] %v1397
          %1431 = vst [vmem:[#allocation13 + $0x28] sm:$0xff] %v1399
          %1432 = vst [vmem:[#allocation13 + $0x30] sm:$0xff] %v1402
          %1433 = vst [vmem:[#allocation13 + $0x38] sm:$0xff] %v1404
          %1434 = vst [vmem:[#allocation13 + $0x40] sm:$0xff] %v1407
          %1435 = vst [vmem:[#allocation13 + $0x48] sm:$0xff] %v1409
          %1436 = vst [vmem:[#allocation13 + $0x50] sm:$0xff] %v1412
          %1437 = vst [vmem:[#allocation13 + $0x58] sm:$0xff] %v1414
          %1438 = vst [vmem:[#allocation13 + $0x60] sm:$0xff] %v1417
          %1439 = vst [vmem:[#allocation13 + $0x68] sm:$0xff] %v1419
          %1440 = vst [vmem:[#allocation13 + $0x70] sm:$0xff] %v1422
          %1441 = vst [vmem:[#allocation13 + $0x78] sm:$0xff] %v1424
        $region68: #{tpu_custom_call.1} parent=39 // pred_fallthru
          _
        %s1442 = sand.u32 %s159, 1
        %s1443 = scalar_lea.sflag [#allocation15], %s1442
        %s1444 = sand.u32 %s159, 1
        %s1445 = smul.addr %s1444, 64
        %s1446 = scalar_lea.vmem [#allocation14], %s1445
        // Predicated region
        $region69: #{tpu_custom_call.1} parent=39 // pred_check
          %p1447 = pneg %p143
        $region70: #{tpu_custom_call.1} parent=39 // pred_check_branch
          %1449 = sbr.rel (%p1447) target = $region72
        $region71: #{tpu_custom_call.1} parent=39 // pred_region
          %1451 = vsyncadd [#allocation6], 0
          %s1452 = sshll.u32 [#allocation13], 4
          %s1453 = int_to_ptr.vmem [resolvable:$true] %s1452
          %s1454 = sshll.u32 %s5, 4
          %s1455 = int_to_ptr.hbm [resolvable:$true] %s1454
          %1460 = dma.vmem_to_hbm [thread:$0]  %s1453, 2048, %s1455, [#allocation6], 128, 128, 8
        $region72: #{tpu_custom_call.1} parent=39 // pred_fallthru
          _
        // Predicated region
        $region73: #{tpu_custom_call.1} parent=39 // pred_check
          %p1461 = pneg %p169
        $region74: #{tpu_custom_call.1} parent=39 // pred_check_branch
          %1463 = sbr.rel (%p1461) target = $region76
        $region75: #{tpu_custom_call.1} parent=39 // pred_region
          %s1464 = smul.u32 8, %s25
          %1466 = vsyncadd %s1443, 0
          %s1467 = smul.addr %s1464, 8
          %s1468 = scalar_lea.hbm %s6, %s1467
          %s1469 = sshll.u32 %s1446, 4
          %s1470 = int_to_ptr.vmem [resolvable:$true] %s1469
          %s1471 = sshll.u32 %s1468, 4
          %s1472 = int_to_ptr.hbm [resolvable:$true] %s1471
          %1477 = dma.vmem_to_hbm [thread:$0]  %s1470, 1024, %s1472, %s1443, 128, 128, 8
        $region76: #{tpu_custom_call.1} parent=39 // pred_fallthru
          _
        // Predicated region
        $region77: #{tpu_custom_call.1} parent=39 // pred_check
          %p1478 = pneg %p143
        $region78: #{tpu_custom_call.1} parent=39 // pred_check_branch
          %1480 = sbr.rel (%p1478) target = $region80
        $region79: #{tpu_custom_call.1} parent=39 // pred_region
          %1482 = dma.done [#allocation6], 2048
        $region80: #{tpu_custom_call.1} parent=39 // pred_fallthru
          _
      $region40: #{tpu_custom_call.1} parent=5 // pred_fallthru
        _
      %p1483 = scmp.le.s32.totalorder 2, %s20
      // Predicated region
      $region81: #{tpu_custom_call.1} parent=5 // pred_check
        %p1484 = pneg %p1483
      $region82: #{tpu_custom_call.1} parent=5 // pred_check_branch
        %1486 = sbr.rel (%p1484) target = $region84
      $region83: #{tpu_custom_call.1} parent=5 // pred_region
        %s1487 = ssub.s32 %s20, 2
        // Predicated region
        $region85: #{tpu_custom_call.1} parent=83 // pred_check
          %p1488 = pneg %p175
        $region86: #{tpu_custom_call.1} parent=83 // pred_check_branch
          %1490 = sbr.rel (%p1488) target = $region88
        $region87: #{tpu_custom_call.1} parent=83 // pred_region
          %s1491 = sand.u32 %s160, 1
          %s1492 = scalar_lea.sflag [#allocation15], %s1491
          %s1493 = sand.u32 %s160, 1
          %s1494 = smul.addr %s1493, 64
          %s1495 = scalar_lea.vmem [#allocation14], %s1494
          %1497 = dma.done %s1492, 1024
        $region88: #{tpu_custom_call.1} parent=83 // pred_fallthru
          _
      $region84: #{tpu_custom_call.1} parent=5 // pred_fallthru
        _
    $region6: #{tpu_custom_call.1} parent=1 // loop_footer
      %s24 = sadd.s32 1, %s20
    $region7: #{tpu_custom_call.1} parent=1 // loop_footer_branch
      %19 = sbr.rel target = $region3
    $region8: #{tpu_custom_call.1} parent=1 // loop_exit
      _
    %1498 = vsyncpa [#allocation5], 1
    %s1499 = scalar_lea.sflag [#allocation5], 1
    %1500 = vsyncpa %s1499, 1
    %1501 = vsyncpa [#allocation8], 1
    %1502 = vsyncpa [#allocation11], 1
    %1503 = vsyncpa [#allocation6], 1
    %s1504 = scalar_lea.sflag [#allocation6], 1
    %1505 = vsyncpa %s1504, 1
    %1506 = vsyncpa [#allocation15], 1
    %s1507 = scalar_lea.sflag [#allocation15], 1
    %1508 = vsyncpa %s1507, 1

</llo_original>
